<compile_context>
chip_gen: v5e
topology: v5e:2x2
jax: 0.10.0
libtpu: 0.0.40
codegen_flags: <defaults>
</compile_context>

<pallas_src>
import functools

import jax
import jax.numpy as jnp
from jax import lax
from jax.experimental import pallas as pl
from jax.experimental.pallas import tpu as pltpu

# --- scaled-down hyper-parameters consistent with the module structure ---
N_EMBED = 128          # module: 384
N_HEAD = 4             # module: 6   (head_size = N_EMBED // N_HEAD)
N_LAYER = 2            # module: 6
BLOCK_SIZE = 64        # module: 256
VOCAB_SIZE = 65        # module: len(chars)
VOCAB_PAD = 128        # lm_head padded to lane-dense 128
LN_EPS = 1e-5          # torch.nn.LayerNorm default
NEG_MASK = -1e30       # finite additive causal mask (bf16/tiling safe)

# TODO(synk): dropout (p=0.2) is a no-op here (inference/eval semantics).
# TODO(synk): at full module sizes (C=384, 6 layers) the all-weights-VMEM-resident plan
#             is ~21 MiB bf16 (~42 MiB double-buffered) -> on v7x (64 MiB VMEM, 32 MiB
#             scoped default) switch to a per-layer weight-streaming grid axis
#             (pl.Buffered(2) / pltpu.emit_pipeline); v5e/v6e (128 MiB) can stay resident.
# TODO(synk): with the batch grid axis the per-head score tiles are (T,T)=(64,64), i.e.
#             half-lane at this toy T; at the real block_size=256 they are lane-dense.


def _layernorm(x, g, b):
    # x: (..., C) f32, g/b: (1, C) f32
    mu = jnp.mean(x, axis=-1, keepdims=True)
    var = jnp.mean((x - mu) ** 2, axis=-1, keepdims=True)
    return (x - mu) * lax.rsqrt(var + LN_EPS) * g + b


def fused_forward_kernel(x0_ref,
                         ln1g_ref, ln1b_ref,
                         wqkv_ref, wo_ref, bo_ref,
                         ln2g_ref, ln2b_ref,
                         w1_ref, b1_ref, w2_ref, b2_ref,
                         lnfg_ref, lnfb_ref, wlm_ref, blm_ref,
                         o_ref, *, n_layer, n_head):
    T, C = x0_ref.shape
    hs = C // n_head

    x = x0_ref[...]                                          # (T, C) f32 residual stream

    # causal additive mask, built once (hoisted out of layer/head loops; finite, no -inf)
    row = lax.broadcasted_iota(jnp.int32, (T, T), 0)
    col = lax.broadcasted_iota(jnp.int32, (T, T), 1)
    neg_mask = jnp.where(col <= row, 0.0, NEG_MASK).astype(jnp.float32)   # (T, T)

    for l in range(n_layer):                                 # static layer loop
        # ---- ln1 + fused-QKV causal multi-head self-attention ----
        xn1 = _layernorm(x, ln1g_ref[l], ln1b_ref[l]).astype(jnp.bfloat16)
        # NOTE: PyTorch Head scales scores by C**-0.5 (n_embed); folded into the Q
        # columns of wqkv at parameter-build time.
        qkv = jnp.dot(xn1, wqkv_ref[l], preferred_element_type=jnp.float32)  # (T, 3C)

        heads = []
        for h in range(n_head):                              # static head loop
            lo = h * hs
            qh = qkv[:, lo:lo + hs].astype(jnp.bfloat16)             # (T, hs)
            kh = qkv[:, C + lo:C + lo + hs].astype(jnp.bfloat16)     # (T, hs)
            vh = qkv[:, 2 * C + lo:2 * C + lo + hs].astype(jnp.bfloat16)
            s = jnp.einsum('td,sd->ts', qh, kh,
                           preferred_element_type=jnp.float32)       # (T, T) f32
            s = s + neg_mask
            s = s - jnp.max(s, axis=-1, keepdims=True)
            p = jnp.exp(s)
            inv = pl.reciprocal(jnp.sum(p, axis=-1, keepdims=True), approx=True)
            p = (p * inv).astype(jnp.bfloat16)
            heads.append(jnp.dot(p, vh, preferred_element_type=jnp.float32))  # (T, hs)

        # concat(heads) stays in registers; single K=C output projection
        att = jnp.concatenate(heads, axis=-1).astype(jnp.bfloat16)   # (T, C)
        sa = jnp.dot(att, wo_ref[l], preferred_element_type=jnp.float32) + bo_ref[l]
        x = x + sa                                           # residual 1

        # ---- ln2 + feed-forward (single lane-dense 4C-wide hidden matmul) ----
        xn2 = _layernorm(x, ln2g_ref[l], ln2b_ref[l]).astype(jnp.bfloat16)
        h1 = jnp.dot(xn2, w1_ref[l], preferred_element_type=jnp.float32) + b1_ref[l]
        h1 = jnp.maximum(h1, 0.0).astype(jnp.bfloat16)       # ReLU
        ff = jnp.dot(h1, w2_ref[l], preferred_element_type=jnp.float32) + b2_ref[l]
        x = x + ff                                           # residual 2

    # ---- final LayerNorm + lm_head (lane-dense, vocab padded to 128) ----
    xn = _layernorm(x, lnfg_ref[...], lnfb_ref[...]).astype(jnp.bfloat16)
    logits = jnp.dot(xn, wlm_ref[...], preferred_element_type=jnp.float32) + blm_ref[...]
    o_ref[...] = logits.astype(o_ref.dtype)


def _w_spec(shape):
    # index-invariant weight block: full array, same block for every grid step
    # (Pallas skips the re-DMA when the block index does not change).
    return pl.BlockSpec(shape, lambda b: (0,) * len(shape))


@jax.jit
def bigram_lm_forward(idx, params):
    """Forward pass: idx (B, T) int32 -> logits (B, T, vocab_size)."""
    B, T = idx.shape
    C, L, H4, VP = N_EMBED, N_LAYER, 4 * N_EMBED, VOCAB_PAD

    # Token-embedding gather + position add in XLA (cheap; scales to real vocab sizes).
    tok_emb = jnp.take(params["tok_table"], idx, axis=0)             # (B, T, C) f32
    x0 = tok_emb + params["pos_table"][:T][None]                     # broadcast over B

    kernel = functools.partial(fused_forward_kernel, n_layer=L, n_head=N_HEAD)

    in_specs = [
        pl.BlockSpec((None, T, C), lambda b: (b, 0, 0)),             # per-batch x0 slice
        _w_spec((L, 1, C)), _w_spec((L, 1, C)),                      # ln1 gamma/beta
        _w_spec((L, C, 3 * C)),                                      # fused Wqkv
        _w_spec((L, C, C)), _w_spec((L, 1, C)),                      # Wo, bo
        _w_spec((L, 1, C)), _w_spec((L, 1, C)),                      # ln2 gamma/beta
        _w_spec((L, C, H4)), _w_spec((L, 1, H4)),                    # FFN W1, b1
        _w_spec((L, H4, C)), _w_spec((L, 1, C)),                     # FFN W2, b2
        _w_spec((1, C)), _w_spec((1, C)),                            # ln_f gamma/beta
        _w_spec((C, VP)), _w_spec((1, VP)),                          # lm_head W, b (padded)
    ]

    logits_padded = pl.pallas_call(
        kernel,
        out_shape=jax.ShapeDtypeStruct((B, T, VP), jnp.float32),
        grid=(B,),                                                   # batch -> TC-parallel
        in_specs=in_specs,
        out_specs=pl.BlockSpec((None, T, VP), lambda b: (b, 0, 0)),
        compiler_params=pltpu.CompilerParams(
            dimension_semantics=("parallel",),
            vmem_limit_bytes=32 * 1024 * 1024),                      # need only ~2 MiB here
    )(x0,
      params["ln1_g"], params["ln1_b"],
      params["wqkv"], params["wo"], params["bo"],
      params["ln2_g"], params["ln2_b"],
      params["w1"], params["b1"], params["w2"], params["b2"],
      params["lnf_g"], params["lnf_b"], params["w_lm"], params["b_lm"])

    return logits_padded[:, :, :VOCAB_SIZE]


def init_params(key):
    C, V, VP, H4, L = N_EMBED, VOCAB_SIZE, VOCAB_PAD, 4 * N_EMBED, N_LAYER
    std = 0.02
    keys = jax.random.split(key, 9)

    def norm(k, shape):
        return std * jax.random.normal(k, shape, dtype=jnp.float32)

    scale = float(C) ** -0.5                 # PyTorch uses C**-0.5 (n_embed), folded into Wq
    wq = norm(keys[3], (L, C, C)) * scale
    wk = norm(keys[4], (L, C, C))
    wv = norm(keys[5], (L, C, C))
    wqkv = jnp.concatenate([wq, wk, wv], axis=-1)                    # (L, C, 3C)

    w_lm = jnp.zeros((C, VP), jnp.float32).at[:, :V].set(norm(keys[2], (C, V)))

    params = {
        "tok_table": norm(keys[0], (V, C)),                          # (V, C) f32 (XLA gather)
        "pos_table": norm(keys[1], (BLOCK_SIZE, C)),                 # (block_size, C) f32
        "ln1_g": jnp.ones((L, 1, C), jnp.float32),
        "ln1_b": jnp.zeros((L, 1, C), jnp.float32),
        "ln2_g": jnp.ones((L, 1, C), jnp.float32),
        "ln2_b": jnp.zeros((L, 1, C), jnp.float32),
        "wqkv": wqkv.astype(jnp.bfloat16),
        "wo": norm(keys[6], (L, C, C)).astype(jnp.bfloat16),
        "bo": jnp.zeros((L, 1, C), jnp.float32),
        "w1": norm(keys[7], (L, C, H4)).astype(jnp.bfloat16),
        "b1": jnp.zeros((L, 1, H4), jnp.float32),
        "w2": norm(keys[8], (L, H4, C)).astype(jnp.bfloat16),
        "b2": jnp.zeros((L, 1, C), jnp.float32),
        "lnf_g": jnp.ones((1, C), jnp.float32),
        "lnf_b": jnp.zeros((1, C), jnp.float32),
        "w_lm": w_lm.astype(jnp.bfloat16),                           # (C, VP), cols >= V zero
        "b_lm": jnp.zeros((1, VP), jnp.float32),
    }
    return params


def _forward_ref(idx, params):
    """Pure-JAX reference (same bf16 weights, f32 math) for a tolerance check."""
    B, T = idx.shape
    C, L, H = N_EMBED, N_LAYER, N_HEAD
    hs = C // H
    f32 = lambda a: a.astype(jnp.float32)

    x = jnp.take(params["tok_table"], idx, axis=0) + params["pos_table"][:T][None]
    tril = jnp.tril(jnp.ones((T, T), dtype=bool))
    for l in range(L):
        xn = _layernorm(x, params["ln1_g"][l], params["ln1_b"][l])
        qkv = xn @ f32(params["wqkv"][l])
        q, k, v = qkv[..., :C], qkv[..., C:2 * C], qkv[..., 2 * C:]
        outs = []
        for h in range(H):
            sl = slice(h * hs, (h + 1) * hs)
            s = q[..., sl] @ jnp.swapaxes(k[..., sl], -1, -2)
            s = jnp.where(tril, s, -jnp.inf)
            outs.append(jax.nn.softmax(s, axis=-1) @ v[..., sl])
        att = jnp.concatenate(outs, axis=-1)
        x = x + att @ f32(params["wo"][l]) + params["bo"][l]
        xn = _layernorm(x, params["ln2_g"][l], params["ln2_b"][l])
        h1 = jnp.maximum(xn @ f32(params["w1"][l]) + params["b1"][l], 0.0)
        x = x + h1 @ f32(params["w2"][l]) + params["b2"][l]
    xn = _layernorm(x, params["lnf_g"], params["lnf_b"])
    logits = xn @ f32(params["w_lm"]) + params["b_lm"]
    return logits[..., :VOCAB_SIZE]


if __name__ == "__main__":
    key = jax.random.PRNGKey(0)
    pkey, ikey = jax.random.split(key)
    params = init_params(pkey)

    B, T = 2, BLOCK_SIZE
    idx = jax.random.randint(ikey, (B, T), 0, VOCAB_SIZE, dtype=jnp.int32)

    logits = bigram_lm_forward(idx, params)
    logits = jax.block_until_ready(logits)

    assert logits.shape == (B, T, VOCAB_SIZE), logits.shape
    assert bool(jnp.all(jnp.isfinite(logits)))

    # tolerance-based check against a pure-JAX reference (bf16 matmuls inside the
    # kernel + approx reciprocal -> small, bounded deviation)
    ref = jax.block_until_ready(_forward_ref(idx, params))
    max_diff = float(jnp.max(jnp.abs(logits - ref)))
    assert max_diff < 5e-2, f"max |kernel - ref| = {max_diff}"

    print("KERNEL_OK")
</pallas_src>

<mosaic_0001>
module attributes {stable_mosaic.version = 11 : i64} {
  func.func @fused_forward_kernel(%arg0: i32, %arg1: memref<1x64x128xf32, #tpu.memory_space<vmem>>, %arg2: memref<2x1x128xf32, #tpu.memory_space<vmem>>, %arg3: memref<2x1x128xf32, #tpu.memory_space<vmem>>, %arg4: memref<2x128x384xbf16, #tpu.memory_space<vmem>>, %arg5: memref<2x128x128xbf16, #tpu.memory_space<vmem>>, %arg6: memref<2x1x128xf32, #tpu.memory_space<vmem>>, %arg7: memref<2x1x128xf32, #tpu.memory_space<vmem>>, %arg8: memref<2x1x128xf32, #tpu.memory_space<vmem>>, %arg9: memref<2x128x512xbf16, #tpu.memory_space<vmem>>, %arg10: memref<2x1x512xf32, #tpu.memory_space<vmem>>, %arg11: memref<2x512x128xbf16, #tpu.memory_space<vmem>>, %arg12: memref<2x1x128xf32, #tpu.memory_space<vmem>>, %arg13: memref<1x128xf32, #tpu.memory_space<vmem>>, %arg14: memref<1x128xf32, #tpu.memory_space<vmem>>, %arg15: memref<128x128xbf16, #tpu.memory_space<vmem>>, %arg16: memref<1x128xf32, #tpu.memory_space<vmem>>, %arg17: memref<1x64x128xf32, #tpu.memory_space<vmem>>) attributes {dimension_semantics = [#tpu.dimension_semantics<parallel>], iteration_bounds = array<i64: 2>, scalar_prefetch = 0 : i64, scratch_operands = 0 : i64, tpu.core_type = #tpu.core_type<tc>, window_params = [{transform_indices = @transform_0, window_bounds = array<i64: 1, 64, 128>}, {pipeline_mode = #tpu.pipeline_mode<synchronous>, transform_indices = @transform_1, window_bounds = array<i64: 2, 1, 128>}, {pipeline_mode = #tpu.pipeline_mode<synchronous>, transform_indices = @transform_2, window_bounds = array<i64: 2, 1, 128>}, {pipeline_mode = #tpu.pipeline_mode<synchronous>, transform_indices = @transform_3, window_bounds = array<i64: 2, 128, 384>}, {pipeline_mode = #tpu.pipeline_mode<synchronous>, transform_indices = @transform_4, window_bounds = array<i64: 2, 128, 128>}, {pipeline_mode = #tpu.pipeline_mode<synchronous>, transform_indices = @transform_5, window_bounds = array<i64: 2, 1, 128>}, {pipeline_mode = #tpu.pipeline_mode<synchronous>, transform_indices = @transform_6, window_bounds = array<i64: 2, 1, 128>}, {pipeline_mode = #tpu.pipeline_mode<synchronous>, transform_indices = @transform_7, window_bounds = array<i64: 2, 1, 128>}, {pipeline_mode = #tpu.pipeline_mode<synchronous>, transform_indices = @transform_8, window_bounds = array<i64: 2, 128, 512>}, {pipeline_mode = #tpu.pipeline_mode<synchronous>, transform_indices = @transform_9, window_bounds = array<i64: 2, 1, 512>}, {pipeline_mode = #tpu.pipeline_mode<synchronous>, transform_indices = @transform_10, window_bounds = array<i64: 2, 512, 128>}, {pipeline_mode = #tpu.pipeline_mode<synchronous>, transform_indices = @transform_11, window_bounds = array<i64: 2, 1, 128>}, {pipeline_mode = #tpu.pipeline_mode<synchronous>, transform_indices = @transform_12, window_bounds = array<i64: 1, 128>}, {pipeline_mode = #tpu.pipeline_mode<synchronous>, transform_indices = @transform_13, window_bounds = array<i64: 1, 128>}, {pipeline_mode = #tpu.pipeline_mode<synchronous>, transform_indices = @transform_14, window_bounds = array<i64: 128, 128>}, {pipeline_mode = #tpu.pipeline_mode<synchronous>, transform_indices = @transform_15, window_bounds = array<i64: 1, 128>}, {transform_indices = @transform_16, window_bounds = array<i64: 1, 64, 128>}]} {
    %c0 = arith.constant 0 : index
    %c0_0 = arith.constant 0 : index
    %c0_1 = arith.constant 0 : index
    %0 = vector.load %arg1[%c0, %c0_0, %c0_1] : memref<1x64x128xf32, #tpu.memory_space<vmem>>, vector<1x64x128xf32>
    %1 = vector.shape_cast %0 : vector<1x64x128xf32> to vector<64x128xf32>
    %2 = tpu.iota {dimensions = array<i32: 0>} : vector<64x64xi32>
    %3 = tpu.iota {dimensions = array<i32: 1>} : vector<64x64xi32>
    %4 = arith.cmpi sle, %3, %2 : vector<64x64xi32>
    %cst = arith.constant 0.000000e+00 : f32
    %cst_2 = arith.constant -1.000000e+30 : f32
    %5 = vector.broadcast %cst : f32 to vector<64x64xf32>
    %6 = vector.broadcast %cst_2 : f32 to vector<64x64xf32>
    %7 = arith.select %4, %5, %6 : vector<64x64xi1>, vector<64x64xf32>
    %c0_3 = arith.constant 0 : index
    %c0_4 = arith.constant 0 : index
    %c0_5 = arith.constant 0 : index
    %8 = vector.load %arg2[%c0_3, %c0_4, %c0_5] : memref<2x1x128xf32, #tpu.memory_space<vmem>>, vector<1x1x128xf32>
    %9 = vector.shape_cast %8 : vector<1x1x128xf32> to vector<1x128xf32>
    %c0_6 = arith.constant 0 : index
    %c0_7 = arith.constant 0 : index
    %c0_8 = arith.constant 0 : index
    %10 = vector.load %arg3[%c0_6, %c0_7, %c0_8] : memref<2x1x128xf32, #tpu.memory_space<vmem>>, vector<1x1x128xf32>
    %11 = vector.shape_cast %10 : vector<1x1x128xf32> to vector<1x128xf32>
    %cst_9 = arith.constant dense<0.000000e+00> : vector<64xf32>
    %12 = vector.multi_reduction <add>, %1, %cst_9 [1] : vector<64x128xf32> to vector<64xf32>
    %13 = vector.shape_cast %12 : vector<64xf32> to vector<64x1xf32>
    %cst_10 = arith.constant 1.280000e+02 : f32
    %14 = vector.broadcast %cst_10 : f32 to vector<64x1xf32>
    %15 = arith.divf %13, %14 : vector<64x1xf32>
    %16 = vector.broadcast %15 : vector<64x1xf32> to vector<64x128xf32>
    %17 = arith.subf %1, %16 : vector<64x128xf32>
    %18 = arith.mulf %17, %17 : vector<64x128xf32>
    %cst_11 = arith.constant dense<0.000000e+00> : vector<64xf32>
    %19 = vector.multi_reduction <add>, %18, %cst_11 [1] : vector<64x128xf32> to vector<64xf32>
    %20 = vector.shape_cast %19 : vector<64xf32> to vector<64x1xf32>
    %cst_12 = arith.constant 1.280000e+02 : f32
    %21 = vector.broadcast %cst_12 : f32 to vector<64x1xf32>
    %22 = arith.divf %20, %21 : vector<64x1xf32>
    %23 = vector.broadcast %15 : vector<64x1xf32> to vector<64x128xf32>
    %24 = arith.subf %1, %23 : vector<64x128xf32>
    %cst_13 = arith.constant 9.99999974E-6 : f32
    %25 = vector.broadcast %cst_13 : f32 to vector<64x1xf32>
    %26 = arith.addf %22, %25 : vector<64x1xf32>
    %27 = math.rsqrt %26 : vector<64x1xf32>
    %28 = vector.broadcast %27 : vector<64x1xf32> to vector<64x128xf32>
    %29 = arith.mulf %24, %28 : vector<64x128xf32>
    %30 = vector.broadcast %9 : vector<1x128xf32> to vector<64x128xf32>
    %31 = arith.mulf %29, %30 : vector<64x128xf32>
    %32 = vector.broadcast %11 : vector<1x128xf32> to vector<64x128xf32>
    %33 = arith.addf %31, %32 : vector<64x128xf32>
    %34 = arith.truncf %33 : vector<64x128xf32> to vector<64x128xbf16>
    %c0_14 = arith.constant 0 : index
    %c0_15 = arith.constant 0 : index
    %c0_16 = arith.constant 0 : index
    %35 = vector.load %arg4[%c0_14, %c0_15, %c0_16] : memref<2x128x384xbf16, #tpu.memory_space<vmem>>, vector<1x128x384xbf16>
    %36 = vector.shape_cast %35 : vector<1x128x384xbf16> to vector<128x384xbf16>
    %cst_17 = arith.constant dense<0.000000e+00> : vector<64x384xf32>
    %37 = tpu.matmul %34, %36, %cst_17 {dimension_numbers = #tpu.dot_dimension_numbers<[1], [0], [0], [1], [0, 0, 1, 1], [], []>} : vector<64x128xbf16>, vector<128x384xbf16>, vector<64x384xf32> -> vector<64x384xf32>
    %38 = vector.extract_strided_slice %37 {offsets = [0, 0], sizes = [64, 32], strides = [1, 1]} : vector<64x384xf32> to vector<64x32xf32>
    %39 = arith.truncf %38 : vector<64x32xf32> to vector<64x32xbf16>
    %40 = vector.extract_strided_slice %37 {offsets = [0, 128], sizes = [64, 32], strides = [1, 1]} : vector<64x384xf32> to vector<64x32xf32>
    %41 = arith.truncf %40 : vector<64x32xf32> to vector<64x32xbf16>
    %42 = vector.extract_strided_slice %37 {offsets = [0, 256], sizes = [64, 32], strides = [1, 1]} : vector<64x384xf32> to vector<64x32xf32>
    %43 = arith.truncf %42 : vector<64x32xf32> to vector<64x32xbf16>
    "tpu.trace_start"() <{level = 10 : i32, message = "td,sd->ts"}> : () -> ()
    %cst_18 = arith.constant dense<0.000000e+00> : vector<64x64xf32>
    %44 = tpu.matmul %39, %41, %cst_18 {dimension_numbers = #tpu.dot_dimension_numbers<[1], [1], [0], [0], [0, 0, 1, 0], [], []>} : vector<64x32xbf16>, vector<64x32xbf16>, vector<64x64xf32> -> vector<64x64xf32>
    "tpu.trace_stop"() : () -> ()
    %45 = arith.addf %44, %7 : vector<64x64xf32>
    %cst_19 = arith.constant dense<0xFF800000> : vector<64xf32>
    %46 = vector.multi_reduction <maximumf>, %45, %cst_19 [1] : vector<64x64xf32> to vector<64xf32>
    %47 = vector.shape_cast %46 : vector<64xf32> to vector<64x1xf32>
    %48 = vector.broadcast %47 : vector<64x1xf32> to vector<64x64xf32>
    %49 = arith.subf %45, %48 : vector<64x64xf32>
    %50 = math.exp %49 : vector<64x64xf32>
    %cst_20 = arith.constant dense<0.000000e+00> : vector<64xf32>
    %51 = vector.multi_reduction <add>, %50, %cst_20 [1] : vector<64x64xf32> to vector<64xf32>
    %52 = vector.shape_cast %51 : vector<64xf32> to vector<64x1xf32>
    %53 = tpu.reciprocal %52 {approx = true} : vector<64x1xf32> -> vector<64x1xf32>
    %54 = vector.broadcast %53 : vector<64x1xf32> to vector<64x64xf32>
    %55 = arith.mulf %50, %54 : vector<64x64xf32>
    %56 = arith.truncf %55 : vector<64x64xf32> to vector<64x64xbf16>
    %cst_21 = arith.constant dense<0.000000e+00> : vector<64x32xf32>
    %57 = tpu.matmul %56, %43, %cst_21 {dimension_numbers = #tpu.dot_dimension_numbers<[1], [0], [0], [1], [0, 0, 1, 1], [], []>} : vector<64x64xbf16>, vector<64x32xbf16>, vector<64x32xf32> -> vector<64x32xf32>
    %58 = vector.extract_strided_slice %37 {offsets = [0, 32], sizes = [64, 32], strides = [1, 1]} : vector<64x384xf32> to vector<64x32xf32>
    %59 = arith.truncf %58 : vector<64x32xf32> to vector<64x32xbf16>
    %60 = vector.extract_strided_slice %37 {offsets = [0, 160], sizes = [64, 32], strides = [1, 1]} : vector<64x384xf32> to vector<64x32xf32>
    %61 = arith.truncf %60 : vector<64x32xf32> to vector<64x32xbf16>
    %62 = vector.extract_strided_slice %37 {offsets = [0, 288], sizes = [64, 32], strides = [1, 1]} : vector<64x384xf32> to vector<64x32xf32>
    %63 = arith.truncf %62 : vector<64x32xf32> to vector<64x32xbf16>
    "tpu.trace_start"() <{level = 10 : i32, message = "td,sd->ts"}> : () -> ()
    %cst_22 = arith.constant dense<0.000000e+00> : vector<64x64xf32>
    %64 = tpu.matmul %59, %61, %cst_22 {dimension_numbers = #tpu.dot_dimension_numbers<[1], [1], [0], [0], [0, 0, 1, 0], [], []>} : vector<64x32xbf16>, vector<64x32xbf16>, vector<64x64xf32> -> vector<64x64xf32>
    "tpu.trace_stop"() : () -> ()
    %65 = arith.addf %64, %7 : vector<64x64xf32>
    %cst_23 = arith.constant dense<0xFF800000> : vector<64xf32>
    %66 = vector.multi_reduction <maximumf>, %65, %cst_23 [1] : vector<64x64xf32> to vector<64xf32>
    %67 = vector.shape_cast %66 : vector<64xf32> to vector<64x1xf32>
    %68 = vector.broadcast %67 : vector<64x1xf32> to vector<64x64xf32>
    %69 = arith.subf %65, %68 : vector<64x64xf32>
    %70 = math.exp %69 : vector<64x64xf32>
    %cst_24 = arith.constant dense<0.000000e+00> : vector<64xf32>
    %71 = vector.multi_reduction <add>, %70, %cst_24 [1] : vector<64x64xf32> to vector<64xf32>
    %72 = vector.shape_cast %71 : vector<64xf32> to vector<64x1xf32>
    %73 = tpu.reciprocal %72 {approx = true} : vector<64x1xf32> -> vector<64x1xf32>
    %74 = vector.broadcast %73 : vector<64x1xf32> to vector<64x64xf32>
    %75 = arith.mulf %70, %74 : vector<64x64xf32>
    %76 = arith.truncf %75 : vector<64x64xf32> to vector<64x64xbf16>
    %cst_25 = arith.constant dense<0.000000e+00> : vector<64x32xf32>
    %77 = tpu.matmul %76, %63, %cst_25 {dimension_numbers = #tpu.dot_dimension_numbers<[1], [0], [0], [1], [0, 0, 1, 1], [], []>} : vector<64x64xbf16>, vector<64x32xbf16>, vector<64x32xf32> -> vector<64x32xf32>
    %78 = vector.extract_strided_slice %37 {offsets = [0, 64], sizes = [64, 32], strides = [1, 1]} : vector<64x384xf32> to vector<64x32xf32>
    %79 = arith.truncf %78 : vector<64x32xf32> to vector<64x32xbf16>
    %80 = vector.extract_strided_slice %37 {offsets = [0, 192], sizes = [64, 32], strides = [1, 1]} : vector<64x384xf32> to vector<64x32xf32>
    %81 = arith.truncf %80 : vector<64x32xf32> to vector<64x32xbf16>
    %82 = vector.extract_strided_slice %37 {offsets = [0, 320], sizes = [64, 32], strides = [1, 1]} : vector<64x384xf32> to vector<64x32xf32>
    %83 = arith.truncf %82 : vector<64x32xf32> to vector<64x32xbf16>
    "tpu.trace_start"() <{level = 10 : i32, message = "td,sd->ts"}> : () -> ()
    %cst_26 = arith.constant dense<0.000000e+00> : vector<64x64xf32>
    %84 = tpu.matmul %79, %81, %cst_26 {dimension_numbers = #tpu.dot_dimension_numbers<[1], [1], [0], [0], [0, 0, 1, 0], [], []>} : vector<64x32xbf16>, vector<64x32xbf16>, vector<64x64xf32> -> vector<64x64xf32>
    "tpu.trace_stop"() : () -> ()
    %85 = arith.addf %84, %7 : vector<64x64xf32>
    %cst_27 = arith.constant dense<0xFF800000> : vector<64xf32>
    %86 = vector.multi_reduction <maximumf>, %85, %cst_27 [1] : vector<64x64xf32> to vector<64xf32>
    %87 = vector.shape_cast %86 : vector<64xf32> to vector<64x1xf32>
    %88 = vector.broadcast %87 : vector<64x1xf32> to vector<64x64xf32>
    %89 = arith.subf %85, %88 : vector<64x64xf32>
    %90 = math.exp %89 : vector<64x64xf32>
    %cst_28 = arith.constant dense<0.000000e+00> : vector<64xf32>
    %91 = vector.multi_reduction <add>, %90, %cst_28 [1] : vector<64x64xf32> to vector<64xf32>
    %92 = vector.shape_cast %91 : vector<64xf32> to vector<64x1xf32>
    %93 = tpu.reciprocal %92 {approx = true} : vector<64x1xf32> -> vector<64x1xf32>
    %94 = vector.broadcast %93 : vector<64x1xf32> to vector<64x64xf32>
    %95 = arith.mulf %90, %94 : vector<64x64xf32>
    %96 = arith.truncf %95 : vector<64x64xf32> to vector<64x64xbf16>
    %cst_29 = arith.constant dense<0.000000e+00> : vector<64x32xf32>
    %97 = tpu.matmul %96, %83, %cst_29 {dimension_numbers = #tpu.dot_dimension_numbers<[1], [0], [0], [1], [0, 0, 1, 1], [], []>} : vector<64x64xbf16>, vector<64x32xbf16>, vector<64x32xf32> -> vector<64x32xf32>
    %98 = vector.extract_strided_slice %37 {offsets = [0, 96], sizes = [64, 32], strides = [1, 1]} : vector<64x384xf32> to vector<64x32xf32>
    %99 = arith.truncf %98 : vector<64x32xf32> to vector<64x32xbf16>
    %100 = vector.extract_strided_slice %37 {offsets = [0, 224], sizes = [64, 32], strides = [1, 1]} : vector<64x384xf32> to vector<64x32xf32>
    %101 = arith.truncf %100 : vector<64x32xf32> to vector<64x32xbf16>
    %102 = vector.extract_strided_slice %37 {offsets = [0, 352], sizes = [64, 32], strides = [1, 1]} : vector<64x384xf32> to vector<64x32xf32>
    %103 = arith.truncf %102 : vector<64x32xf32> to vector<64x32xbf16>
    "tpu.trace_start"() <{level = 10 : i32, message = "td,sd->ts"}> : () -> ()
    %cst_30 = arith.constant dense<0.000000e+00> : vector<64x64xf32>
    %104 = tpu.matmul %99, %101, %cst_30 {dimension_numbers = #tpu.dot_dimension_numbers<[1], [1], [0], [0], [0, 0, 1, 0], [], []>} : vector<64x32xbf16>, vector<64x32xbf16>, vector<64x64xf32> -> vector<64x64xf32>
    "tpu.trace_stop"() : () -> ()
    %105 = arith.addf %104, %7 : vector<64x64xf32>
    %cst_31 = arith.constant dense<0xFF800000> : vector<64xf32>
    %106 = vector.multi_reduction <maximumf>, %105, %cst_31 [1] : vector<64x64xf32> to vector<64xf32>
    %107 = vector.shape_cast %106 : vector<64xf32> to vector<64x1xf32>
    %108 = vector.broadcast %107 : vector<64x1xf32> to vector<64x64xf32>
    %109 = arith.subf %105, %108 : vector<64x64xf32>
    %110 = math.exp %109 : vector<64x64xf32>
    %cst_32 = arith.constant dense<0.000000e+00> : vector<64xf32>
    %111 = vector.multi_reduction <add>, %110, %cst_32 [1] : vector<64x64xf32> to vector<64xf32>
    %112 = vector.shape_cast %111 : vector<64xf32> to vector<64x1xf32>
    %113 = tpu.reciprocal %112 {approx = true} : vector<64x1xf32> -> vector<64x1xf32>
    %114 = vector.broadcast %113 : vector<64x1xf32> to vector<64x64xf32>
    %115 = arith.mulf %110, %114 : vector<64x64xf32>
    %116 = arith.truncf %115 : vector<64x64xf32> to vector<64x64xbf16>
    %cst_33 = arith.constant dense<0.000000e+00> : vector<64x32xf32>
    %117 = tpu.matmul %116, %103, %cst_33 {dimension_numbers = #tpu.dot_dimension_numbers<[1], [0], [0], [1], [0, 0, 1, 1], [], []>} : vector<64x64xbf16>, vector<64x32xbf16>, vector<64x32xf32> -> vector<64x32xf32>
    %118 = tpu.concatenate %57, %77, %97, %117 in 1 : vector<64x32xf32>, vector<64x32xf32>, vector<64x32xf32>, vector<64x32xf32> -> vector<64x128xf32>
    %119 = arith.truncf %118 : vector<64x128xf32> to vector<64x128xbf16>
    %c0_34 = arith.constant 0 : index
    %c0_35 = arith.constant 0 : index
    %c0_36 = arith.constant 0 : index
    %120 = vector.load %arg5[%c0_34, %c0_35, %c0_36] : memref<2x128x128xbf16, #tpu.memory_space<vmem>>, vector<1x128x128xbf16>
    %121 = vector.shape_cast %120 : vector<1x128x128xbf16> to vector<128x128xbf16>
    %cst_37 = arith.constant dense<0.000000e+00> : vector<64x128xf32>
    %122 = tpu.matmul %119, %121, %cst_37 {dimension_numbers = #tpu.dot_dimension_numbers<[1], [0], [0], [1], [0, 0, 1, 1], [], []>} : vector<64x128xbf16>, vector<128x128xbf16>, vector<64x128xf32> -> vector<64x128xf32>
    %c0_38 = arith.constant 0 : index
    %c0_39 = arith.constant 0 : index
    %c0_40 = arith.constant 0 : index
    %123 = vector.load %arg6[%c0_38, %c0_39, %c0_40] : memref<2x1x128xf32, #tpu.memory_space<vmem>>, vector<1x1x128xf32>
    %124 = vector.shape_cast %123 : vector<1x1x128xf32> to vector<1x128xf32>
    %125 = vector.broadcast %124 : vector<1x128xf32> to vector<64x128xf32>
    %126 = arith.addf %122, %125 : vector<64x128xf32>
    %127 = arith.addf %1, %126 : vector<64x128xf32>
    %c0_41 = arith.constant 0 : index
    %c0_42 = arith.constant 0 : index
    %c0_43 = arith.constant 0 : index
    %128 = vector.load %arg7[%c0_41, %c0_42, %c0_43] : memref<2x1x128xf32, #tpu.memory_space<vmem>>, vector<1x1x128xf32>
    %129 = vector.shape_cast %128 : vector<1x1x128xf32> to vector<1x128xf32>
    %c0_44 = arith.constant 0 : index
    %c0_45 = arith.constant 0 : index
    %c0_46 = arith.constant 0 : index
    %130 = vector.load %arg8[%c0_44, %c0_45, %c0_46] : memref<2x1x128xf32, #tpu.memory_space<vmem>>, vector<1x1x128xf32>
    %131 = vector.shape_cast %130 : vector<1x1x128xf32> to vector<1x128xf32>
    %cst_47 = arith.constant dense<0.000000e+00> : vector<64xf32>
    %132 = vector.multi_reduction <add>, %127, %cst_47 [1] : vector<64x128xf32> to vector<64xf32>
    %133 = vector.shape_cast %132 : vector<64xf32> to vector<64x1xf32>
    %cst_48 = arith.constant 1.280000e+02 : f32
    %134 = vector.broadcast %cst_48 : f32 to vector<64x1xf32>
    %135 = arith.divf %133, %134 : vector<64x1xf32>
    %136 = vector.broadcast %135 : vector<64x1xf32> to vector<64x128xf32>
    %137 = arith.subf %127, %136 : vector<64x128xf32>
    %138 = arith.mulf %137, %137 : vector<64x128xf32>
    %cst_49 = arith.constant dense<0.000000e+00> : vector<64xf32>
    %139 = vector.multi_reduction <add>, %138, %cst_49 [1] : vector<64x128xf32> to vector<64xf32>
    %140 = vector.shape_cast %139 : vector<64xf32> to vector<64x1xf32>
    %cst_50 = arith.constant 1.280000e+02 : f32
    %141 = vector.broadcast %cst_50 : f32 to vector<64x1xf32>
    %142 = arith.divf %140, %141 : vector<64x1xf32>
    %143 = vector.broadcast %135 : vector<64x1xf32> to vector<64x128xf32>
    %144 = arith.subf %127, %143 : vector<64x128xf32>
    %cst_51 = arith.constant 9.99999974E-6 : f32
    %145 = vector.broadcast %cst_51 : f32 to vector<64x1xf32>
    %146 = arith.addf %142, %145 : vector<64x1xf32>
    %147 = math.rsqrt %146 : vector<64x1xf32>
    %148 = vector.broadcast %147 : vector<64x1xf32> to vector<64x128xf32>
    %149 = arith.mulf %144, %148 : vector<64x128xf32>
    %150 = vector.broadcast %129 : vector<1x128xf32> to vector<64x128xf32>
    %151 = arith.mulf %149, %150 : vector<64x128xf32>
    %152 = vector.broadcast %131 : vector<1x128xf32> to vector<64x128xf32>
    %153 = arith.addf %151, %152 : vector<64x128xf32>
    %154 = arith.truncf %153 : vector<64x128xf32> to vector<64x128xbf16>
    %c0_52 = arith.constant 0 : index
    %c0_53 = arith.constant 0 : index
    %c0_54 = arith.constant 0 : index
    %155 = vector.load %arg9[%c0_52, %c0_53, %c0_54] : memref<2x128x512xbf16, #tpu.memory_space<vmem>>, vector<1x128x512xbf16>
    %156 = vector.shape_cast %155 : vector<1x128x512xbf16> to vector<128x512xbf16>
    %cst_55 = arith.constant dense<0.000000e+00> : vector<64x512xf32>
    %157 = tpu.matmul %154, %156, %cst_55 {dimension_numbers = #tpu.dot_dimension_numbers<[1], [0], [0], [1], [0, 0, 1, 1], [], []>} : vector<64x128xbf16>, vector<128x512xbf16>, vector<64x512xf32> -> vector<64x512xf32>
    %c0_56 = arith.constant 0 : index
    %c0_57 = arith.constant 0 : index
    %c0_58 = arith.constant 0 : index
    %158 = vector.load %arg10[%c0_56, %c0_57, %c0_58] : memref<2x1x512xf32, #tpu.memory_space<vmem>>, vector<1x1x512xf32>
    %159 = vector.shape_cast %158 : vector<1x1x512xf32> to vector<1x512xf32>
    %160 = vector.broadcast %159 : vector<1x512xf32> to vector<64x512xf32>
    %161 = arith.addf %157, %160 : vector<64x512xf32>
    %cst_59 = arith.constant 0.000000e+00 : f32
    %162 = vector.broadcast %cst_59 : f32 to vector<64x512xf32>
    %163 = arith.maximumf %161, %162 : vector<64x512xf32>
    %164 = arith.truncf %163 : vector<64x512xf32> to vector<64x512xbf16>
    %c0_60 = arith.constant 0 : index
    %c0_61 = arith.constant 0 : index
    %c0_62 = arith.constant 0 : index
    %165 = vector.load %arg11[%c0_60, %c0_61, %c0_62] : memref<2x512x128xbf16, #tpu.memory_space<vmem>>, vector<1x512x128xbf16>
    %166 = vector.shape_cast %165 : vector<1x512x128xbf16> to vector<512x128xbf16>
    %cst_63 = arith.constant dense<0.000000e+00> : vector<64x128xf32>
    %167 = tpu.matmul %164, %166, %cst_63 {dimension_numbers = #tpu.dot_dimension_numbers<[1], [0], [0], [1], [0, 0, 1, 1], [], []>} : vector<64x512xbf16>, vector<512x128xbf16>, vector<64x128xf32> -> vector<64x128xf32>
    %c0_64 = arith.constant 0 : index
    %c0_65 = arith.constant 0 : index
    %c0_66 = arith.constant 0 : index
    %168 = vector.load %arg12[%c0_64, %c0_65, %c0_66] : memref<2x1x128xf32, #tpu.memory_space<vmem>>, vector<1x1x128xf32>
    %169 = vector.shape_cast %168 : vector<1x1x128xf32> to vector<1x128xf32>
    %170 = vector.broadcast %169 : vector<1x128xf32> to vector<64x128xf32>
    %171 = arith.addf %167, %170 : vector<64x128xf32>
    %172 = arith.addf %127, %171 : vector<64x128xf32>
    %c1 = arith.constant 1 : index
    %c0_67 = arith.constant 0 : index
    %c0_68 = arith.constant 0 : index
    %173 = vector.load %arg2[%c1, %c0_67, %c0_68] : memref<2x1x128xf32, #tpu.memory_space<vmem>>, vector<1x1x128xf32>
    %174 = vector.shape_cast %173 : vector<1x1x128xf32> to vector<1x128xf32>
    %c1_69 = arith.constant 1 : index
    %c0_70 = arith.constant 0 : index
    %c0_71 = arith.constant 0 : index
    %175 = vector.load %arg3[%c1_69, %c0_70, %c0_71] : memref<2x1x128xf32, #tpu.memory_space<vmem>>, vector<1x1x128xf32>
    %176 = vector.shape_cast %175 : vector<1x1x128xf32> to vector<1x128xf32>
    %cst_72 = arith.constant dense<0.000000e+00> : vector<64xf32>
    %177 = vector.multi_reduction <add>, %172, %cst_72 [1] : vector<64x128xf32> to vector<64xf32>
    %178 = vector.shape_cast %177 : vector<64xf32> to vector<64x1xf32>
    %cst_73 = arith.constant 1.280000e+02 : f32
    %179 = vector.broadcast %cst_73 : f32 to vector<64x1xf32>
    %180 = arith.divf %178, %179 : vector<64x1xf32>
    %181 = vector.broadcast %180 : vector<64x1xf32> to vector<64x128xf32>
    %182 = arith.subf %172, %181 : vector<64x128xf32>
    %183 = arith.mulf %182, %182 : vector<64x128xf32>
    %cst_74 = arith.constant dense<0.000000e+00> : vector<64xf32>
    %184 = vector.multi_reduction <add>, %183, %cst_74 [1] : vector<64x128xf32> to vector<64xf32>
    %185 = vector.shape_cast %184 : vector<64xf32> to vector<64x1xf32>
    %cst_75 = arith.constant 1.280000e+02 : f32
    %186 = vector.broadcast %cst_75 : f32 to vector<64x1xf32>
    %187 = arith.divf %185, %186 : vector<64x1xf32>
    %188 = vector.broadcast %180 : vector<64x1xf32> to vector<64x128xf32>
    %189 = arith.subf %172, %188 : vector<64x128xf32>
    %cst_76 = arith.constant 9.99999974E-6 : f32
    %190 = vector.broadcast %cst_76 : f32 to vector<64x1xf32>
    %191 = arith.addf %187, %190 : vector<64x1xf32>
    %192 = math.rsqrt %191 : vector<64x1xf32>
    %193 = vector.broadcast %192 : vector<64x1xf32> to vector<64x128xf32>
    %194 = arith.mulf %189, %193 : vector<64x128xf32>
    %195 = vector.broadcast %174 : vector<1x128xf32> to vector<64x128xf32>
    %196 = arith.mulf %194, %195 : vector<64x128xf32>
    %197 = vector.broadcast %176 : vector<1x128xf32> to vector<64x128xf32>
    %198 = arith.addf %196, %197 : vector<64x128xf32>
    %199 = arith.truncf %198 : vector<64x128xf32> to vector<64x128xbf16>
    %c1_77 = arith.constant 1 : index
    %c0_78 = arith.constant 0 : index
    %c0_79 = arith.constant 0 : index
    %200 = vector.load %arg4[%c1_77, %c0_78, %c0_79] : memref<2x128x384xbf16, #tpu.memory_space<vmem>>, vector<1x128x384xbf16>
    %201 = vector.shape_cast %200 : vector<1x128x384xbf16> to vector<128x384xbf16>
    %cst_80 = arith.constant dense<0.000000e+00> : vector<64x384xf32>
    %202 = tpu.matmul %199, %201, %cst_80 {dimension_numbers = #tpu.dot_dimension_numbers<[1], [0], [0], [1], [0, 0, 1, 1], [], []>} : vector<64x128xbf16>, vector<128x384xbf16>, vector<64x384xf32> -> vector<64x384xf32>
    %203 = vector.extract_strided_slice %202 {offsets = [0, 0], sizes = [64, 32], strides = [1, 1]} : vector<64x384xf32> to vector<64x32xf32>
    %204 = arith.truncf %203 : vector<64x32xf32> to vector<64x32xbf16>
    %205 = vector.extract_strided_slice %202 {offsets = [0, 128], sizes = [64, 32], strides = [1, 1]} : vector<64x384xf32> to vector<64x32xf32>
    %206 = arith.truncf %205 : vector<64x32xf32> to vector<64x32xbf16>
    %207 = vector.extract_strided_slice %202 {offsets = [0, 256], sizes = [64, 32], strides = [1, 1]} : vector<64x384xf32> to vector<64x32xf32>
    %208 = arith.truncf %207 : vector<64x32xf32> to vector<64x32xbf16>
    "tpu.trace_start"() <{level = 10 : i32, message = "td,sd->ts"}> : () -> ()
    %cst_81 = arith.constant dense<0.000000e+00> : vector<64x64xf32>
    %209 = tpu.matmul %204, %206, %cst_81 {dimension_numbers = #tpu.dot_dimension_numbers<[1], [1], [0], [0], [0, 0, 1, 0], [], []>} : vector<64x32xbf16>, vector<64x32xbf16>, vector<64x64xf32> -> vector<64x64xf32>
    "tpu.trace_stop"() : () -> ()
    %210 = arith.addf %209, %7 : vector<64x64xf32>
    %cst_82 = arith.constant dense<0xFF800000> : vector<64xf32>
    %211 = vector.multi_reduction <maximumf>, %210, %cst_82 [1] : vector<64x64xf32> to vector<64xf32>
    %212 = vector.shape_cast %211 : vector<64xf32> to vector<64x1xf32>
    %213 = vector.broadcast %212 : vector<64x1xf32> to vector<64x64xf32>
    %214 = arith.subf %210, %213 : vector<64x64xf32>
    %215 = math.exp %214 : vector<64x64xf32>
    %cst_83 = arith.constant dense<0.000000e+00> : vector<64xf32>
    %216 = vector.multi_reduction <add>, %215, %cst_83 [1] : vector<64x64xf32> to vector<64xf32>
    %217 = vector.shape_cast %216 : vector<64xf32> to vector<64x1xf32>
    %218 = tpu.reciprocal %217 {approx = true} : vector<64x1xf32> -> vector<64x1xf32>
    %219 = vector.broadcast %218 : vector<64x1xf32> to vector<64x64xf32>
    %220 = arith.mulf %215, %219 : vector<64x64xf32>
    %221 = arith.truncf %220 : vector<64x64xf32> to vector<64x64xbf16>
    %cst_84 = arith.constant dense<0.000000e+00> : vector<64x32xf32>
    %222 = tpu.matmul %221, %208, %cst_84 {dimension_numbers = #tpu.dot_dimension_numbers<[1], [0], [0], [1], [0, 0, 1, 1], [], []>} : vector<64x64xbf16>, vector<64x32xbf16>, vector<64x32xf32> -> vector<64x32xf32>
    %223 = vector.extract_strided_slice %202 {offsets = [0, 32], sizes = [64, 32], strides = [1, 1]} : vector<64x384xf32> to vector<64x32xf32>
    %224 = arith.truncf %223 : vector<64x32xf32> to vector<64x32xbf16>
    %225 = vector.extract_strided_slice %202 {offsets = [0, 160], sizes = [64, 32], strides = [1, 1]} : vector<64x384xf32> to vector<64x32xf32>
    %226 = arith.truncf %225 : vector<64x32xf32> to vector<64x32xbf16>
    %227 = vector.extract_strided_slice %202 {offsets = [0, 288], sizes = [64, 32], strides = [1, 1]} : vector<64x384xf32> to vector<64x32xf32>
    %228 = arith.truncf %227 : vector<64x32xf32> to vector<64x32xbf16>
    "tpu.trace_start"() <{level = 10 : i32, message = "td,sd->ts"}> : () -> ()
    %cst_85 = arith.constant dense<0.000000e+00> : vector<64x64xf32>
    %229 = tpu.matmul %224, %226, %cst_85 {dimension_numbers = #tpu.dot_dimension_numbers<[1], [1], [0], [0], [0, 0, 1, 0], [], []>} : vector<64x32xbf16>, vector<64x32xbf16>, vector<64x64xf32> -> vector<64x64xf32>
    "tpu.trace_stop"() : () -> ()
    %230 = arith.addf %229, %7 : vector<64x64xf32>
    %cst_86 = arith.constant dense<0xFF800000> : vector<64xf32>
    %231 = vector.multi_reduction <maximumf>, %230, %cst_86 [1] : vector<64x64xf32> to vector<64xf32>
    %232 = vector.shape_cast %231 : vector<64xf32> to vector<64x1xf32>
    %233 = vector.broadcast %232 : vector<64x1xf32> to vector<64x64xf32>
    %234 = arith.subf %230, %233 : vector<64x64xf32>
    %235 = math.exp %234 : vector<64x64xf32>
    %cst_87 = arith.constant dense<0.000000e+00> : vector<64xf32>
    %236 = vector.multi_reduction <add>, %235, %cst_87 [1] : vector<64x64xf32> to vector<64xf32>
    %237 = vector.shape_cast %236 : vector<64xf32> to vector<64x1xf32>
    %238 = tpu.reciprocal %237 {approx = true} : vector<64x1xf32> -> vector<64x1xf32>
    %239 = vector.broadcast %238 : vector<64x1xf32> to vector<64x64xf32>
    %240 = arith.mulf %235, %239 : vector<64x64xf32>
    %241 = arith.truncf %240 : vector<64x64xf32> to vector<64x64xbf16>
    %cst_88 = arith.constant dense<0.000000e+00> : vector<64x32xf32>
    %242 = tpu.matmul %241, %228, %cst_88 {dimension_numbers = #tpu.dot_dimension_numbers<[1], [0], [0], [1], [0, 0, 1, 1], [], []>} : vector<64x64xbf16>, vector<64x32xbf16>, vector<64x32xf32> -> vector<64x32xf32>
    %243 = vector.extract_strided_slice %202 {offsets = [0, 64], sizes = [64, 32], strides = [1, 1]} : vector<64x384xf32> to vector<64x32xf32>
    %244 = arith.truncf %243 : vector<64x32xf32> to vector<64x32xbf16>
    %245 = vector.extract_strided_slice %202 {offsets = [0, 192], sizes = [64, 32], strides = [1, 1]} : vector<64x384xf32> to vector<64x32xf32>
    %246 = arith.truncf %245 : vector<64x32xf32> to vector<64x32xbf16>
    %247 = vector.extract_strided_slice %202 {offsets = [0, 320], sizes = [64, 32], strides = [1, 1]} : vector<64x384xf32> to vector<64x32xf32>
    %248 = arith.truncf %247 : vector<64x32xf32> to vector<64x32xbf16>
    "tpu.trace_start"() <{level = 10 : i32, message = "td,sd->ts"}> : () -> ()
    %cst_89 = arith.constant dense<0.000000e+00> : vector<64x64xf32>
    %249 = tpu.matmul %244, %246, %cst_89 {dimension_numbers = #tpu.dot_dimension_numbers<[1], [1], [0], [0], [0, 0, 1, 0], [], []>} : vector<64x32xbf16>, vector<64x32xbf16>, vector<64x64xf32> -> vector<64x64xf32>
    "tpu.trace_stop"() : () -> ()
    %250 = arith.addf %249, %7 : vector<64x64xf32>
    %cst_90 = arith.constant dense<0xFF800000> : vector<64xf32>
    %251 = vector.multi_reduction <maximumf>, %250, %cst_90 [1] : vector<64x64xf32> to vector<64xf32>
    %252 = vector.shape_cast %251 : vector<64xf32> to vector<64x1xf32>
    %253 = vector.broadcast %252 : vector<64x1xf32> to vector<64x64xf32>
    %254 = arith.subf %250, %253 : vector<64x64xf32>
    %255 = math.exp %254 : vector<64x64xf32>
    %cst_91 = arith.constant dense<0.000000e+00> : vector<64xf32>
    %256 = vector.multi_reduction <add>, %255, %cst_91 [1] : vector<64x64xf32> to vector<64xf32>
    %257 = vector.shape_cast %256 : vector<64xf32> to vector<64x1xf32>
    %258 = tpu.reciprocal %257 {approx = true} : vector<64x1xf32> -> vector<64x1xf32>
    %259 = vector.broadcast %258 : vector<64x1xf32> to vector<64x64xf32>
    %260 = arith.mulf %255, %259 : vector<64x64xf32>
    %261 = arith.truncf %260 : vector<64x64xf32> to vector<64x64xbf16>
    %cst_92 = arith.constant dense<0.000000e+00> : vector<64x32xf32>
    %262 = tpu.matmul %261, %248, %cst_92 {dimension_numbers = #tpu.dot_dimension_numbers<[1], [0], [0], [1], [0, 0, 1, 1], [], []>} : vector<64x64xbf16>, vector<64x32xbf16>, vector<64x32xf32> -> vector<64x32xf32>
    %263 = vector.extract_strided_slice %202 {offsets = [0, 96], sizes = [64, 32], strides = [1, 1]} : vector<64x384xf32> to vector<64x32xf32>
    %264 = arith.truncf %263 : vector<64x32xf32> to vector<64x32xbf16>
    %265 = vector.extract_strided_slice %202 {offsets = [0, 224], sizes = [64, 32], strides = [1, 1]} : vector<64x384xf32> to vector<64x32xf32>
    %266 = arith.truncf %265 : vector<64x32xf32> to vector<64x32xbf16>
    %267 = vector.extract_strided_slice %202 {offsets = [0, 352], sizes = [64, 32], strides = [1, 1]} : vector<64x384xf32> to vector<64x32xf32>
    %268 = arith.truncf %267 : vector<64x32xf32> to vector<64x32xbf16>
    "tpu.trace_start"() <{level = 10 : i32, message = "td,sd->ts"}> : () -> ()
    %cst_93 = arith.constant dense<0.000000e+00> : vector<64x64xf32>
    %269 = tpu.matmul %264, %266, %cst_93 {dimension_numbers = #tpu.dot_dimension_numbers<[1], [1], [0], [0], [0, 0, 1, 0], [], []>} : vector<64x32xbf16>, vector<64x32xbf16>, vector<64x64xf32> -> vector<64x64xf32>
    "tpu.trace_stop"() : () -> ()
    %270 = arith.addf %269, %7 : vector<64x64xf32>
    %cst_94 = arith.constant dense<0xFF800000> : vector<64xf32>
    %271 = vector.multi_reduction <maximumf>, %270, %cst_94 [1] : vector<64x64xf32> to vector<64xf32>
    %272 = vector.shape_cast %271 : vector<64xf32> to vector<64x1xf32>
    %273 = vector.broadcast %272 : vector<64x1xf32> to vector<64x64xf32>
    %274 = arith.subf %270, %273 : vector<64x64xf32>
    %275 = math.exp %274 : vector<64x64xf32>
    %cst_95 = arith.constant dense<0.000000e+00> : vector<64xf32>
    %276 = vector.multi_reduction <add>, %275, %cst_95 [1] : vector<64x64xf32> to vector<64xf32>
    %277 = vector.shape_cast %276 : vector<64xf32> to vector<64x1xf32>
    %278 = tpu.reciprocal %277 {approx = true} : vector<64x1xf32> -> vector<64x1xf32>
    %279 = vector.broadcast %278 : vector<64x1xf32> to vector<64x64xf32>
    %280 = arith.mulf %275, %279 : vector<64x64xf32>
    %281 = arith.truncf %280 : vector<64x64xf32> to vector<64x64xbf16>
    %cst_96 = arith.constant dense<0.000000e+00> : vector<64x32xf32>
    %282 = tpu.matmul %281, %268, %cst_96 {dimension_numbers = #tpu.dot_dimension_numbers<[1], [0], [0], [1], [0, 0, 1, 1], [], []>} : vector<64x64xbf16>, vector<64x32xbf16>, vector<64x32xf32> -> vector<64x32xf32>
    %283 = tpu.concatenate %222, %242, %262, %282 in 1 : vector<64x32xf32>, vector<64x32xf32>, vector<64x32xf32>, vector<64x32xf32> -> vector<64x128xf32>
    %284 = arith.truncf %283 : vector<64x128xf32> to vector<64x128xbf16>
    %c1_97 = arith.constant 1 : index
    %c0_98 = arith.constant 0 : index
    %c0_99 = arith.constant 0 : index
    %285 = vector.load %arg5[%c1_97, %c0_98, %c0_99] : memref<2x128x128xbf16, #tpu.memory_space<vmem>>, vector<1x128x128xbf16>
    %286 = vector.shape_cast %285 : vector<1x128x128xbf16> to vector<128x128xbf16>
    %cst_100 = arith.constant dense<0.000000e+00> : vector<64x128xf32>
    %287 = tpu.matmul %284, %286, %cst_100 {dimension_numbers = #tpu.dot_dimension_numbers<[1], [0], [0], [1], [0, 0, 1, 1], [], []>} : vector<64x128xbf16>, vector<128x128xbf16>, vector<64x128xf32> -> vector<64x128xf32>
    %c1_101 = arith.constant 1 : index
    %c0_102 = arith.constant 0 : index
    %c0_103 = arith.constant 0 : index
    %288 = vector.load %arg6[%c1_101, %c0_102, %c0_103] : memref<2x1x128xf32, #tpu.memory_space<vmem>>, vector<1x1x128xf32>
    %289 = vector.shape_cast %288 : vector<1x1x128xf32> to vector<1x128xf32>
    %290 = vector.broadcast %289 : vector<1x128xf32> to vector<64x128xf32>
    %291 = arith.addf %287, %290 : vector<64x128xf32>
    %292 = arith.addf %172, %291 : vector<64x128xf32>
    %c1_104 = arith.constant 1 : index
    %c0_105 = arith.constant 0 : index
    %c0_106 = arith.constant 0 : index
    %293 = vector.load %arg7[%c1_104, %c0_105, %c0_106] : memref<2x1x128xf32, #tpu.memory_space<vmem>>, vector<1x1x128xf32>
    %294 = vector.shape_cast %293 : vector<1x1x128xf32> to vector<1x128xf32>
    %c1_107 = arith.constant 1 : index
    %c0_108 = arith.constant 0 : index
    %c0_109 = arith.constant 0 : index
    %295 = vector.load %arg8[%c1_107, %c0_108, %c0_109] : memref<2x1x128xf32, #tpu.memory_space<vmem>>, vector<1x1x128xf32>
    %296 = vector.shape_cast %295 : vector<1x1x128xf32> to vector<1x128xf32>
    %cst_110 = arith.constant dense<0.000000e+00> : vector<64xf32>
    %297 = vector.multi_reduction <add>, %292, %cst_110 [1] : vector<64x128xf32> to vector<64xf32>
    %298 = vector.shape_cast %297 : vector<64xf32> to vector<64x1xf32>
    %cst_111 = arith.constant 1.280000e+02 : f32
    %299 = vector.broadcast %cst_111 : f32 to vector<64x1xf32>
    %300 = arith.divf %298, %299 : vector<64x1xf32>
    %301 = vector.broadcast %300 : vector<64x1xf32> to vector<64x128xf32>
    %302 = arith.subf %292, %301 : vector<64x128xf32>
    %303 = arith.mulf %302, %302 : vector<64x128xf32>
    %cst_112 = arith.constant dense<0.000000e+00> : vector<64xf32>
    %304 = vector.multi_reduction <add>, %303, %cst_112 [1] : vector<64x128xf32> to vector<64xf32>
    %305 = vector.shape_cast %304 : vector<64xf32> to vector<64x1xf32>
    %cst_113 = arith.constant 1.280000e+02 : f32
    %306 = vector.broadcast %cst_113 : f32 to vector<64x1xf32>
    %307 = arith.divf %305, %306 : vector<64x1xf32>
    %308 = vector.broadcast %300 : vector<64x1xf32> to vector<64x128xf32>
    %309 = arith.subf %292, %308 : vector<64x128xf32>
    %cst_114 = arith.constant 9.99999974E-6 : f32
    %310 = vector.broadcast %cst_114 : f32 to vector<64x1xf32>
    %311 = arith.addf %307, %310 : vector<64x1xf32>
    %312 = math.rsqrt %311 : vector<64x1xf32>
    %313 = vector.broadcast %312 : vector<64x1xf32> to vector<64x128xf32>
    %314 = arith.mulf %309, %313 : vector<64x128xf32>
    %315 = vector.broadcast %294 : vector<1x128xf32> to vector<64x128xf32>
    %316 = arith.mulf %314, %315 : vector<64x128xf32>
    %317 = vector.broadcast %296 : vector<1x128xf32> to vector<64x128xf32>
    %318 = arith.addf %316, %317 : vector<64x128xf32>
    %319 = arith.truncf %318 : vector<64x128xf32> to vector<64x128xbf16>
    %c1_115 = arith.constant 1 : index
    %c0_116 = arith.constant 0 : index
    %c0_117 = arith.constant 0 : index
    %320 = vector.load %arg9[%c1_115, %c0_116, %c0_117] : memref<2x128x512xbf16, #tpu.memory_space<vmem>>, vector<1x128x512xbf16>
    %321 = vector.shape_cast %320 : vector<1x128x512xbf16> to vector<128x512xbf16>
    %cst_118 = arith.constant dense<0.000000e+00> : vector<64x512xf32>
    %322 = tpu.matmul %319, %321, %cst_118 {dimension_numbers = #tpu.dot_dimension_numbers<[1], [0], [0], [1], [0, 0, 1, 1], [], []>} : vector<64x128xbf16>, vector<128x512xbf16>, vector<64x512xf32> -> vector<64x512xf32>
    %c1_119 = arith.constant 1 : index
    %c0_120 = arith.constant 0 : index
    %c0_121 = arith.constant 0 : index
    %323 = vector.load %arg10[%c1_119, %c0_120, %c0_121] : memref<2x1x512xf32, #tpu.memory_space<vmem>>, vector<1x1x512xf32>
    %324 = vector.shape_cast %323 : vector<1x1x512xf32> to vector<1x512xf32>
    %325 = vector.broadcast %324 : vector<1x512xf32> to vector<64x512xf32>
    %326 = arith.addf %322, %325 : vector<64x512xf32>
    %cst_122 = arith.constant 0.000000e+00 : f32
    %327 = vector.broadcast %cst_122 : f32 to vector<64x512xf32>
    %328 = arith.maximumf %326, %327 : vector<64x512xf32>
    %329 = arith.truncf %328 : vector<64x512xf32> to vector<64x512xbf16>
    %c1_123 = arith.constant 1 : index
    %c0_124 = arith.constant 0 : index
    %c0_125 = arith.constant 0 : index
    %330 = vector.load %arg11[%c1_123, %c0_124, %c0_125] : memref<2x512x128xbf16, #tpu.memory_space<vmem>>, vector<1x512x128xbf16>
    %331 = vector.shape_cast %330 : vector<1x512x128xbf16> to vector<512x128xbf16>
    %cst_126 = arith.constant dense<0.000000e+00> : vector<64x128xf32>
    %332 = tpu.matmul %329, %331, %cst_126 {dimension_numbers = #tpu.dot_dimension_numbers<[1], [0], [0], [1], [0, 0, 1, 1], [], []>} : vector<64x512xbf16>, vector<512x128xbf16>, vector<64x128xf32> -> vector<64x128xf32>
    %c1_127 = arith.constant 1 : index
    %c0_128 = arith.constant 0 : index
    %c0_129 = arith.constant 0 : index
    %333 = vector.load %arg12[%c1_127, %c0_128, %c0_129] : memref<2x1x128xf32, #tpu.memory_space<vmem>>, vector<1x1x128xf32>
    %334 = vector.shape_cast %333 : vector<1x1x128xf32> to vector<1x128xf32>
    %335 = vector.broadcast %334 : vector<1x128xf32> to vector<64x128xf32>
    %336 = arith.addf %332, %335 : vector<64x128xf32>
    %337 = arith.addf %292, %336 : vector<64x128xf32>
    %c0_130 = arith.constant 0 : index
    %c0_131 = arith.constant 0 : index
    %338 = vector.load %arg13[%c0_130, %c0_131] : memref<1x128xf32, #tpu.memory_space<vmem>>, vector<1x128xf32>
    %c0_132 = arith.constant 0 : index
    %c0_133 = arith.constant 0 : index
    %339 = vector.load %arg14[%c0_132, %c0_133] : memref<1x128xf32, #tpu.memory_space<vmem>>, vector<1x128xf32>
    %cst_134 = arith.constant dense<0.000000e+00> : vector<64xf32>
    %340 = vector.multi_reduction <add>, %337, %cst_134 [1] : vector<64x128xf32> to vector<64xf32>
    %341 = vector.shape_cast %340 : vector<64xf32> to vector<64x1xf32>
    %cst_135 = arith.constant 1.280000e+02 : f32
    %342 = vector.broadcast %cst_135 : f32 to vector<64x1xf32>
    %343 = arith.divf %341, %342 : vector<64x1xf32>
    %344 = vector.broadcast %343 : vector<64x1xf32> to vector<64x128xf32>
    %345 = arith.subf %337, %344 : vector<64x128xf32>
    %346 = arith.mulf %345, %345 : vector<64x128xf32>
    %cst_136 = arith.constant dense<0.000000e+00> : vector<64xf32>
    %347 = vector.multi_reduction <add>, %346, %cst_136 [1] : vector<64x128xf32> to vector<64xf32>
    %348 = vector.shape_cast %347 : vector<64xf32> to vector<64x1xf32>
    %cst_137 = arith.constant 1.280000e+02 : f32
    %349 = vector.broadcast %cst_137 : f32 to vector<64x1xf32>
    %350 = arith.divf %348, %349 : vector<64x1xf32>
    %351 = vector.broadcast %343 : vector<64x1xf32> to vector<64x128xf32>
    %352 = arith.subf %337, %351 : vector<64x128xf32>
    %cst_138 = arith.constant 9.99999974E-6 : f32
    %353 = vector.broadcast %cst_138 : f32 to vector<64x1xf32>
    %354 = arith.addf %350, %353 : vector<64x1xf32>
    %355 = math.rsqrt %354 : vector<64x1xf32>
    %356 = vector.broadcast %355 : vector<64x1xf32> to vector<64x128xf32>
    %357 = arith.mulf %352, %356 : vector<64x128xf32>
    %358 = vector.broadcast %338 : vector<1x128xf32> to vector<64x128xf32>
    %359 = arith.mulf %357, %358 : vector<64x128xf32>
    %360 = vector.broadcast %339 : vector<1x128xf32> to vector<64x128xf32>
    %361 = arith.addf %359, %360 : vector<64x128xf32>
    %362 = arith.truncf %361 : vector<64x128xf32> to vector<64x128xbf16>
    %c0_139 = arith.constant 0 : index
    %c0_140 = arith.constant 0 : index
    %363 = vector.load %arg15[%c0_139, %c0_140] : memref<128x128xbf16, #tpu.memory_space<vmem>>, vector<128x128xbf16>
    %cst_141 = arith.constant dense<0.000000e+00> : vector<64x128xf32>
    %364 = tpu.matmul %362, %363, %cst_141 {dimension_numbers = #tpu.dot_dimension_numbers<[1], [0], [0], [1], [0, 0, 1, 1], [], []>} : vector<64x128xbf16>, vector<128x128xbf16>, vector<64x128xf32> -> vector<64x128xf32>
    %c0_142 = arith.constant 0 : index
    %c0_143 = arith.constant 0 : index
    %365 = vector.load %arg16[%c0_142, %c0_143] : memref<1x128xf32, #tpu.memory_space<vmem>>, vector<1x128xf32>
    %366 = vector.broadcast %365 : vector<1x128xf32> to vector<64x128xf32>
    %367 = arith.addf %364, %366 : vector<64x128xf32>
    %c0_144 = arith.constant 0 : index
    %c0_145 = arith.constant 0 : index
    %c0_146 = arith.constant 0 : index
    %368 = vector.load %arg17[%c0_144, %c0_145, %c0_146] : memref<1x64x128xf32, #tpu.memory_space<vmem>>, vector<1x64x128xf32>
    %369 = vector.shape_cast %368 : vector<1x64x128xf32> to vector<64x128xf32>
    %370 = vector.shape_cast %367 : vector<64x128xf32> to vector<1x64x128xf32>
    tpu.vector_store %arg17[%c0_144, %c0_145, %c0_146], %370 {strides = array<i32>} : memref<1x64x128xf32, #tpu.memory_space<vmem>>, vector<1x64x128xf32>,
    return
  }
  func.func @transform_0(%arg0: i32) -> (i32, i32, i32) {
    %c0_i32 = arith.constant 0 : i32
    %c0_i32_0 = arith.constant 0 : i32
    %c0_i32_1 = arith.constant 0 : i32
    return %arg0, %c0_i32, %c0_i32_0 : i32, i32, i32
  }
  func.func @transform_1(%arg0: i32) -> (i32, i32, i32) {
    %c0_i32 = arith.constant 0 : i32
    %c0_i32_0 = arith.constant 0 : i32
    %c0_i32_1 = arith.constant 0 : i32
    %c0_i32_2 = arith.constant 0 : i32
    return %c0_i32, %c0_i32_0, %c0_i32_1 : i32, i32, i32
  }
  func.func @transform_2(%arg0: i32) -> (i32, i32, i32) {
    %c0_i32 = arith.constant 0 : i32
    %c0_i32_0 = arith.constant 0 : i32
    %c0_i32_1 = arith.constant 0 : i32
    %c0_i32_2 = arith.constant 0 : i32
    return %c0_i32, %c0_i32_0, %c0_i32_1 : i32, i32, i32
  }
  func.func @transform_3(%arg0: i32) -> (i32, i32, i32) {
    %c0_i32 = arith.constant 0 : i32
    %c0_i32_0 = arith.constant 0 : i32
    %c0_i32_1 = arith.constant 0 : i32
    %c0_i32_2 = arith.constant 0 : i32
    return %c0_i32, %c0_i32_0, %c0_i32_1 : i32, i32, i32
  }
  func.func @transform_4(%arg0: i32) -> (i32, i32, i32) {
    %c0_i32 = arith.constant 0 : i32
    %c0_i32_0 = arith.constant 0 : i32
    %c0_i32_1 = arith.constant 0 : i32
    %c0_i32_2 = arith.constant 0 : i32
    return %c0_i32, %c0_i32_0, %c0_i32_1 : i32, i32, i32
  }
  func.func @transform_5(%arg0: i32) -> (i32, i32, i32) {
    %c0_i32 = arith.constant 0 : i32
    %c0_i32_0 = arith.constant 0 : i32
    %c0_i32_1 = arith.constant 0 : i32
    %c0_i32_2 = arith.constant 0 : i32
    return %c0_i32, %c0_i32_0, %c0_i32_1 : i32, i32, i32
  }
  func.func @transform_6(%arg0: i32) -> (i32, i32, i32) {
    %c0_i32 = arith.constant 0 : i32
    %c0_i32_0 = arith.constant 0 : i32
    %c0_i32_1 = arith.constant 0 : i32
    %c0_i32_2 = arith.constant 0 : i32
    return %c0_i32, %c0_i32_0, %c0_i32_1 : i32, i32, i32
  }
  func.func @transform_7(%arg0: i32) -> (i32, i32, i32) {
    %c0_i32 = arith.constant 0 : i32
    %c0_i32_0 = arith.constant 0 : i32
    %c0_i32_1 = arith.constant 0 : i32
    %c0_i32_2 = arith.constant 0 : i32
    return %c0_i32, %c0_i32_0, %c0_i32_1 : i32, i32, i32
  }
  func.func @transform_8(%arg0: i32) -> (i32, i32, i32) {
    %c0_i32 = arith.constant 0 : i32
    %c0_i32_0 = arith.constant 0 : i32
    %c0_i32_1 = arith.constant 0 : i32
    %c0_i32_2 = arith.constant 0 : i32
    return %c0_i32, %c0_i32_0, %c0_i32_1 : i32, i32, i32
  }
  func.func @transform_9(%arg0: i32) -> (i32, i32, i32) {
    %c0_i32 = arith.constant 0 : i32
    %c0_i32_0 = arith.constant 0 : i32
    %c0_i32_1 = arith.constant 0 : i32
    %c0_i32_2 = arith.constant 0 : i32
    return %c0_i32, %c0_i32_0, %c0_i32_1 : i32, i32, i32
  }
  func.func @transform_10(%arg0: i32) -> (i32, i32, i32) {
    %c0_i32 = arith.constant 0 : i32
    %c0_i32_0 = arith.constant 0 : i32
    %c0_i32_1 = arith.constant 0 : i32
    %c0_i32_2 = arith.constant 0 : i32
    return %c0_i32, %c0_i32_0, %c0_i32_1 : i32, i32, i32
  }
  func.func @transform_11(%arg0: i32) -> (i32, i32, i32) {
    %c0_i32 = arith.constant 0 : i32
    %c0_i32_0 = arith.constant 0 : i32
    %c0_i32_1 = arith.constant 0 : i32
    %c0_i32_2 = arith.constant 0 : i32
    return %c0_i32, %c0_i32_0, %c0_i32_1 : i32, i32, i32
  }
  func.func @transform_12(%arg0: i32) -> (i32, i32) {
    %c0_i32 = arith.constant 0 : i32
    %c0_i32_0 = arith.constant 0 : i32
    %c0_i32_1 = arith.constant 0 : i32
    return %c0_i32, %c0_i32_0 : i32, i32
  }
  func.func @transform_13(%arg0: i32) -> (i32, i32) {
    %c0_i32 = arith.constant 0 : i32
    %c0_i32_0 = arith.constant 0 : i32
    %c0_i32_1 = arith.constant 0 : i32
    return %c0_i32, %c0_i32_0 : i32, i32
  }
  func.func @transform_14(%arg0: i32) -> (i32, i32) {
    %c0_i32 = arith.constant 0 : i32
    %c0_i32_0 = arith.constant 0 : i32
    %c0_i32_1 = arith.constant 0 : i32
    return %c0_i32, %c0_i32_0 : i32, i32
  }
  func.func @transform_15(%arg0: i32) -> (i32, i32) {
    %c0_i32 = arith.constant 0 : i32
    %c0_i32_0 = arith.constant 0 : i32
    %c0_i32_1 = arith.constant 0 : i32
    return %c0_i32, %c0_i32_0 : i32, i32
  }
  func.func @transform_16(%arg0: i32) -> (i32, i32, i32) {
    %c0_i32 = arith.constant 0 : i32
    %c0_i32_0 = arith.constant 0 : i32
    %c0_i32_1 = arith.constant 0 : i32
    return %arg0, %c0_i32, %c0_i32_0 : i32, i32, i32
  }
}

</mosaic_0001>

<llo_original>
// kernel: bigram_lm_forward.1
$region0: #{bigram_lm_forward.1}
  #allocation0 [shape = 'u32[]', space=smem, size = 0x4, offset = 0x4, fixed_abs, tag = 'smem constant byte address 0x4 - core index']
  #allocation1 [shape = 'u32[72,128]{1,0:T(1,128)}', space=vmem, size = 0x9000, scoped, tag = 'internal scratch']
  %s0 = inlined_call_operand.vmem [shape: f32[2,64,128], index: 0, kind: input, shape index: {}]
  %s1 = inlined_call_operand.vmem [shape: f32[2,1,128], index: 1, kind: input, shape index: {}]
  %s2 = inlined_call_operand.vmem [shape: f32[2,1,128], index: 2, kind: input, shape index: {}]
  %s3 = inlined_call_operand.vmem [shape: bf16[2,128,384], index: 3, kind: input, shape index: {}]
  %s4 = inlined_call_operand.hbm [shape: bf16[2,128,128], index: 4, kind: input, shape index: {}]
  %s5 = inlined_call_operand.vmem [shape: f32[2,1,128], index: 5, kind: input, shape index: {}]
  %s6 = inlined_call_operand.vmem [shape: f32[2,1,128], index: 6, kind: input, shape index: {}]
  %s7 = inlined_call_operand.vmem [shape: f32[2,1,128], index: 7, kind: input, shape index: {}]
  %s8 = inlined_call_operand.vmem [shape: bf16[2,128,512], index: 8, kind: input, shape index: {}]
  %s9 = inlined_call_operand.vmem [shape: f32[2,1,512], index: 9, kind: input, shape index: {}]
  %s10 = inlined_call_operand.vmem [shape: bf16[2,512,128], index: 10, kind: input, shape index: {}]
  %s11 = inlined_call_operand.hbm [shape: f32[2,1,128], index: 11, kind: input, shape index: {}]
  %s12 = inlined_call_operand.vmem [shape: f32[1,128], index: 12, kind: input, shape index: {}]
  %s13 = inlined_call_operand.hbm [shape: f32[1,128], index: 13, kind: input, shape index: {}]
  %s14 = inlined_call_operand.hbm [shape: bf16[128,128], index: 14, kind: input, shape index: {}]
  %s15 = inlined_call_operand.hbm [shape: f32[1,128], index: 15, kind: input, shape index: {}]
  %s16 = inlined_call_operand.hbm [shape: f32[2,64,128], index: 16, kind: output, shape index: {}]
  %s17 = sld [smem:[#allocation0]]
  $region117: #{bigram_lm_forward.1} parent=0
    _
  %s19 = ssub.s32 1, %s17
  %s20 = scalar_select 0, %s19, %s17
  $region1: #{bigram_lm_forward.1} parent=0
    #allocation2 [shape = 'u8[65536]{0}', space=vmem, size = 0x10000, scoped, tag = 'input window, operand 4, single buffered']
    #allocation3 [shape = 's32[2]{0}', space=sflag, size = 0x8, scoped, tag = 'scoped memory for bigram_lm_forward.1']
    #allocation4 [shape = 's32[2]{0}', space=sflag, size = 0x8, scoped, tag = 'scoped memory for bigram_lm_forward.1']
    #allocation5 [shape = 'u8[1024]{0}', space=vmem, size = 0x400, scoped, tag = 'input window, operand 11, single buffered']
    #allocation6 [shape = 's32[1]{0}', space=sflag, size = 0x4, scoped, tag = 'scoped memory for bigram_lm_forward.1']
    #allocation7 [shape = 'u8[512]{0}', space=vmem, size = 0x400, scoped, tag = 'input window, operand 13, single buffered']
    #allocation8 [shape = 'u8[32768]{0}', space=vmem, size = 0x8000, scoped, tag = 'input window, operand 14, single buffered']
    #allocation9 [shape = 's32[1]{0}', space=sflag, size = 0x4, scoped, tag = 'scoped memory for bigram_lm_forward.1']
    #allocation10 [shape = 'u8[512]{0}', space=vmem, size = 0x400, scoped, tag = 'input window, operand 15, single buffered']
    #allocation11 [shape = 'u8[65536]{0}', space=vmem, size = 0x10000, scoped, tag = 'output window, operand 0']
    %21 = vsyncpa [#allocation3], 0
    %22 = vsyncpa [#allocation6], 0
    %23 = vsyncpa [#allocation9], 0
    %24 = vsyncpa [#allocation4], 0
    %s25 = scalar_lea.sflag [#allocation4], 1
    %26 = vsyncpa %s25, 0
    loop: start=0, step=1, limit=4
    $region2: #{bigram_lm_forward.1} parent=1 // loop_pre_header
      _
    $region3: #{bigram_lm_forward.1} parent=1 // loop_header
      %s28 = sphi 0, %s32
      %p29 = scmp.ge.s32.totalorder %s28, 4
      %s38 = sphi 0, %s40
      %s41 = sphi 0, %s38
      %s42 = sphi 0, %s41
      %s58 = sphi 0, %s42
      %s62 = sphi 0, %s62
      %s64 = sphi 0, %s62
      %s65 = sphi 0, %s64
      %s79 = sphi 0, %s65
      %s83 = sphi 0, %s83
      %s85 = sphi 0, %s83
      %s86 = sphi 0, %s85
      %s100 = sphi 0, %s86
      %s104 = sphi 0, %s104
      %s106 = sphi 0, %s104
      %s107 = sphi 0, %s106
      %s121 = sphi 0, %s107
      %s125 = sphi 0, %s125
      %s127 = sphi 0, %s125
      %s128 = sphi 0, %s127
      %s142 = sphi 0, %s128
      %s146 = sphi 0, %s146
      %s148 = sphi 0, %s146
      %s149 = sphi 0, %s148
      %s163 = sphi 0, %s149
      %s167 = sphi 0, %s167
      %s169 = sphi 0, %s167
      %s170 = sphi 0, %s169
      %s184 = sphi 0, %s170
      %s188 = sphi 0, %s188
      %s190 = sphi 0, %s188
      %s191 = sphi 0, %s190
      %s205 = sphi 0, %s191
      %s209 = sphi 0, %s209
      %s211 = sphi 0, %s209
      %s212 = sphi 0, %s211
      %s226 = sphi 0, %s212
      %s230 = sphi 0, %s230
      %s232 = sphi 0, %s230
      %s233 = sphi 0, %s232
      %s247 = sphi 0, %s233
      %s251 = sphi 0, %s251
      %s253 = sphi 0, %s251
      %s254 = sphi 0, %s253
      %s268 = sphi 0, %s254
      %s272 = sphi 0, %s272
      %s274 = sphi 0, %s272
      %s275 = sphi 0, %s274
      %s289 = sphi 0, %s275
      %s293 = sphi 0, %s293
      %s295 = sphi 0, %s293
      %s296 = sphi 0, %s295
      %s310 = sphi 0, %s296
      %s314 = sphi 0, %s314
      %s316 = sphi 0, %s314
      %s317 = sphi 0, %s316
      %s331 = sphi 0, %s317
      %s335 = sphi 0, %s335
      %s337 = sphi 0, %s335
      %s338 = sphi 0, %s337
      %s352 = sphi 0, %s338
      %s356 = sphi 0, %s356
      %s358 = sphi 0, %s356
      %s359 = sphi 0, %s358
      %s373 = sphi 0, %s359
      %s379 = sphi 0, %s381
      %s382 = sphi 0, %s379
      %s383 = sphi 0, %s382
      %s399 = sphi 0, %s383
    $region4: #{bigram_lm_forward.1} parent=1 // loop_header_branch
      %31 = sbr.rel (%p29) target = $region8
    $region5: #{bigram_lm_forward.1} parent=1 // loop_body
      %s33 = ssub.s32 %s28, 1
      %s34 = ssub.s32 %s28, 2
      %s35 = sadd.s32 %s28, 1
      %s36 = ssub.s32 %s28, %s35
      %p37 = scmp.eq.s32.totalorder %s36, 0
      %s39 = sadd.s32 %s38, 1
      %s40 = scalar_select %p37, %s38, %s39
      %p43 = pneg %p37
      %p44 = scmp.eq.s32.totalorder %s28, 1
      %p45 = por %p43, %p44
      %p46 = scmp.ne.s32.totalorder %s38, %s41
      %p47 = scmp.eq.s32.totalorder %s28, 0
      %p48 = por %p46, %p47
      %p49 = scmp.ne.s32.totalorder %s38, %s41
      %p50 = scmp.eq.s32.totalorder %s33, 1
      %p51 = por %p49, %p50
      %p52 = scmp.ne.s32.totalorder %s41, %s42
      %p53 = scmp.eq.s32.totalorder %s33, 0
      %p54 = por %p52, %p53
      %p55 = scmp.ne.s32.totalorder %s41, %s42
      %p56 = scmp.eq.s32.totalorder %s34, 1
      %p57 = por %p55, %p56
      %p59 = scmp.ne.s32.totalorder %s42, %s58
      %p60 = scmp.eq.s32.totalorder %s34, 0
      %p61 = por %p59, %p60
      %s63 = sadd.s32 %s62, 1
      %p66 = scmp.eq.s32.totalorder %s28, 1
      %p67 = scmp.ne.s32.totalorder %s62, %s64
      %p68 = scmp.eq.s32.totalorder %s28, 0
      %p69 = por %p67, %p68
      %p70 = scmp.ne.s32.totalorder %s62, %s64
      %p71 = scmp.eq.s32.totalorder %s33, 1
      %p72 = por %p70, %p71
      %p73 = scmp.ne.s32.totalorder %s64, %s65
      %p74 = scmp.eq.s32.totalorder %s33, 0
      %p75 = por %p73, %p74
      %p76 = scmp.ne.s32.totalorder %s64, %s65
      %p77 = scmp.eq.s32.totalorder %s34, 1
      %p78 = por %p76, %p77
      %p80 = scmp.ne.s32.totalorder %s65, %s79
      %p81 = scmp.eq.s32.totalorder %s34, 0
      %p82 = por %p80, %p81
      %s84 = sadd.s32 %s83, 1
      %p87 = scmp.eq.s32.totalorder %s28, 1
      %p88 = scmp.ne.s32.totalorder %s83, %s85
      %p89 = scmp.eq.s32.totalorder %s28, 0
      %p90 = por %p88, %p89
      %p91 = scmp.ne.s32.totalorder %s83, %s85
      %p92 = scmp.eq.s32.totalorder %s33, 1
      %p93 = por %p91, %p92
      %p94 = scmp.ne.s32.totalorder %s85, %s86
      %p95 = scmp.eq.s32.totalorder %s33, 0
      %p96 = por %p94, %p95
      %p97 = scmp.ne.s32.totalorder %s85, %s86
      %p98 = scmp.eq.s32.totalorder %s34, 1
      %p99 = por %p97, %p98
      %p101 = scmp.ne.s32.totalorder %s86, %s100
      %p102 = scmp.eq.s32.totalorder %s34, 0
      %p103 = por %p101, %p102
      %s105 = sadd.s32 %s104, 1
      %p108 = scmp.eq.s32.totalorder %s28, 1
      %p109 = scmp.ne.s32.totalorder %s104, %s106
      %p110 = scmp.eq.s32.totalorder %s28, 0
      %p111 = por %p109, %p110
      %p112 = scmp.ne.s32.totalorder %s104, %s106
      %p113 = scmp.eq.s32.totalorder %s33, 1
      %p114 = por %p112, %p113
      %p115 = scmp.ne.s32.totalorder %s106, %s107
      %p116 = scmp.eq.s32.totalorder %s33, 0
      %p117 = por %p115, %p116
      %p118 = scmp.ne.s32.totalorder %s106, %s107
      %p119 = scmp.eq.s32.totalorder %s34, 1
      %p120 = por %p118, %p119
      %p122 = scmp.ne.s32.totalorder %s107, %s121
      %p123 = scmp.eq.s32.totalorder %s34, 0
      %p124 = por %p122, %p123
      %s126 = sadd.s32 %s125, 1
      %p129 = scmp.eq.s32.totalorder %s28, 1
      %p130 = scmp.ne.s32.totalorder %s125, %s127
      %p131 = scmp.eq.s32.totalorder %s28, 0
      %p132 = por %p130, %p131
      %p133 = scmp.ne.s32.totalorder %s125, %s127
      %p134 = scmp.eq.s32.totalorder %s33, 1
      %p135 = por %p133, %p134
      %p136 = scmp.ne.s32.totalorder %s127, %s128
      %p137 = scmp.eq.s32.totalorder %s33, 0
      %p138 = por %p136, %p137
      %p139 = scmp.ne.s32.totalorder %s127, %s128
      %p140 = scmp.eq.s32.totalorder %s34, 1
      %p141 = por %p139, %p140
      %p143 = scmp.ne.s32.totalorder %s128, %s142
      %p144 = scmp.eq.s32.totalorder %s34, 0
      %p145 = por %p143, %p144
      %s147 = sadd.s32 %s146, 1
      %p150 = scmp.eq.s32.totalorder %s28, 1
      %p151 = scmp.ne.s32.totalorder %s146, %s148
      %p152 = scmp.eq.s32.totalorder %s28, 0
      %p153 = por %p151, %p152
      %p154 = scmp.ne.s32.totalorder %s146, %s148
      %p155 = scmp.eq.s32.totalorder %s33, 1
      %p156 = por %p154, %p155
      %p157 = scmp.ne.s32.totalorder %s148, %s149
      %p158 = scmp.eq.s32.totalorder %s33, 0
      %p159 = por %p157, %p158
      %p160 = scmp.ne.s32.totalorder %s148, %s149
      %p161 = scmp.eq.s32.totalorder %s34, 1
      %p162 = por %p160, %p161
      %p164 = scmp.ne.s32.totalorder %s149, %s163
      %p165 = scmp.eq.s32.totalorder %s34, 0
      %p166 = por %p164, %p165
      %s168 = sadd.s32 %s167, 1
      %p171 = scmp.eq.s32.totalorder %s28, 1
      %p172 = scmp.ne.s32.totalorder %s167, %s169
      %p173 = scmp.eq.s32.totalorder %s28, 0
      %p174 = por %p172, %p173
      %p175 = scmp.ne.s32.totalorder %s167, %s169
      %p176 = scmp.eq.s32.totalorder %s33, 1
      %p177 = por %p175, %p176
      %p178 = scmp.ne.s32.totalorder %s169, %s170
      %p179 = scmp.eq.s32.totalorder %s33, 0
      %p180 = por %p178, %p179
      %p181 = scmp.ne.s32.totalorder %s169, %s170
      %p182 = scmp.eq.s32.totalorder %s34, 1
      %p183 = por %p181, %p182
      %p185 = scmp.ne.s32.totalorder %s170, %s184
      %p186 = scmp.eq.s32.totalorder %s34, 0
      %p187 = por %p185, %p186
      %s189 = sadd.s32 %s188, 1
      %p192 = scmp.eq.s32.totalorder %s28, 1
      %p193 = scmp.ne.s32.totalorder %s188, %s190
      %p194 = scmp.eq.s32.totalorder %s28, 0
      %p195 = por %p193, %p194
      %p196 = scmp.ne.s32.totalorder %s188, %s190
      %p197 = scmp.eq.s32.totalorder %s33, 1
      %p198 = por %p196, %p197
      %p199 = scmp.ne.s32.totalorder %s190, %s191
      %p200 = scmp.eq.s32.totalorder %s33, 0
      %p201 = por %p199, %p200
      %p202 = scmp.ne.s32.totalorder %s190, %s191
      %p203 = scmp.eq.s32.totalorder %s34, 1
      %p204 = por %p202, %p203
      %p206 = scmp.ne.s32.totalorder %s191, %s205
      %p207 = scmp.eq.s32.totalorder %s34, 0
      %p208 = por %p206, %p207
      %s210 = sadd.s32 %s209, 1
      %p213 = scmp.eq.s32.totalorder %s28, 1
      %p214 = scmp.ne.s32.totalorder %s209, %s211
      %p215 = scmp.eq.s32.totalorder %s28, 0
      %p216 = por %p214, %p215
      %p217 = scmp.ne.s32.totalorder %s209, %s211
      %p218 = scmp.eq.s32.totalorder %s33, 1
      %p219 = por %p217, %p218
      %p220 = scmp.ne.s32.totalorder %s211, %s212
      %p221 = scmp.eq.s32.totalorder %s33, 0
      %p222 = por %p220, %p221
      %p223 = scmp.ne.s32.totalorder %s211, %s212
      %p224 = scmp.eq.s32.totalorder %s34, 1
      %p225 = por %p223, %p224
      %p227 = scmp.ne.s32.totalorder %s212, %s226
      %p228 = scmp.eq.s32.totalorder %s34, 0
      %p229 = por %p227, %p228
      %s231 = sadd.s32 %s230, 1
      %p234 = scmp.eq.s32.totalorder %s28, 1
      %p235 = scmp.ne.s32.totalorder %s230, %s232
      %p236 = scmp.eq.s32.totalorder %s28, 0
      %p237 = por %p235, %p236
      %p238 = scmp.ne.s32.totalorder %s230, %s232
      %p239 = scmp.eq.s32.totalorder %s33, 1
      %p240 = por %p238, %p239
      %p241 = scmp.ne.s32.totalorder %s232, %s233
      %p242 = scmp.eq.s32.totalorder %s33, 0
      %p243 = por %p241, %p242
      %p244 = scmp.ne.s32.totalorder %s232, %s233
      %p245 = scmp.eq.s32.totalorder %s34, 1
      %p246 = por %p244, %p245
      %p248 = scmp.ne.s32.totalorder %s233, %s247
      %p249 = scmp.eq.s32.totalorder %s34, 0
      %p250 = por %p248, %p249
      %s252 = sadd.s32 %s251, 1
      %p255 = scmp.eq.s32.totalorder %s28, 1
      %p256 = scmp.ne.s32.totalorder %s251, %s253
      %p257 = scmp.eq.s32.totalorder %s28, 0
      %p258 = por %p256, %p257
      %p259 = scmp.ne.s32.totalorder %s251, %s253
      %p260 = scmp.eq.s32.totalorder %s33, 1
      %p261 = por %p259, %p260
      %p262 = scmp.ne.s32.totalorder %s253, %s254
      %p263 = scmp.eq.s32.totalorder %s33, 0
      %p264 = por %p262, %p263
      %p265 = scmp.ne.s32.totalorder %s253, %s254
      %p266 = scmp.eq.s32.totalorder %s34, 1
      %p267 = por %p265, %p266
      %p269 = scmp.ne.s32.totalorder %s254, %s268
      %p270 = scmp.eq.s32.totalorder %s34, 0
      %p271 = por %p269, %p270
      %s273 = sadd.s32 %s272, 1
      %p276 = scmp.eq.s32.totalorder %s28, 1
      %p277 = scmp.ne.s32.totalorder %s272, %s274
      %p278 = scmp.eq.s32.totalorder %s28, 0
      %p279 = por %p277, %p278
      %p280 = scmp.ne.s32.totalorder %s272, %s274
      %p281 = scmp.eq.s32.totalorder %s33, 1
      %p282 = por %p280, %p281
      %p283 = scmp.ne.s32.totalorder %s274, %s275
      %p284 = scmp.eq.s32.totalorder %s33, 0
      %p285 = por %p283, %p284
      %p286 = scmp.ne.s32.totalorder %s274, %s275
      %p287 = scmp.eq.s32.totalorder %s34, 1
      %p288 = por %p286, %p287
      %p290 = scmp.ne.s32.totalorder %s275, %s289
      %p291 = scmp.eq.s32.totalorder %s34, 0
      %p292 = por %p290, %p291
      %s294 = sadd.s32 %s293, 1
      %p297 = scmp.eq.s32.totalorder %s28, 1
      %p298 = scmp.ne.s32.totalorder %s293, %s295
      %p299 = scmp.eq.s32.totalorder %s28, 0
      %p300 = por %p298, %p299
      %p301 = scmp.ne.s32.totalorder %s293, %s295
      %p302 = scmp.eq.s32.totalorder %s33, 1
      %p303 = por %p301, %p302
      %p304 = scmp.ne.s32.totalorder %s295, %s296
      %p305 = scmp.eq.s32.totalorder %s33, 0
      %p306 = por %p304, %p305
      %p307 = scmp.ne.s32.totalorder %s295, %s296
      %p308 = scmp.eq.s32.totalorder %s34, 1
      %p309 = por %p307, %p308
      %p311 = scmp.ne.s32.totalorder %s296, %s310
      %p312 = scmp.eq.s32.totalorder %s34, 0
      %p313 = por %p311, %p312
      %s315 = sadd.s32 %s314, 1
      %p318 = scmp.eq.s32.totalorder %s28, 1
      %p319 = scmp.ne.s32.totalorder %s314, %s316
      %p320 = scmp.eq.s32.totalorder %s28, 0
      %p321 = por %p319, %p320
      %p322 = scmp.ne.s32.totalorder %s314, %s316
      %p323 = scmp.eq.s32.totalorder %s33, 1
      %p324 = por %p322, %p323
      %p325 = scmp.ne.s32.totalorder %s316, %s317
      %p326 = scmp.eq.s32.totalorder %s33, 0
      %p327 = por %p325, %p326
      %p328 = scmp.ne.s32.totalorder %s316, %s317
      %p329 = scmp.eq.s32.totalorder %s34, 1
      %p330 = por %p328, %p329
      %p332 = scmp.ne.s32.totalorder %s317, %s331
      %p333 = scmp.eq.s32.totalorder %s34, 0
      %p334 = por %p332, %p333
      %s336 = sadd.s32 %s335, 1
      %p339 = scmp.eq.s32.totalorder %s28, 1
      %p340 = scmp.ne.s32.totalorder %s335, %s337
      %p341 = scmp.eq.s32.totalorder %s28, 0
      %p342 = por %p340, %p341
      %p343 = scmp.ne.s32.totalorder %s335, %s337
      %p344 = scmp.eq.s32.totalorder %s33, 1
      %p345 = por %p343, %p344
      %p346 = scmp.ne.s32.totalorder %s337, %s338
      %p347 = scmp.eq.s32.totalorder %s33, 0
      %p348 = por %p346, %p347
      %p349 = scmp.ne.s32.totalorder %s337, %s338
      %p350 = scmp.eq.s32.totalorder %s34, 1
      %p351 = por %p349, %p350
      %p353 = scmp.ne.s32.totalorder %s338, %s352
      %p354 = scmp.eq.s32.totalorder %s34, 0
      %p355 = por %p353, %p354
      %s357 = sadd.s32 %s356, 1
      %p360 = scmp.eq.s32.totalorder %s28, 1
      %p361 = scmp.ne.s32.totalorder %s356, %s358
      %p362 = scmp.eq.s32.totalorder %s28, 0
      %p363 = por %p361, %p362
      %p364 = scmp.ne.s32.totalorder %s356, %s358
      %p365 = scmp.eq.s32.totalorder %s33, 1
      %p366 = por %p364, %p365
      %p367 = scmp.ne.s32.totalorder %s358, %s359
      %p368 = scmp.eq.s32.totalorder %s33, 0
      %p369 = por %p367, %p368
      %p370 = scmp.ne.s32.totalorder %s358, %s359
      %p371 = scmp.eq.s32.totalorder %s34, 1
      %p372 = por %p370, %p371
      %p374 = scmp.ne.s32.totalorder %s359, %s373
      %p375 = scmp.eq.s32.totalorder %s34, 0
      %p376 = por %p374, %p375
      %s377 = ssub.s32 %s28, %s35
      %p378 = scmp.eq.s32.totalorder %s377, 0
      %s380 = sadd.s32 %s379, 1
      %s381 = scalar_select %p378, %s379, %s380
      %p384 = pneg %p378
      %p385 = scmp.eq.s32.totalorder %s28, 1
      %p386 = por %p384, %p385
      %p387 = scmp.ne.s32.totalorder %s379, %s382
      %p388 = scmp.eq.s32.totalorder %s28, 0
      %p389 = por %p387, %p388
      %p390 = scmp.ne.s32.totalorder %s379, %s382
      %p391 = scmp.eq.s32.totalorder %s33, 1
      %p392 = por %p390, %p391
      %p393 = scmp.ne.s32.totalorder %s382, %s383
      %p394 = scmp.eq.s32.totalorder %s33, 0
      %p395 = por %p393, %p394
      %p396 = scmp.ne.s32.totalorder %s382, %s383
      %p397 = scmp.eq.s32.totalorder %s34, 1
      %p398 = por %p396, %p397
      %p400 = scmp.ne.s32.totalorder %s383, %s399
      %p401 = scmp.eq.s32.totalorder %s34, 0
      %p402 = por %p400, %p401
      %p403 = scmp.le.s32.totalorder 1, %s28
      %p404 = scmp.lt.s32.totalorder %s28, 3
      %p405 = pnand %p403, %p404
      %p406 = pneg %p405
      // Predicated region
      $region9: #{bigram_lm_forward.1} parent=5 // pred_check
        _
      $region10: #{bigram_lm_forward.1} parent=5 // pred_check_branch
        %408 = sbr.rel (%p405) target = $region12
      $region11: #{bigram_lm_forward.1} parent=5 // pred_region
        %s409 = ssub.s32 %s28, 1
        // Predicated region
        $region13: #{bigram_lm_forward.1} parent=11 // pred_check
          %p410 = pneg %p75
        $region14: #{bigram_lm_forward.1} parent=11 // pred_check_branch
          %412 = sbr.rel (%p410) target = $region16
        $region15: #{bigram_lm_forward.1} parent=11 // pred_region
          _
        $region16: #{bigram_lm_forward.1} parent=11 // pred_fallthru
          _
        // Predicated region
        $region17: #{bigram_lm_forward.1} parent=11 // pred_check
          %p413 = pneg %p96
        $region18: #{bigram_lm_forward.1} parent=11 // pred_check_branch
          %415 = sbr.rel (%p413) target = $region20
        $region19: #{bigram_lm_forward.1} parent=11 // pred_region
          _
        $region20: #{bigram_lm_forward.1} parent=11 // pred_fallthru
          _
        // Predicated region
        $region21: #{bigram_lm_forward.1} parent=11 // pred_check
          %p416 = pneg %p117
        $region22: #{bigram_lm_forward.1} parent=11 // pred_check_branch
          %418 = sbr.rel (%p416) target = $region24
        $region23: #{bigram_lm_forward.1} parent=11 // pred_region
          _
        $region24: #{bigram_lm_forward.1} parent=11 // pred_fallthru
          _
        // Predicated region
        $region25: #{bigram_lm_forward.1} parent=11 // pred_check
          %p419 = pneg %p138
        $region26: #{bigram_lm_forward.1} parent=11 // pred_check_branch
          %421 = sbr.rel (%p419) target = $region28
        $region27: #{bigram_lm_forward.1} parent=11 // pred_region
          %423 = vsyncadd [#allocation3], 0
          %s424 = sshll.u32 %s4, 4
          %s425 = int_to_ptr.hbm [resolvable:$true] %s424
          %s426 = sshll.u32 [#allocation2], 4
          %s427 = int_to_ptr.vmem [resolvable:$true] %s426
          %432 = dma.hbm_to_vmem [thread:$0]  %s425, 2048, %s427, [#allocation3], 64, 64, 4
        $region28: #{bigram_lm_forward.1} parent=11 // pred_fallthru
          _
        // Predicated region
        $region29: #{bigram_lm_forward.1} parent=11 // pred_check
          %p433 = pneg %p159
        $region30: #{bigram_lm_forward.1} parent=11 // pred_check_branch
          %435 = sbr.rel (%p433) target = $region32
        $region31: #{bigram_lm_forward.1} parent=11 // pred_region
          _
        $region32: #{bigram_lm_forward.1} parent=11 // pred_fallthru
          _
        // Predicated region
        $region33: #{bigram_lm_forward.1} parent=11 // pred_check
          %p436 = pneg %p180
        $region34: #{bigram_lm_forward.1} parent=11 // pred_check_branch
          %438 = sbr.rel (%p436) target = $region36
        $region35: #{bigram_lm_forward.1} parent=11 // pred_region
          _
        $region36: #{bigram_lm_forward.1} parent=11 // pred_fallthru
          _
        // Predicated region
        $region37: #{bigram_lm_forward.1} parent=11 // pred_check
          %p439 = pneg %p201
        $region38: #{bigram_lm_forward.1} parent=11 // pred_check_branch
          %441 = sbr.rel (%p439) target = $region40
        $region39: #{bigram_lm_forward.1} parent=11 // pred_region
          _
        $region40: #{bigram_lm_forward.1} parent=11 // pred_fallthru
          _
        // Predicated region
        $region41: #{bigram_lm_forward.1} parent=11 // pred_check
          %p442 = pneg %p222
        $region42: #{bigram_lm_forward.1} parent=11 // pred_check_branch
          %444 = sbr.rel (%p442) target = $region44
        $region43: #{bigram_lm_forward.1} parent=11 // pred_region
          _
        $region44: #{bigram_lm_forward.1} parent=11 // pred_fallthru
          _
        // Predicated region
        $region45: #{bigram_lm_forward.1} parent=11 // pred_check
          %p445 = pneg %p243
        $region46: #{bigram_lm_forward.1} parent=11 // pred_check_branch
          %447 = sbr.rel (%p445) target = $region48
        $region47: #{bigram_lm_forward.1} parent=11 // pred_region
          _
        $region48: #{bigram_lm_forward.1} parent=11 // pred_fallthru
          _
        // Predicated region
        $region49: #{bigram_lm_forward.1} parent=11 // pred_check
          %p448 = pneg %p264
        $region50: #{bigram_lm_forward.1} parent=11 // pred_check_branch
          %450 = sbr.rel (%p448) target = $region52
        $region51: #{bigram_lm_forward.1} parent=11 // pred_region
          _
        $region52: #{bigram_lm_forward.1} parent=11 // pred_fallthru
          _
        // Predicated region
        $region53: #{bigram_lm_forward.1} parent=11 // pred_check
          %p451 = pneg %p285
        $region54: #{bigram_lm_forward.1} parent=11 // pred_check_branch
          %453 = sbr.rel (%p451) target = $region56
        $region55: #{bigram_lm_forward.1} parent=11 // pred_region
          %455 = vsyncadd [#allocation6], 0
          %s456 = sshll.u32 %s11, 4
          %s457 = int_to_ptr.hbm [resolvable:$true] %s456
          %s458 = sshll.u32 [#allocation5], 4
          %s459 = int_to_ptr.vmem [resolvable:$true] %s458
          %464 = dma.hbm_to_vmem [thread:$0]  %s457, 32, %s459, [#allocation6], 16, 16, 1
        $region56: #{bigram_lm_forward.1} parent=11 // pred_fallthru
          _
        // Predicated region
        $region57: #{bigram_lm_forward.1} parent=11 // pred_check
          %p465 = pneg %p306
        $region58: #{bigram_lm_forward.1} parent=11 // pred_check_branch
          %467 = sbr.rel (%p465) target = $region60
        $region59: #{bigram_lm_forward.1} parent=11 // pred_region
          _
        $region60: #{bigram_lm_forward.1} parent=11 // pred_fallthru
          _
        // Predicated region
        $region61: #{bigram_lm_forward.1} parent=11 // pred_check
          %p468 = pneg %p327
        $region62: #{bigram_lm_forward.1} parent=11 // pred_check_branch
          %470 = sbr.rel (%p468) target = $region64
        $region63: #{bigram_lm_forward.1} parent=11 // pred_region
          %472 = vsyncadd [#allocation6], 0
          %s474 = sshll.u32 %s13, 4
          %s475 = int_to_ptr.hbm [resolvable:$true] %s474
          %s476 = sshll.u32 [#allocation7], 4
          %s477 = int_to_ptr.vmem [resolvable:$true] %s476
          %479 = dma.hbm_to_vmem [thread:$0]  %s475, 16, %s477, [#allocation6]
        $region64: #{bigram_lm_forward.1} parent=11 // pred_fallthru
          _
        // Predicated region
        $region65: #{bigram_lm_forward.1} parent=11 // pred_check
          %p480 = pneg %p348
        $region66: #{bigram_lm_forward.1} parent=11 // pred_check_branch
          %482 = sbr.rel (%p480) target = $region68
        $region67: #{bigram_lm_forward.1} parent=11 // pred_region
          %484 = vsyncadd [#allocation9], 0
          %s485 = sshll.u32 %s14, 4
          %s486 = int_to_ptr.hbm [resolvable:$true] %s485
          %s487 = sshll.u32 [#allocation8], 4
          %s488 = int_to_ptr.vmem [resolvable:$true] %s487
          %493 = dma.hbm_to_vmem [thread:$0]  %s486, 1024, %s488, [#allocation9], 64, 64, 4
        $region68: #{bigram_lm_forward.1} parent=11 // pred_fallthru
          _
        // Predicated region
        $region69: #{bigram_lm_forward.1} parent=11 // pred_check
          %p494 = pneg %p369
        $region70: #{bigram_lm_forward.1} parent=11 // pred_check_branch
          %496 = sbr.rel (%p494) target = $region72
        $region71: #{bigram_lm_forward.1} parent=11 // pred_region
          %498 = vsyncadd [#allocation9], 0
          %s500 = sshll.u32 %s15, 4
          %s501 = int_to_ptr.hbm [resolvable:$true] %s500
          %s502 = sshll.u32 [#allocation10], 4
          %s503 = int_to_ptr.vmem [resolvable:$true] %s502
          %505 = dma.hbm_to_vmem [thread:$0]  %s501, 16, %s503, [#allocation9]
        $region72: #{bigram_lm_forward.1} parent=11 // pred_fallthru
          _
      $region12: #{bigram_lm_forward.1} parent=5 // pred_fallthru
        _
      %p506 = scmp.lt.s32.totalorder %s28, 2
      // Predicated region
      $region73: #{bigram_lm_forward.1} parent=5 // pred_check
        %p507 = pneg %p506
      $region74: #{bigram_lm_forward.1} parent=5 // pred_check_branch
        %509 = sbr.rel (%p507) target = $region76
      $region75: #{bigram_lm_forward.1} parent=5 // pred_region
        // Predicated region
        $region77: #{bigram_lm_forward.1} parent=75 // pred_check
          %p510 = pneg %p48
        $region78: #{bigram_lm_forward.1} parent=75 // pred_check_branch
          %512 = sbr.rel (%p510) target = $region80
        $region79: #{bigram_lm_forward.1} parent=75 // pred_region
          %p513 = scmp.lt.s32.totalorder %s28, 1
          %s514 = scalar_select %p513, %s28, 1
          %s515 = smul.addr %s514, 8
          %s516 = smul.addr %s515, 8
          %s517 = scalar_lea.vmem %s0, %s516
        $region80: #{bigram_lm_forward.1} parent=75 // pred_fallthru
          _
      $region76: #{bigram_lm_forward.1} parent=5 // pred_fallthru
        _
      %p518 = scmp.le.s32.totalorder 1, %s28
      %p519 = scmp.lt.s32.totalorder %s28, 3
      %p520 = pnand %p518, %p519
      %p521 = pneg %p520
      // Predicated region
      $region81: #{bigram_lm_forward.1} parent=5 // pred_check
        _
      $region82: #{bigram_lm_forward.1} parent=5 // pred_check_branch
        %523 = sbr.rel (%p520) target = $region84
      $region83: #{bigram_lm_forward.1} parent=5 // pred_region
        %s524 = ssub.s32 %s28, 1
        // Predicated region
        $region85: #{bigram_lm_forward.1} parent=83 // pred_check
          %p525 = pneg %p138
        $region86: #{bigram_lm_forward.1} parent=83 // pred_check_branch
          %527 = sbr.rel (%p525) target = $region88
        $region87: #{bigram_lm_forward.1} parent=83 // pred_region
          %529 = dma.done [#allocation3], 2048
        $region88: #{bigram_lm_forward.1} parent=83 // pred_fallthru
          _
        // Predicated region
        $region89: #{bigram_lm_forward.1} parent=83 // pred_check
          %p530 = pneg %p285
        $region90: #{bigram_lm_forward.1} parent=83 // pred_check_branch
          %532 = sbr.rel (%p530) target = $region92
        $region91: #{bigram_lm_forward.1} parent=83 // pred_region
          %534 = dma.done [#allocation6], 32
        $region92: #{bigram_lm_forward.1} parent=83 // pred_fallthru
          _
        // Predicated region
        $region93: #{bigram_lm_forward.1} parent=83 // pred_check
          %p535 = pneg %p327
        $region94: #{bigram_lm_forward.1} parent=83 // pred_check_branch
          %537 = sbr.rel (%p535) target = $region96
        $region95: #{bigram_lm_forward.1} parent=83 // pred_region
          %539 = dma.done [#allocation6], 16
        $region96: #{bigram_lm_forward.1} parent=83 // pred_fallthru
          _
        // Predicated region
        $region97: #{bigram_lm_forward.1} parent=83 // pred_check
          %p540 = pneg %p348
        $region98: #{bigram_lm_forward.1} parent=83 // pred_check_branch
          %542 = sbr.rel (%p540) target = $region100
        $region99: #{bigram_lm_forward.1} parent=83 // pred_region
          %544 = dma.done [#allocation9], 1024
        $region100: #{bigram_lm_forward.1} parent=83 // pred_fallthru
          _
        // Predicated region
        $region101: #{bigram_lm_forward.1} parent=83 // pred_check
          %p545 = pneg %p369
        $region102: #{bigram_lm_forward.1} parent=83 // pred_check_branch
          %547 = sbr.rel (%p545) target = $region104
        $region103: #{bigram_lm_forward.1} parent=83 // pred_region
          %549 = dma.done [#allocation9], 16
        $region104: #{bigram_lm_forward.1} parent=83 // pred_fallthru
          _
        %p550 = scmp.lt.s32.totalorder %s33, 1
        %s551 = scalar_select %p550, %s33, 1
        %s552 = smul.addr %s551, 8
        %s553 = smul.addr %s552, 8
        %s554 = scalar_lea.vmem %s0, %s553
        %p555 = pneg %p54
        %p556 = pneg %p51
        %p557 = pneg %p75
        %p558 = pneg %p72
        %p559 = pneg %p96
        %p560 = pneg %p93
        %p561 = pneg %p117
        %p562 = pneg %p114
        %p563 = pneg %p138
        %p564 = pneg %p135
        %p565 = pneg %p159
        %p566 = pneg %p156
        %p567 = pneg %p180
        %p568 = pneg %p177
        %p569 = pneg %p201
        %p570 = pneg %p198
        %p571 = pneg %p222
        %p572 = pneg %p219
        %p573 = pneg %p243
        %p574 = pneg %p240
        %p575 = pneg %p264
        %p576 = pneg %p261
        %p577 = pneg %p285
        %p578 = pneg %p282
        %p579 = pneg %p306
        %p580 = pneg %p303
        %p581 = pneg %p327
        %p582 = pneg %p324
        %p583 = pneg %p348
        %p584 = pneg %p345
        %p585 = pneg %p369
        %p586 = pneg %p366
        %p587 = pneg %p395
        %p588 = pneg %p392
        %s589 = sand.u32 %s382, 1
        %s590 = scalar_lea.sflag [#allocation4], %s589
        %s591 = sand.u32 %s382, 1
        %s592 = smul.addr %s591, 64
        %s593 = scalar_lea.vmem [#allocation11], %s592
        %p594 = scmp.lt.s32.totalorder %s33, 1
        %s595 = scalar_select %p594, %s33, 1
        %s596 = smul.addr %s595, 8
        %s597 = smul.addr %s596, 8
        %s598 = scalar_lea.vmem %s0, %s597
        %v600 = vld [vmem:[%s598] sm:$0xff]
        %v601 = vld [vmem:[%s598 + $0x8] sm:$0xff]
        %v602 = vld [vmem:[%s598 + $0x10] sm:$0xff]
        %v603 = vld [vmem:[%s598 + $0x18] sm:$0xff]
        %v604 = vld [vmem:[%s598 + $0x20] sm:$0xff]
        %v605 = vld [vmem:[%s598 + $0x28] sm:$0xff]
        %v606 = vld [vmem:[%s598 + $0x30] sm:$0xff]
        %v607 = vld [vmem:[%s598 + $0x38] sm:$0xff]
        %v608 = vlaneseq
        %v609 = vshrl.u32 %v608, 7
        %v610 = vadd.s32 %v609, 8
        %v611 = vadd.s32 %v609, 16
        %v612 = vadd.s32 %v609, 24
        %v613 = vadd.s32 %v609, 32
        %v614 = vadd.s32 %v609, 40
        %v615 = vadd.s32 %v609, 48
        %v616 = vadd.s32 %v609, 56
        %v617 = vlaneseq
        %v618 = vand.u32 %v617, 127
        %vm619 = vcmp.le.s32.totalorder %v618, %v609
        %vm620 = vcmp.le.s32.totalorder %v618, %v610
        %vm621 = vcmp.le.s32.totalorder %v618, %v611
        %vm622 = vcmp.le.s32.totalorder %v618, %v612
        %vm623 = vcmp.le.s32.totalorder %v618, %v613
        %vm624 = vcmp.le.s32.totalorder %v618, %v614
        %vm625 = vcmp.le.s32.totalorder %v618, %v615
        %vm626 = vcmp.le.s32.totalorder %v618, %v616
        %v627 = vsel %vm619, 0.0, -1e+30
        %v628 = vsel %vm620, 0.0, -1e+30
        %v629 = vsel %vm621, 0.0, -1e+30
        %v630 = vsel %vm622, 0.0, -1e+30
        %v631 = vsel %vm623, 0.0, -1e+30
        %v632 = vsel %vm624, 0.0, -1e+30
        %v633 = vsel %vm625, 0.0, -1e+30
        %v634 = vsel %vm626, 0.0, -1e+30
        %v635 = vld [vmem:[%s1] sm:$0x1]
        %v636 = vld [vmem:[%s2] sm:$0x1]
        %637 = vadd.xlane.f32.xlu0 %v600
        %v638 = vpop.xlane.xlu0 %637
        %639 = vadd.xlane.f32.xlu0 %v601
        %v640 = vpop.xlane.xlu0 %639
        %641 = vadd.xlane.f32.xlu0 %v602
        %v642 = vpop.xlane.xlu0 %641
        %643 = vadd.xlane.f32.xlu0 %v603
        %v644 = vpop.xlane.xlu0 %643
        %645 = vadd.xlane.f32.xlu0 %v604
        %v646 = vpop.xlane.xlu0 %645
        %647 = vadd.xlane.f32.xlu0 %v605
        %v648 = vpop.xlane.xlu0 %647
        %649 = vadd.xlane.f32.xlu0 %v606
        %v650 = vpop.xlane.xlu0 %649
        %651 = vadd.xlane.f32.xlu0 %v607
        %v652 = vpop.xlane.xlu0 %651
        %v653 = vrcp.pop 128.0
        %v654 = vmul.f32 128.0, %v653
        %v655 = vsub.f32 1.0, %v654
        %v656 = vmul.f32 %v653, %v655
        %v657 = vadd.f32 %v653, %v656
        %vm658 = vweird.f32 %v653
        %v659 = vsel %vm658, %v653, %v657
        %v660 = vmul.f32 %v638, %v659
        %v661 = vmul.f32 %v640, %v659
        %v662 = vmul.f32 %v642, %v659
        %v663 = vmul.f32 %v644, %v659
        %v664 = vmul.f32 %v646, %v659
        %v665 = vmul.f32 %v648, %v659
        %v666 = vmul.f32 %v650, %v659
        %v667 = vmul.f32 %v652, %v659
        %v668 = vsub.f32 %v600, %v660
        %v669 = vsub.f32 %v601, %v661
        %v670 = vsub.f32 %v602, %v662
        %v671 = vsub.f32 %v603, %v663
        %v672 = vsub.f32 %v604, %v664
        %v673 = vsub.f32 %v605, %v665
        %v674 = vsub.f32 %v606, %v666
        %v675 = vsub.f32 %v607, %v667
        %v676 = vmul.f32 %v668, %v668
        %v677 = vmul.f32 %v669, %v669
        %v678 = vmul.f32 %v670, %v670
        %v679 = vmul.f32 %v671, %v671
        %v680 = vmul.f32 %v672, %v672
        %v681 = vmul.f32 %v673, %v673
        %v682 = vmul.f32 %v674, %v674
        %v683 = vmul.f32 %v675, %v675
        %684 = vadd.xlane.f32.xlu0 %v676
        %v685 = vpop.xlane.xlu0 %684
        %686 = vadd.xlane.f32.xlu0 %v677
        %v687 = vpop.xlane.xlu0 %686
        %688 = vadd.xlane.f32.xlu0 %v678
        %v689 = vpop.xlane.xlu0 %688
        %690 = vadd.xlane.f32.xlu0 %v679
        %v691 = vpop.xlane.xlu0 %690
        %692 = vadd.xlane.f32.xlu0 %v680
        %v693 = vpop.xlane.xlu0 %692
        %694 = vadd.xlane.f32.xlu0 %v681
        %v695 = vpop.xlane.xlu0 %694
        %696 = vadd.xlane.f32.xlu0 %v682
        %v697 = vpop.xlane.xlu0 %696
        %698 = vadd.xlane.f32.xlu0 %v683
        %v699 = vpop.xlane.xlu0 %698
        %v700 = vmul.f32 %v685, %v659
        %v701 = vmul.f32 %v687, %v659
        %v702 = vmul.f32 %v689, %v659
        %v703 = vmul.f32 %v691, %v659
        %v704 = vmul.f32 %v693, %v659
        %v705 = vmul.f32 %v695, %v659
        %v706 = vmul.f32 %v697, %v659
        %v707 = vmul.f32 %v699, %v659
        %v708 = vadd.f32 %v700, 1e-05
        %v709 = vadd.f32 %v701, 1e-05
        %v710 = vadd.f32 %v702, 1e-05
        %v711 = vadd.f32 %v703, 1e-05
        %v712 = vadd.f32 %v704, 1e-05
        %v713 = vadd.f32 %v705, 1e-05
        %v714 = vadd.f32 %v706, 1e-05
        %v715 = vadd.f32 %v707, 1e-05
        %v716 = vrsqrt.pop %v708
        %v717 = vmul.f32 %v716, %v708
        %v718 = vmul.f32 %v717, %v716
        %v719 = vmul.f32 0.5, %v718
        %v720 = vsub.f32 1.5, %v719
        %v721 = vmul.f32 %v716, %v720
        %vm722 = vweird.f32 %v708
        %vm723 = vweird.f32 %v716
        %vm724 = vmor %vm722, %vm723
        %v725 = vsel %vm724, %v716, %v721
        %v726 = vrsqrt.pop %v709
        %v727 = vmul.f32 %v726, %v709
        %v728 = vmul.f32 %v727, %v726
        %v729 = vmul.f32 0.5, %v728
        %v730 = vsub.f32 1.5, %v729
        %v731 = vmul.f32 %v726, %v730
        %vm732 = vweird.f32 %v709
        %vm733 = vweird.f32 %v726
        %vm734 = vmor %vm732, %vm733
        %v735 = vsel %vm734, %v726, %v731
        %v736 = vrsqrt.pop %v710
        %v737 = vmul.f32 %v736, %v710
        %v738 = vmul.f32 %v737, %v736
        %v739 = vmul.f32 0.5, %v738
        %v740 = vsub.f32 1.5, %v739
        %v741 = vmul.f32 %v736, %v740
        %vm742 = vweird.f32 %v710
        %vm743 = vweird.f32 %v736
        %vm744 = vmor %vm742, %vm743
        %v745 = vsel %vm744, %v736, %v741
        %v746 = vrsqrt.pop %v711
        %v747 = vmul.f32 %v746, %v711
        %v748 = vmul.f32 %v747, %v746
        %v749 = vmul.f32 0.5, %v748
        %v750 = vsub.f32 1.5, %v749
        %v751 = vmul.f32 %v746, %v750
        %vm752 = vweird.f32 %v711
        %vm753 = vweird.f32 %v746
        %vm754 = vmor %vm752, %vm753
        %v755 = vsel %vm754, %v746, %v751
        %v756 = vrsqrt.pop %v712
        %v757 = vmul.f32 %v756, %v712
        %v758 = vmul.f32 %v757, %v756
        %v759 = vmul.f32 0.5, %v758
        %v760 = vsub.f32 1.5, %v759
        %v761 = vmul.f32 %v756, %v760
        %vm762 = vweird.f32 %v712
        %vm763 = vweird.f32 %v756
        %vm764 = vmor %vm762, %vm763
        %v765 = vsel %vm764, %v756, %v761
        %v766 = vrsqrt.pop %v713
        %v767 = vmul.f32 %v766, %v713
        %v768 = vmul.f32 %v767, %v766
        %v769 = vmul.f32 0.5, %v768
        %v770 = vsub.f32 1.5, %v769
        %v771 = vmul.f32 %v766, %v770
        %vm772 = vweird.f32 %v713
        %vm773 = vweird.f32 %v766
        %vm774 = vmor %vm772, %vm773
        %v775 = vsel %vm774, %v766, %v771
        %v776 = vrsqrt.pop %v714
        %v777 = vmul.f32 %v776, %v714
        %v778 = vmul.f32 %v777, %v776
        %v779 = vmul.f32 0.5, %v778
        %v780 = vsub.f32 1.5, %v779
        %v781 = vmul.f32 %v776, %v780
        %vm782 = vweird.f32 %v714
        %vm783 = vweird.f32 %v776
        %vm784 = vmor %vm782, %vm783
        %v785 = vsel %vm784, %v776, %v781
        %v786 = vrsqrt.pop %v715
        %v787 = vmul.f32 %v786, %v715
        %v788 = vmul.f32 %v787, %v786
        %v789 = vmul.f32 0.5, %v788
        %v790 = vsub.f32 1.5, %v789
        %v791 = vmul.f32 %v786, %v790
        %vm792 = vweird.f32 %v715
        %vm793 = vweird.f32 %v786
        %vm794 = vmor %vm792, %vm793
        %v795 = vsel %vm794, %v786, %v791
        %v796 = vmul.f32 %v668, %v725
        %v797 = vmul.f32 %v669, %v735
        %v798 = vmul.f32 %v670, %v745
        %v799 = vmul.f32 %v671, %v755
        %v800 = vmul.f32 %v672, %v765
        %v801 = vmul.f32 %v673, %v775
        %v802 = vmul.f32 %v674, %v785
        %v803 = vmul.f32 %v675, %v795
        %v805 = vperm.slane %v635, 0
        %v807 = vmul.f32 %v796, %v805
        %v808 = vmul.f32 %v797, %v805
        %v809 = vmul.f32 %v798, %v805
        %v810 = vmul.f32 %v799, %v805
        %v811 = vmul.f32 %v800, %v805
        %v812 = vmul.f32 %v801, %v805
        %v813 = vmul.f32 %v802, %v805
        %v814 = vmul.f32 %v803, %v805
        %v816 = vperm.slane %v636, 0
        %v818 = vadd.f32 %v807, %v816
        %v819 = vadd.f32 %v808, %v816
        %v820 = vadd.f32 %v809, %v816
        %v821 = vadd.f32 %v810, %v816
        %v822 = vadd.f32 %v811, %v816
        %v823 = vadd.f32 %v812, %v816
        %v824 = vadd.f32 %v813, %v816
        %v825 = vadd.f32 %v814, %v816
        %v826 = vpack.c.bf16 %v819, %v818
        %v827 = vpack.c.bf16 %v821, %v820
        %v828 = vpack.c.bf16 %v823, %v822
        %v829 = vpack.c.bf16 %v825, %v824
        %v830 = vld [vmem:[%s3] sm:$0xff]
        %v831 = vld [vmem:[%s3 + $0x8] sm:$0xf]
        %v832 = vld [vmem:[%s3 + $0xc] sm:$0xff]
        %v833 = vld [vmem:[%s3 + $0x14] sm:$0xf]
        %v834 = vld [vmem:[%s3 + $0x18] sm:$0xff]
        %v835 = vld [vmem:[%s3 + $0x20] sm:$0xf]
        %v836 = vld [vmem:[%s3 + $0x24] sm:$0xff]
        %v837 = vld [vmem:[%s3 + $0x2c] sm:$0xf]
        %v838 = vld [vmem:[%s3 + $0x30] sm:$0xff]
        %v839 = vld [vmem:[%s3 + $0x38] sm:$0xf]
        %v840 = vld [vmem:[%s3 + $0x3c] sm:$0xff]
        %v841 = vld [vmem:[%s3 + $0x44] sm:$0xf]
        %v842 = vld [vmem:[%s3 + $0x48] sm:$0xff]
        %v843 = vld [vmem:[%s3 + $0x50] sm:$0xf]
        %v844 = vld [vmem:[%s3 + $0x54] sm:$0xff]
        %v845 = vld [vmem:[%s3 + $0x5c] sm:$0xf]
        %v846 = vld [vmem:[%s3 + $0x60] sm:$0xff]
        %v847 = vld [vmem:[%s3 + $0x68] sm:$0xf]
        %v848 = vld [vmem:[%s3 + $0x6c] sm:$0xff]
        %v849 = vld [vmem:[%s3 + $0x74] sm:$0xf]
        %v850 = vld [vmem:[%s3 + $0x78] sm:$0xff]
        %v851 = vld [vmem:[%s3 + $0x80] sm:$0xf]
        %v852 = vld [vmem:[%s3 + $0x84] sm:$0xff]
        %v853 = vld [vmem:[%s3 + $0x8c] sm:$0xf]
        %v854 = vld [vmem:[%s3 + $0x90] sm:$0xff]
        %v855 = vld [vmem:[%s3 + $0x98] sm:$0xf]
        %v856 = vld [vmem:[%s3 + $0x9c] sm:$0xff]
        %v857 = vld [vmem:[%s3 + $0xa4] sm:$0xf]
        %v858 = vld [vmem:[%s3 + $0xa8] sm:$0xff]
        %v859 = vld [vmem:[%s3 + $0xb0] sm:$0xf]
        %v860 = vld [vmem:[%s3 + $0xb4] sm:$0xff]
        %v861 = vld [vmem:[%s3 + $0xbc] sm:$0xf]
        %v894 = vunpack.c.l.b16 %v830
        %v895 = vunpack.c.h.b16 %v830
        %v896 = vunpack.c.l.b16 %v831
        %v897 = vunpack.c.l.b16 %v832
        %v898 = vunpack.c.h.b16 %v832
        %v899 = vunpack.c.l.b16 %v833
        %v900 = vunpack.c.l.b16 %v834
        %v901 = vunpack.c.h.b16 %v834
        %v902 = vunpack.c.l.b16 %v835
        %v903 = vunpack.c.l.b16 %v836
        %v904 = vunpack.c.h.b16 %v836
        %v905 = vunpack.c.l.b16 %v837
        %v906 = vunpack.c.l.b16 %v838
        %v907 = vunpack.c.h.b16 %v838
        %v908 = vunpack.c.l.b16 %v839
        %v909 = vunpack.c.l.b16 %v840
        %v910 = vunpack.c.h.b16 %v840
        %v911 = vunpack.c.l.b16 %v841
        %v912 = vunpack.c.l.b16 %v842
        %v913 = vunpack.c.h.b16 %v842
        %v914 = vunpack.c.l.b16 %v843
        %v915 = vunpack.c.l.b16 %v844
        %v916 = vunpack.c.h.b16 %v844
        %v917 = vunpack.c.l.b16 %v845
        %v918 = vunpack.c.l.b16 %v846
        %v919 = vunpack.c.h.b16 %v846
        %v920 = vunpack.c.l.b16 %v847
        %v921 = vunpack.c.l.b16 %v848
        %v922 = vunpack.c.h.b16 %v848
        %v923 = vunpack.c.l.b16 %v849
        %v924 = vunpack.c.l.b16 %v850
        %v925 = vunpack.c.h.b16 %v850
        %v926 = vunpack.c.l.b16 %v851
        %v927 = vunpack.c.l.b16 %v852
        %v928 = vunpack.c.h.b16 %v852
        %v929 = vunpack.c.l.b16 %v853
        %v930 = vunpack.c.l.b16 %v854
        %v931 = vunpack.c.h.b16 %v854
        %v932 = vunpack.c.l.b16 %v855
        %v933 = vunpack.c.l.b16 %v856
        %v934 = vunpack.c.h.b16 %v856
        %v935 = vunpack.c.l.b16 %v857
        %v936 = vunpack.c.l.b16 %v858
        %v937 = vunpack.c.h.b16 %v858
        %v938 = vunpack.c.l.b16 %v859
        %v939 = vunpack.c.l.b16 %v860
        %v940 = vunpack.c.h.b16 %v860
        %v941 = vunpack.c.l.b16 %v861
        %v942 = vpack.c.b16 %v897, %v894
        %v943 = vpack.c.b16 %v898, %v895
        %v944 = vpack.c.b16 %v899, %v896
        %v945 = vpack.c.b16 %v903, %v900
        %v946 = vpack.c.b16 %v904, %v901
        %v947 = vpack.c.b16 %v905, %v902
        %v948 = vpack.c.b16 %v909, %v906
        %v949 = vpack.c.b16 %v910, %v907
        %v950 = vpack.c.b16 %v911, %v908
        %v951 = vpack.c.b16 %v915, %v912
        %v952 = vpack.c.b16 %v916, %v913
        %v953 = vpack.c.b16 %v917, %v914
        %v954 = vpack.c.b16 %v921, %v918
        %v955 = vpack.c.b16 %v922, %v919
        %v956 = vpack.c.b16 %v923, %v920
        %v957 = vpack.c.b16 %v927, %v924
        %v958 = vpack.c.b16 %v928, %v925
        %v959 = vpack.c.b16 %v929, %v926
        %v960 = vpack.c.b16 %v933, %v930
        %v961 = vpack.c.b16 %v934, %v931
        %v962 = vpack.c.b16 %v935, %v932
        %v963 = vpack.c.b16 %v939, %v936
        %v964 = vpack.c.b16 %v940, %v937
        %v965 = vpack.c.b16 %v941, %v938
        %990 = vmatpush.bf16.msra.mxu0 %v963
        %991 = vmatpush.bf16.msra.mxu0 %v960
        %992 = vmatpush.bf16.msra.mxu0 %v957
        %993 = vmatpush.bf16.msra.mxu0 %v954
        %994 = vmatpush.bf16.msra.mxu0 %v951
        %995 = vmatpush.bf16.msra.mxu0 %v948
        %996 = vmatpush.bf16.msra.mxu0 %v945
        %997 = vmatpush.bf16.msra.mxu0 %v942
        %998 = vmatmul.bf16.gmra.mxu0 %v826
        %v999 = vpop.f32.mrf.mxu0
        %v1000 = vadd.f32 0.0, %v999
        %v1001 = vpop.f32.mrf.mxu0
        %v1002 = vadd.f32 0.0, %v1001
        %1003 = vmatmul.bf16.gmra.mxu0 %v827
        %v1004 = vpop.f32.mrf.mxu0
        %v1005 = vadd.f32 0.0, %v1004
        %v1006 = vpop.f32.mrf.mxu0
        %v1007 = vadd.f32 0.0, %v1006
        %1008 = vmatmul.bf16.gmra.mxu0 %v828
        %v1009 = vpop.f32.mrf.mxu0
        %v1010 = vadd.f32 0.0, %v1009
        %v1011 = vpop.f32.mrf.mxu0
        %v1012 = vadd.f32 0.0, %v1011
        %1013 = vmatmul.bf16.gmra.mxu0 %v829
        %v1014 = vpop.f32.mrf.mxu0
        %v1015 = vadd.f32 0.0, %v1014
        %v1016 = vpop.f32.mrf.mxu0
        %v1017 = vadd.f32 0.0, %v1016
        %1018 = vdwg.mxu0
        %1019 = vmatpush.bf16.msra.mxu0 %v964
        %1020 = vmatpush.bf16.msra.mxu0 %v961
        %1021 = vmatpush.bf16.msra.mxu0 %v958
        %1022 = vmatpush.bf16.msra.mxu0 %v955
        %1023 = vmatpush.bf16.msra.mxu0 %v952
        %1024 = vmatpush.bf16.msra.mxu0 %v949
        %1025 = vmatpush.bf16.msra.mxu0 %v946
        %1026 = vmatpush.bf16.msra.mxu0 %v943
        %1027 = vmatmul.bf16.gmra.mxu0 %v826
        %v1028 = vpop.f32.mrf.mxu0
        %v1029 = vadd.f32 0.0, %v1028
        %v1030 = vpop.f32.mrf.mxu0
        %v1031 = vadd.f32 0.0, %v1030
        %1032 = vmatmul.bf16.gmra.mxu0 %v827
        %v1033 = vpop.f32.mrf.mxu0
        %v1034 = vadd.f32 0.0, %v1033
        %v1035 = vpop.f32.mrf.mxu0
        %v1036 = vadd.f32 0.0, %v1035
        %1037 = vmatmul.bf16.gmra.mxu0 %v828
        %v1038 = vpop.f32.mrf.mxu0
        %v1039 = vadd.f32 0.0, %v1038
        %v1040 = vpop.f32.mrf.mxu0
        %v1041 = vadd.f32 0.0, %v1040
        %1042 = vmatmul.bf16.gmra.mxu0 %v829
        %v1043 = vpop.f32.mrf.mxu0
        %v1044 = vadd.f32 0.0, %v1043
        %v1045 = vpop.f32.mrf.mxu0
        %v1046 = vadd.f32 0.0, %v1045
        %1047 = vdwg.mxu0
        %1048 = vmatpush.bf16.msra.mxu0 %v965
        %1049 = vmatpush.bf16.msra.mxu0 %v962
        %1050 = vmatpush.bf16.msra.mxu0 %v959
        %1051 = vmatpush.bf16.msra.mxu0 %v956
        %1052 = vmatpush.bf16.msra.mxu0 %v953
        %1053 = vmatpush.bf16.msra.mxu0 %v950
        %1054 = vmatpush.bf16.msra.mxu0 %v947
        %1055 = vmatpush.bf16.msra.mxu0 %v944
        %1056 = vmatmul.bf16.gmra.mxu0 %v826
        %v1057 = vpop.f32.mrf.mxu0
        %v1058 = vadd.f32 0.0, %v1057
        %v1059 = vpop.f32.mrf.mxu0
        %v1060 = vadd.f32 0.0, %v1059
        %1061 = vmatmul.bf16.gmra.mxu0 %v827
        %v1062 = vpop.f32.mrf.mxu0
        %v1063 = vadd.f32 0.0, %v1062
        %v1064 = vpop.f32.mrf.mxu0
        %v1065 = vadd.f32 0.0, %v1064
        %1066 = vmatmul.bf16.gmra.mxu0 %v828
        %v1067 = vpop.f32.mrf.mxu0
        %v1068 = vadd.f32 0.0, %v1067
        %v1069 = vpop.f32.mrf.mxu0
        %v1070 = vadd.f32 0.0, %v1069
        %1071 = vmatmul.bf16.gmra.mxu0 %v829
        %v1072 = vpop.f32.mrf.mxu0
        %v1073 = vadd.f32 0.0, %v1072
        %v1074 = vpop.f32.mrf.mxu0
        %v1075 = vadd.f32 0.0, %v1074
        %1076 = vdwg.mxu0
        %v1077 = vpack.c.bf16 %v1002, %v1000
        %v1078 = vpack.c.bf16 %v1007, %v1005
        %v1079 = vpack.c.bf16 %v1012, %v1010
        %v1080 = vpack.c.bf16 %v1017, %v1015
        %v1081 = vpack.c.bf16 %v1031, %v1029
        %v1082 = vpack.c.bf16 %v1036, %v1034
        %v1083 = vpack.c.bf16 %v1041, %v1039
        %v1084 = vpack.c.bf16 %v1046, %v1044
        %v1085 = vpack.c.bf16 %v1060, %v1058
        %v1086 = vpack.c.bf16 %v1065, %v1063
        %v1087 = vpack.c.bf16 %v1070, %v1068
        %v1088 = vpack.c.bf16 %v1075, %v1073
        %vm1089 = vcmask 261120
        %v1091 = vsel %vm1089, %v1077, 0
        %v1094 = vsel %vm1089, %v1078, 0
        %v1097 = vsel %vm1089, %v1079, 0
        %v1100 = vsel %vm1089, %v1080, 0
        %v1103 = vsel %vm1089, %v1081, 0
        %v1106 = vsel %vm1089, %v1082, 0
        %v1109 = vsel %vm1089, %v1083, 0
        %v1112 = vsel %vm1089, %v1084, 0
        %1114 = vmatpush.bf16.xpose.msra.mxu0 0
        %1115 = vmatpush.bf16.xpose.msra.mxu0 0
        %1116 = vmatpush.bf16.xpose.msra.mxu0 0
        %1117 = vmatpush.bf16.xpose.msra.mxu0 0
        %1118 = vmatpush.bf16.xpose.msra.mxu0 %v1112
        %1119 = vmatpush.bf16.xpose.msra.mxu0 %v1109
        %1120 = vmatpush.bf16.xpose.msra.mxu0 %v1106
        %1121 = vmatpush.bf16.xpose.msra.mxu0 %v1103
        %1122 = vmatmul.bf16.gmra.mxu0 %v1091
        %v1123 = vpop.f32.mrf.mxu0
        %v1124 = vadd.f32 %v627, %v1123
        %v1125 = vpop.f32.mrf.mxu0
        %v1126 = vadd.f32 %v628, %v1125
        %1127 = vmatmul.bf16.gmra.mxu0 %v1094
        %v1128 = vpop.f32.mrf.mxu0
        %v1129 = vadd.f32 %v629, %v1128
        %v1130 = vpop.f32.mrf.mxu0
        %v1131 = vadd.f32 %v630, %v1130
        %1132 = vmatmul.bf16.gmra.mxu0 %v1097
        %v1133 = vpop.f32.mrf.mxu0
        %v1134 = vadd.f32 %v631, %v1133
        %v1135 = vpop.f32.mrf.mxu0
        %v1136 = vadd.f32 %v632, %v1135
        %1137 = vmatmul.bf16.gmra.mxu0 %v1100
        %v1138 = vpop.f32.mrf.mxu0
        %v1139 = vadd.f32 %v633, %v1138
        %v1140 = vpop.f32.mrf.mxu0
        %v1141 = vadd.f32 %v634, %v1140
        %1142 = vdwg.mxu0
        %vm1143 = vcmask 523264
        %v1144 = vsel %vm1143, %v1124, -inf
        %1145 = vmax.xlane.f32.xlu0 %v1144
        %v1146 = vpop.xlane.xlu0 %1145
        %v1147 = vsel %vm1143, %v1126, -inf
        %1148 = vmax.xlane.f32.xlu0 %v1147
        %v1149 = vpop.xlane.xlu0 %1148
        %v1150 = vsel %vm1143, %v1129, -inf
        %1151 = vmax.xlane.f32.xlu0 %v1150
        %v1152 = vpop.xlane.xlu0 %1151
        %v1153 = vsel %vm1143, %v1131, -inf
        %1154 = vmax.xlane.f32.xlu0 %v1153
        %v1155 = vpop.xlane.xlu0 %1154
        %v1156 = vsel %vm1143, %v1134, -inf
        %1157 = vmax.xlane.f32.xlu0 %v1156
        %v1158 = vpop.xlane.xlu0 %1157
        %v1159 = vsel %vm1143, %v1136, -inf
        %1160 = vmax.xlane.f32.xlu0 %v1159
        %v1161 = vpop.xlane.xlu0 %1160
        %v1162 = vsel %vm1143, %v1139, -inf
        %1163 = vmax.xlane.f32.xlu0 %v1162
        %v1164 = vpop.xlane.xlu0 %1163
        %v1165 = vsel %vm1143, %v1141, -inf
        %1166 = vmax.xlane.f32.xlu0 %v1165
        %v1167 = vpop.xlane.xlu0 %1166
        %v1168 = vsub.f32 %v1124, %v1146
        %v1169 = vsub.f32 %v1126, %v1149
        %v1170 = vsub.f32 %v1129, %v1152
        %v1171 = vsub.f32 %v1131, %v1155
        %v1172 = vsub.f32 %v1134, %v1158
        %v1173 = vsub.f32 %v1136, %v1161
        %v1174 = vsub.f32 %v1139, %v1164
        %v1175 = vsub.f32 %v1141, %v1167
        %v1176 = vmul.f32 %v1168, 1.442695
        %v1177 = vpow.pop %v1176
        %v1178 = vmul.f32 %v1169, 1.442695
        %v1179 = vpow.pop %v1178
        %v1180 = vmul.f32 %v1170, 1.442695
        %v1181 = vpow.pop %v1180
        %v1182 = vmul.f32 %v1171, 1.442695
        %v1183 = vpow.pop %v1182
        %v1184 = vmul.f32 %v1172, 1.442695
        %v1185 = vpow.pop %v1184
        %v1186 = vmul.f32 %v1173, 1.442695
        %v1187 = vpow.pop %v1186
        %v1188 = vmul.f32 %v1174, 1.442695
        %v1189 = vpow.pop %v1188
        %v1190 = vmul.f32 %v1175, 1.442695
        %v1191 = vpow.pop %v1190
        %v1192 = vsel %vm1143, %v1177, 0.0
        %1193 = vadd.xlane.f32.xlu0 %v1192
        %v1194 = vpop.xlane.xlu0 %1193
        %v1195 = vsel %vm1143, %v1179, 0.0
        %1196 = vadd.xlane.f32.xlu0 %v1195
        %v1197 = vpop.xlane.xlu0 %1196
        %v1198 = vsel %vm1143, %v1181, 0.0
        %1199 = vadd.xlane.f32.xlu0 %v1198
        %v1200 = vpop.xlane.xlu0 %1199
        %v1201 = vsel %vm1143, %v1183, 0.0
        %1202 = vadd.xlane.f32.xlu0 %v1201
        %v1203 = vpop.xlane.xlu0 %1202
        %v1204 = vsel %vm1143, %v1185, 0.0
        %1205 = vadd.xlane.f32.xlu0 %v1204
        %v1206 = vpop.xlane.xlu0 %1205
        %v1207 = vsel %vm1143, %v1187, 0.0
        %1208 = vadd.xlane.f32.xlu0 %v1207
        %v1209 = vpop.xlane.xlu0 %1208
        %v1210 = vsel %vm1143, %v1189, 0.0
        %1211 = vadd.xlane.f32.xlu0 %v1210
        %v1212 = vpop.xlane.xlu0 %1211
        %v1213 = vsel %vm1143, %v1191, 0.0
        %1214 = vadd.xlane.f32.xlu0 %v1213
        %v1215 = vpop.xlane.xlu0 %1214
        %v1216 = vrcp.pop %v1194
        %v1217 = vrcp.pop %v1197
        %v1218 = vrcp.pop %v1200
        %v1219 = vrcp.pop %v1203
        %v1220 = vrcp.pop %v1206
        %v1221 = vrcp.pop %v1209
        %v1222 = vrcp.pop %v1212
        %v1223 = vrcp.pop %v1215
        %v1224 = vmul.f32 %v1177, %v1216
        %v1225 = vmul.f32 %v1179, %v1217
        %v1226 = vmul.f32 %v1181, %v1218
        %v1227 = vmul.f32 %v1183, %v1219
        %v1228 = vmul.f32 %v1185, %v1220
        %v1229 = vmul.f32 %v1187, %v1221
        %v1230 = vmul.f32 %v1189, %v1222
        %v1231 = vmul.f32 %v1191, %v1223
        %v1232 = vpack.c.bf16 %v1225, %v1224
        %v1233 = vpack.c.bf16 %v1227, %v1226
        %v1234 = vpack.c.bf16 %v1229, %v1228
        %v1235 = vpack.c.bf16 %v1231, %v1230
        %v1237 = vsel %vm1143, %v1232, 0
        %v1240 = vsel %vm1143, %v1233, 0
        %v1243 = vsel %vm1143, %v1234, 0
        %v1246 = vsel %vm1143, %v1235, 0
        %1248 = vmatpush.bf16.msra.mxu0 0
        %1249 = vmatpush.bf16.msra.mxu0 0
        %1250 = vmatpush.bf16.msra.mxu0 0
        %1251 = vmatpush.bf16.msra.mxu0 0
        %1252 = vmatpush.bf16.msra.mxu0 %v1088
        %1253 = vmatpush.bf16.msra.mxu0 %v1087
        %1254 = vmatpush.bf16.msra.mxu0 %v1086
        %1255 = vmatpush.bf16.msra.mxu0 %v1085
        %1256 = vmatmul.bf16.gmra.mxu0 %v1237
        %v1257 = vpop.f32.mrf.mxu0
        %v1258 = vadd.f32 0.0, %v1257
        %v1259 = vpop.f32.mrf.mxu0
        %v1260 = vadd.f32 0.0, %v1259
        %1261 = vmatmul.bf16.gmra.mxu0 %v1240
        %v1262 = vpop.f32.mrf.mxu0
        %v1263 = vadd.f32 0.0, %v1262
        %v1264 = vpop.f32.mrf.mxu0
        %v1265 = vadd.f32 0.0, %v1264
        %1266 = vmatmul.bf16.gmra.mxu0 %v1243
        %v1267 = vpop.f32.mrf.mxu0
        %v1268 = vadd.f32 0.0, %v1267
        %v1269 = vpop.f32.mrf.mxu0
        %v1270 = vadd.f32 0.0, %v1269
        %1271 = vmatmul.bf16.gmra.mxu0 %v1246
        %v1272 = vpop.f32.mrf.mxu0
        %v1273 = vadd.f32 0.0, %v1272
        %v1274 = vpop.f32.mrf.mxu0
        %v1275 = vadd.f32 0.0, %v1274
        %1276 = vdwg.mxu0
        %1281 = vrot.lane.b32.xlu0 %v1077, 96
        %v1282 = vpop.permute.xlu0 %1281
        %1283 = vrot.lane.b32.xlu0 %v1078, 96
        %v1284 = vpop.permute.xlu0 %1283
        %1285 = vrot.lane.b32.xlu0 %v1079, 96
        %v1286 = vpop.permute.xlu0 %1285
        %1287 = vrot.lane.b32.xlu0 %v1080, 96
        %v1288 = vpop.permute.xlu0 %1287
        %1293 = vrot.lane.b32.xlu0 %v1081, 96
        %v1294 = vpop.permute.xlu0 %1293
        %1295 = vrot.lane.b32.xlu0 %v1082, 96
        %v1296 = vpop.permute.xlu0 %1295
        %1297 = vrot.lane.b32.xlu0 %v1083, 96
        %v1298 = vpop.permute.xlu0 %1297
        %1299 = vrot.lane.b32.xlu0 %v1084, 96
        %v1300 = vpop.permute.xlu0 %1299
        %v1302 = vsel %vm1089, %v1282, 0
        %v1305 = vsel %vm1089, %v1284, 0
        %v1308 = vsel %vm1089, %v1286, 0
        %v1311 = vsel %vm1089, %v1288, 0
        %v1314 = vsel %vm1089, %v1294, 0
        %v1317 = vsel %vm1089, %v1296, 0
        %v1320 = vsel %vm1089, %v1298, 0
        %v1323 = vsel %vm1089, %v1300, 0
        %1325 = vmatpush.bf16.xpose.msra.mxu0 0
        %1326 = vmatpush.bf16.xpose.msra.mxu0 0
        %1327 = vmatpush.bf16.xpose.msra.mxu0 0
        %1328 = vmatpush.bf16.xpose.msra.mxu0 0
        %1329 = vmatpush.bf16.xpose.msra.mxu0 %v1323
        %1330 = vmatpush.bf16.xpose.msra.mxu0 %v1320
        %1331 = vmatpush.bf16.xpose.msra.mxu0 %v1317
        %1332 = vmatpush.bf16.xpose.msra.mxu0 %v1314
        %1333 = vmatmul.bf16.gmra.mxu0 %v1302
        %v1334 = vpop.f32.mrf.mxu0
        %v1335 = vadd.f32 %v627, %v1334
        %v1336 = vpop.f32.mrf.mxu0
        %v1337 = vadd.f32 %v628, %v1336
        %1338 = vmatmul.bf16.gmra.mxu0 %v1305
        %v1339 = vpop.f32.mrf.mxu0
        %v1340 = vadd.f32 %v629, %v1339
        %v1341 = vpop.f32.mrf.mxu0
        %v1342 = vadd.f32 %v630, %v1341
        %1343 = vmatmul.bf16.gmra.mxu0 %v1308
        %v1344 = vpop.f32.mrf.mxu0
        %v1345 = vadd.f32 %v631, %v1344
        %v1346 = vpop.f32.mrf.mxu0
        %v1347 = vadd.f32 %v632, %v1346
        %1348 = vmatmul.bf16.gmra.mxu0 %v1311
        %v1349 = vpop.f32.mrf.mxu0
        %v1350 = vadd.f32 %v633, %v1349
        %v1351 = vpop.f32.mrf.mxu0
        %v1352 = vadd.f32 %v634, %v1351
        %1353 = vdwg.mxu0
        %v1354 = vsel %vm1143, %v1335, -inf
        %1355 = vmax.xlane.f32.xlu0 %v1354
        %v1356 = vpop.xlane.xlu0 %1355
        %v1357 = vsel %vm1143, %v1337, -inf
        %1358 = vmax.xlane.f32.xlu0 %v1357
        %v1359 = vpop.xlane.xlu0 %1358
        %v1360 = vsel %vm1143, %v1340, -inf
        %1361 = vmax.xlane.f32.xlu0 %v1360
        %v1362 = vpop.xlane.xlu0 %1361
        %v1363 = vsel %vm1143, %v1342, -inf
        %1364 = vmax.xlane.f32.xlu0 %v1363
        %v1365 = vpop.xlane.xlu0 %1364
        %v1366 = vsel %vm1143, %v1345, -inf
        %1367 = vmax.xlane.f32.xlu0 %v1366
        %v1368 = vpop.xlane.xlu0 %1367
        %v1369 = vsel %vm1143, %v1347, -inf
        %1370 = vmax.xlane.f32.xlu0 %v1369
        %v1371 = vpop.xlane.xlu0 %1370
        %v1372 = vsel %vm1143, %v1350, -inf
        %1373 = vmax.xlane.f32.xlu0 %v1372
        %v1374 = vpop.xlane.xlu0 %1373
        %v1375 = vsel %vm1143, %v1352, -inf
        %1376 = vmax.xlane.f32.xlu0 %v1375
        %v1377 = vpop.xlane.xlu0 %1376
        %v1378 = vsub.f32 %v1335, %v1356
        %v1379 = vsub.f32 %v1337, %v1359
        %v1380 = vsub.f32 %v1340, %v1362
        %v1381 = vsub.f32 %v1342, %v1365
        %v1382 = vsub.f32 %v1345, %v1368
        %v1383 = vsub.f32 %v1347, %v1371
        %v1384 = vsub.f32 %v1350, %v1374
        %v1385 = vsub.f32 %v1352, %v1377
        %v1386 = vmul.f32 %v1378, 1.442695
        %v1387 = vpow.pop %v1386
        %v1388 = vmul.f32 %v1379, 1.442695
        %v1389 = vpow.pop %v1388
        %v1390 = vmul.f32 %v1380, 1.442695
        %v1391 = vpow.pop %v1390
        %v1392 = vmul.f32 %v1381, 1.442695
        %v1393 = vpow.pop %v1392
        %v1394 = vmul.f32 %v1382, 1.442695
        %v1395 = vpow.pop %v1394
        %v1396 = vmul.f32 %v1383, 1.442695
        %v1397 = vpow.pop %v1396
        %v1398 = vmul.f32 %v1384, 1.442695
        %v1399 = vpow.pop %v1398
        %v1400 = vmul.f32 %v1385, 1.442695
        %v1401 = vpow.pop %v1400
        %v1402 = vsel %vm1143, %v1387, 0.0
        %1403 = vadd.xlane.f32.xlu0 %v1402
        %v1404 = vpop.xlane.xlu0 %1403
        %v1405 = vsel %vm1143, %v1389, 0.0
        %1406 = vadd.xlane.f32.xlu0 %v1405
        %v1407 = vpop.xlane.xlu0 %1406
        %v1408 = vsel %vm1143, %v1391, 0.0
        %1409 = vadd.xlane.f32.xlu0 %v1408
        %v1410 = vpop.xlane.xlu0 %1409
        %v1411 = vsel %vm1143, %v1393, 0.0
        %1412 = vadd.xlane.f32.xlu0 %v1411
        %v1413 = vpop.xlane.xlu0 %1412
        %v1414 = vsel %vm1143, %v1395, 0.0
        %1415 = vadd.xlane.f32.xlu0 %v1414
        %v1416 = vpop.xlane.xlu0 %1415
        %v1417 = vsel %vm1143, %v1397, 0.0
        %1418 = vadd.xlane.f32.xlu0 %v1417
        %v1419 = vpop.xlane.xlu0 %1418
        %v1420 = vsel %vm1143, %v1399, 0.0
        %1421 = vadd.xlane.f32.xlu0 %v1420
        %v1422 = vpop.xlane.xlu0 %1421
        %v1423 = vsel %vm1143, %v1401, 0.0
        %1424 = vadd.xlane.f32.xlu0 %v1423
        %v1425 = vpop.xlane.xlu0 %1424
        %v1426 = vrcp.pop %v1404
        %v1427 = vrcp.pop %v1407
        %v1428 = vrcp.pop %v1410
        %v1429 = vrcp.pop %v1413
        %v1430 = vrcp.pop %v1416
        %v1431 = vrcp.pop %v1419
        %v1432 = vrcp.pop %v1422
        %v1433 = vrcp.pop %v1425
        %v1434 = vmul.f32 %v1387, %v1426
        %v1435 = vmul.f32 %v1389, %v1427
        %v1436 = vmul.f32 %v1391, %v1428
        %v1437 = vmul.f32 %v1393, %v1429
        %v1438 = vmul.f32 %v1395, %v1430
        %v1439 = vmul.f32 %v1397, %v1431
        %v1440 = vmul.f32 %v1399, %v1432
        %v1441 = vmul.f32 %v1401, %v1433
        %v1442 = vpack.c.bf16 %v1435, %v1434
        %v1443 = vpack.c.bf16 %v1437, %v1436
        %v1444 = vpack.c.bf16 %v1439, %v1438
        %v1445 = vpack.c.bf16 %v1441, %v1440
        %1450 = vrot.lane.b32.xlu0 %v1085, 96
        %v1451 = vpop.permute.xlu0 %1450
        %1452 = vrot.lane.b32.xlu0 %v1086, 96
        %v1453 = vpop.permute.xlu0 %1452
        %1454 = vrot.lane.b32.xlu0 %v1087, 96
        %v1455 = vpop.permute.xlu0 %1454
        %1456 = vrot.lane.b32.xlu0 %v1088, 96
        %v1457 = vpop.permute.xlu0 %1456
        %v1463 = vsel %vm1143, %v1442, 0
        %v1466 = vsel %vm1143, %v1443, 0
        %v1469 = vsel %vm1143, %v1444, 0
        %v1472 = vsel %vm1143, %v1445, 0
        %1474 = vmatpush.bf16.msra.mxu0 0
        %1475 = vmatpush.bf16.msra.mxu0 0
        %1476 = vmatpush.bf16.msra.mxu0 0
        %1477 = vmatpush.bf16.msra.mxu0 0
        %1478 = vmatpush.bf16.msra.mxu0 %v1457
        %1479 = vmatpush.bf16.msra.mxu0 %v1455
        %1480 = vmatpush.bf16.msra.mxu0 %v1453
        %1481 = vmatpush.bf16.msra.mxu0 %v1451
        %1482 = vmatmul.bf16.gmra.mxu0 %v1463
        %v1483 = vpop.f32.mrf.mxu0
        %v1484 = vadd.f32 0.0, %v1483
        %v1485 = vpop.f32.mrf.mxu0
        %v1486 = vadd.f32 0.0, %v1485
        %1487 = vmatmul.bf16.gmra.mxu0 %v1466
        %v1488 = vpop.f32.mrf.mxu0
        %v1489 = vadd.f32 0.0, %v1488
        %v1490 = vpop.f32.mrf.mxu0
        %v1491 = vadd.f32 0.0, %v1490
        %1492 = vmatmul.bf16.gmra.mxu0 %v1469
        %v1493 = vpop.f32.mrf.mxu0
        %v1494 = vadd.f32 0.0, %v1493
        %v1495 = vpop.f32.mrf.mxu0
        %v1496 = vadd.f32 0.0, %v1495
        %1497 = vmatmul.bf16.gmra.mxu0 %v1472
        %v1498 = vpop.f32.mrf.mxu0
        %v1499 = vadd.f32 0.0, %v1498
        %v1500 = vpop.f32.mrf.mxu0
        %v1501 = vadd.f32 0.0, %v1500
        %1502 = vdwg.mxu0
        %1503 = vrot.lane.b32.xlu0 %v1077, 64
        %v1504 = vpop.permute.xlu0 %1503
        %1505 = vrot.lane.b32.xlu0 %v1078, 64
        %v1506 = vpop.permute.xlu0 %1505
        %1507 = vrot.lane.b32.xlu0 %v1079, 64
        %v1508 = vpop.permute.xlu0 %1507
        %1509 = vrot.lane.b32.xlu0 %v1080, 64
        %v1510 = vpop.permute.xlu0 %1509
        %1511 = vrot.lane.b32.xlu0 %v1081, 64
        %v1512 = vpop.permute.xlu0 %1511
        %1513 = vrot.lane.b32.xlu0 %v1082, 64
        %v1514 = vpop.permute.xlu0 %1513
        %1515 = vrot.lane.b32.xlu0 %v1083, 64
        %v1516 = vpop.permute.xlu0 %1515
        %1517 = vrot.lane.b32.xlu0 %v1084, 64
        %v1518 = vpop.permute.xlu0 %1517
        %v1520 = vsel %vm1089, %v1504, 0
        %v1523 = vsel %vm1089, %v1506, 0
        %v1526 = vsel %vm1089, %v1508, 0
        %v1529 = vsel %vm1089, %v1510, 0
        %v1532 = vsel %vm1089, %v1512, 0
        %v1535 = vsel %vm1089, %v1514, 0
        %v1538 = vsel %vm1089, %v1516, 0
        %v1541 = vsel %vm1089, %v1518, 0
        %1543 = vmatpush.bf16.xpose.msra.mxu0 0
        %1544 = vmatpush.bf16.xpose.msra.mxu0 0
        %1545 = vmatpush.bf16.xpose.msra.mxu0 0
        %1546 = vmatpush.bf16.xpose.msra.mxu0 0
        %1547 = vmatpush.bf16.xpose.msra.mxu0 %v1541
        %1548 = vmatpush.bf16.xpose.msra.mxu0 %v1538
        %1549 = vmatpush.bf16.xpose.msra.mxu0 %v1535
        %1550 = vmatpush.bf16.xpose.msra.mxu0 %v1532
        %1551 = vmatmul.bf16.gmra.mxu0 %v1520
        %v1552 = vpop.f32.mrf.mxu0
        %v1553 = vadd.f32 %v627, %v1552
        %v1554 = vpop.f32.mrf.mxu0
        %v1555 = vadd.f32 %v628, %v1554
        %1556 = vmatmul.bf16.gmra.mxu0 %v1523
        %v1557 = vpop.f32.mrf.mxu0
        %v1558 = vadd.f32 %v629, %v1557
        %v1559 = vpop.f32.mrf.mxu0
        %v1560 = vadd.f32 %v630, %v1559
        %1561 = vmatmul.bf16.gmra.mxu0 %v1526
        %v1562 = vpop.f32.mrf.mxu0
        %v1563 = vadd.f32 %v631, %v1562
        %v1564 = vpop.f32.mrf.mxu0
        %v1565 = vadd.f32 %v632, %v1564
        %1566 = vmatmul.bf16.gmra.mxu0 %v1529
        %v1567 = vpop.f32.mrf.mxu0
        %v1568 = vadd.f32 %v633, %v1567
        %v1569 = vpop.f32.mrf.mxu0
        %v1570 = vadd.f32 %v634, %v1569
        %1571 = vdwg.mxu0
        %v1572 = vsel %vm1143, %v1553, -inf
        %1573 = vmax.xlane.f32.xlu0 %v1572
        %v1574 = vpop.xlane.xlu0 %1573
        %v1575 = vsel %vm1143, %v1555, -inf
        %1576 = vmax.xlane.f32.xlu0 %v1575
        %v1577 = vpop.xlane.xlu0 %1576
        %v1578 = vsel %vm1143, %v1558, -inf
        %1579 = vmax.xlane.f32.xlu0 %v1578
        %v1580 = vpop.xlane.xlu0 %1579
        %v1581 = vsel %vm1143, %v1560, -inf
        %1582 = vmax.xlane.f32.xlu0 %v1581
        %v1583 = vpop.xlane.xlu0 %1582
        %v1584 = vsel %vm1143, %v1563, -inf
        %1585 = vmax.xlane.f32.xlu0 %v1584
        %v1586 = vpop.xlane.xlu0 %1585
        %v1587 = vsel %vm1143, %v1565, -inf
        %1588 = vmax.xlane.f32.xlu0 %v1587
        %v1589 = vpop.xlane.xlu0 %1588
        %v1590 = vsel %vm1143, %v1568, -inf
        %1591 = vmax.xlane.f32.xlu0 %v1590
        %v1592 = vpop.xlane.xlu0 %1591
        %v1593 = vsel %vm1143, %v1570, -inf
        %1594 = vmax.xlane.f32.xlu0 %v1593
        %v1595 = vpop.xlane.xlu0 %1594
        %v1596 = vsub.f32 %v1553, %v1574
        %v1597 = vsub.f32 %v1555, %v1577
        %v1598 = vsub.f32 %v1558, %v1580
        %v1599 = vsub.f32 %v1560, %v1583
        %v1600 = vsub.f32 %v1563, %v1586
        %v1601 = vsub.f32 %v1565, %v1589
        %v1602 = vsub.f32 %v1568, %v1592
        %v1603 = vsub.f32 %v1570, %v1595
        %v1604 = vmul.f32 %v1596, 1.442695
        %v1605 = vpow.pop %v1604
        %v1606 = vmul.f32 %v1597, 1.442695
        %v1607 = vpow.pop %v1606
        %v1608 = vmul.f32 %v1598, 1.442695
        %v1609 = vpow.pop %v1608
        %v1610 = vmul.f32 %v1599, 1.442695
        %v1611 = vpow.pop %v1610
        %v1612 = vmul.f32 %v1600, 1.442695
        %v1613 = vpow.pop %v1612
        %v1614 = vmul.f32 %v1601, 1.442695
        %v1615 = vpow.pop %v1614
        %v1616 = vmul.f32 %v1602, 1.442695
        %v1617 = vpow.pop %v1616
        %v1618 = vmul.f32 %v1603, 1.442695
        %v1619 = vpow.pop %v1618
        %v1620 = vsel %vm1143, %v1605, 0.0
        %1621 = vadd.xlane.f32.xlu0 %v1620
        %v1622 = vpop.xlane.xlu0 %1621
        %v1623 = vsel %vm1143, %v1607, 0.0
        %1624 = vadd.xlane.f32.xlu0 %v1623
        %v1625 = vpop.xlane.xlu0 %1624
        %v1626 = vsel %vm1143, %v1609, 0.0
        %1627 = vadd.xlane.f32.xlu0 %v1626
        %v1628 = vpop.xlane.xlu0 %1627
        %v1629 = vsel %vm1143, %v1611, 0.0
        %1630 = vadd.xlane.f32.xlu0 %v1629
        %v1631 = vpop.xlane.xlu0 %1630
        %v1632 = vsel %vm1143, %v1613, 0.0
        %1633 = vadd.xlane.f32.xlu0 %v1632
        %v1634 = vpop.xlane.xlu0 %1633
        %v1635 = vsel %vm1143, %v1615, 0.0
        %1636 = vadd.xlane.f32.xlu0 %v1635
        %v1637 = vpop.xlane.xlu0 %1636
        %v1638 = vsel %vm1143, %v1617, 0.0
        %1639 = vadd.xlane.f32.xlu0 %v1638
        %v1640 = vpop.xlane.xlu0 %1639
        %v1641 = vsel %vm1143, %v1619, 0.0
        %1642 = vadd.xlane.f32.xlu0 %v1641
        %v1643 = vpop.xlane.xlu0 %1642
        %v1644 = vrcp.pop %v1622
        %v1645 = vrcp.pop %v1625
        %v1646 = vrcp.pop %v1628
        %v1647 = vrcp.pop %v1631
        %v1648 = vrcp.pop %v1634
        %v1649 = vrcp.pop %v1637
        %v1650 = vrcp.pop %v1640
        %v1651 = vrcp.pop %v1643
        %v1652 = vmul.f32 %v1605, %v1644
        %v1653 = vmul.f32 %v1607, %v1645
        %v1654 = vmul.f32 %v1609, %v1646
        %v1655 = vmul.f32 %v1611, %v1647
        %v1656 = vmul.f32 %v1613, %v1648
        %v1657 = vmul.f32 %v1615, %v1649
        %v1658 = vmul.f32 %v1617, %v1650
        %v1659 = vmul.f32 %v1619, %v1651
        %v1660 = vpack.c.bf16 %v1653, %v1652
        %v1661 = vpack.c.bf16 %v1655, %v1654
        %v1662 = vpack.c.bf16 %v1657, %v1656
        %v1663 = vpack.c.bf16 %v1659, %v1658
        %1664 = vrot.lane.b32.xlu0 %v1085, 64
        %v1665 = vpop.permute.xlu0 %1664
        %1666 = vrot.lane.b32.xlu0 %v1086, 64
        %v1667 = vpop.permute.xlu0 %1666
        %1668 = vrot.lane.b32.xlu0 %v1087, 64
        %v1669 = vpop.permute.xlu0 %1668
        %1670 = vrot.lane.b32.xlu0 %v1088, 64
        %v1671 = vpop.permute.xlu0 %1670
        %v1677 = vsel %vm1143, %v1660, 0
        %v1680 = vsel %vm1143, %v1661, 0
        %v1683 = vsel %vm1143, %v1662, 0
        %v1686 = vsel %vm1143, %v1663, 0
        %1688 = vmatpush.bf16.msra.mxu0 0
        %1689 = vmatpush.bf16.msra.mxu0 0
        %1690 = vmatpush.bf16.msra.mxu0 0
        %1691 = vmatpush.bf16.msra.mxu0 0
        %1692 = vmatpush.bf16.msra.mxu0 %v1671
        %1693 = vmatpush.bf16.msra.mxu0 %v1669
        %1694 = vmatpush.bf16.msra.mxu0 %v1667
        %1695 = vmatpush.bf16.msra.mxu0 %v1665
        %1696 = vmatmul.bf16.gmra.mxu0 %v1677
        %v1697 = vpop.f32.mrf.mxu0
        %v1698 = vadd.f32 0.0, %v1697
        %v1699 = vpop.f32.mrf.mxu0
        %v1700 = vadd.f32 0.0, %v1699
        %1701 = vmatmul.bf16.gmra.mxu0 %v1680
        %v1702 = vpop.f32.mrf.mxu0
        %v1703 = vadd.f32 0.0, %v1702
        %v1704 = vpop.f32.mrf.mxu0
        %v1705 = vadd.f32 0.0, %v1704
        %1706 = vmatmul.bf16.gmra.mxu0 %v1683
        %v1707 = vpop.f32.mrf.mxu0
        %v1708 = vadd.f32 0.0, %v1707
        %v1709 = vpop.f32.mrf.mxu0
        %v1710 = vadd.f32 0.0, %v1709
        %1711 = vmatmul.bf16.gmra.mxu0 %v1686
        %v1712 = vpop.f32.mrf.mxu0
        %v1713 = vadd.f32 0.0, %v1712
        %v1714 = vpop.f32.mrf.mxu0
        %v1715 = vadd.f32 0.0, %v1714
        %1716 = vdwg.mxu0
        %1717 = vrot.lane.b32.xlu0 %v1077, 32
        %v1718 = vpop.permute.xlu0 %1717
        %1719 = vrot.lane.b32.xlu0 %v1078, 32
        %v1720 = vpop.permute.xlu0 %1719
        %1721 = vrot.lane.b32.xlu0 %v1079, 32
        %v1722 = vpop.permute.xlu0 %1721
        %1723 = vrot.lane.b32.xlu0 %v1080, 32
        %v1724 = vpop.permute.xlu0 %1723
        %1725 = vrot.lane.b32.xlu0 %v1081, 32
        %v1726 = vpop.permute.xlu0 %1725
        %1727 = vrot.lane.b32.xlu0 %v1082, 32
        %v1728 = vpop.permute.xlu0 %1727
        %1729 = vrot.lane.b32.xlu0 %v1083, 32
        %v1730 = vpop.permute.xlu0 %1729
        %1731 = vrot.lane.b32.xlu0 %v1084, 32
        %v1732 = vpop.permute.xlu0 %1731
        %v1734 = vsel %vm1089, %v1718, 0
        %v1737 = vsel %vm1089, %v1720, 0
        %v1740 = vsel %vm1089, %v1722, 0
        %v1743 = vsel %vm1089, %v1724, 0
        %v1746 = vsel %vm1089, %v1726, 0
        %v1749 = vsel %vm1089, %v1728, 0
        %v1752 = vsel %vm1089, %v1730, 0
        %v1755 = vsel %vm1089, %v1732, 0
        %1757 = vmatpush.bf16.xpose.msra.mxu0 0
        %1758 = vmatpush.bf16.xpose.msra.mxu0 0
        %1759 = vmatpush.bf16.xpose.msra.mxu0 0
        %1760 = vmatpush.bf16.xpose.msra.mxu0 0
        %1761 = vmatpush.bf16.xpose.msra.mxu0 %v1755
        %1762 = vmatpush.bf16.xpose.msra.mxu0 %v1752
        %1763 = vmatpush.bf16.xpose.msra.mxu0 %v1749
        %1764 = vmatpush.bf16.xpose.msra.mxu0 %v1746
        %1765 = vmatmul.bf16.gmra.mxu0 %v1734
        %v1766 = vpop.f32.mrf.mxu0
        %v1767 = vadd.f32 %v627, %v1766
        %v1768 = vpop.f32.mrf.mxu0
        %v1769 = vadd.f32 %v628, %v1768
        %1770 = vmatmul.bf16.gmra.mxu0 %v1737
        %v1771 = vpop.f32.mrf.mxu0
        %v1772 = vadd.f32 %v629, %v1771
        %v1773 = vpop.f32.mrf.mxu0
        %v1774 = vadd.f32 %v630, %v1773
        %1775 = vmatmul.bf16.gmra.mxu0 %v1740
        %v1776 = vpop.f32.mrf.mxu0
        %v1777 = vadd.f32 %v631, %v1776
        %v1778 = vpop.f32.mrf.mxu0
        %v1779 = vadd.f32 %v632, %v1778
        %1780 = vmatmul.bf16.gmra.mxu0 %v1743
        %v1781 = vpop.f32.mrf.mxu0
        %v1782 = vadd.f32 %v633, %v1781
        %v1783 = vpop.f32.mrf.mxu0
        %v1784 = vadd.f32 %v634, %v1783
        %1785 = vdwg.mxu0
        %v1786 = vsel %vm1143, %v1767, -inf
        %1787 = vmax.xlane.f32.xlu0 %v1786
        %v1788 = vpop.xlane.xlu0 %1787
        %v1789 = vsel %vm1143, %v1769, -inf
        %1790 = vmax.xlane.f32.xlu0 %v1789
        %v1791 = vpop.xlane.xlu0 %1790
        %v1792 = vsel %vm1143, %v1772, -inf
        %1793 = vmax.xlane.f32.xlu0 %v1792
        %v1794 = vpop.xlane.xlu0 %1793
        %v1795 = vsel %vm1143, %v1774, -inf
        %1796 = vmax.xlane.f32.xlu0 %v1795
        %v1797 = vpop.xlane.xlu0 %1796
        %v1798 = vsel %vm1143, %v1777, -inf
        %1799 = vmax.xlane.f32.xlu0 %v1798
        %v1800 = vpop.xlane.xlu0 %1799
        %v1801 = vsel %vm1143, %v1779, -inf
        %1802 = vmax.xlane.f32.xlu0 %v1801
        %v1803 = vpop.xlane.xlu0 %1802
        %v1804 = vsel %vm1143, %v1782, -inf
        %1805 = vmax.xlane.f32.xlu0 %v1804
        %v1806 = vpop.xlane.xlu0 %1805
        %v1807 = vsel %vm1143, %v1784, -inf
        %1808 = vmax.xlane.f32.xlu0 %v1807
        %v1809 = vpop.xlane.xlu0 %1808
        %v1810 = vsub.f32 %v1767, %v1788
        %v1811 = vsub.f32 %v1769, %v1791
        %v1812 = vsub.f32 %v1772, %v1794
        %v1813 = vsub.f32 %v1774, %v1797
        %v1814 = vsub.f32 %v1777, %v1800
        %v1815 = vsub.f32 %v1779, %v1803
        %v1816 = vsub.f32 %v1782, %v1806
        %v1817 = vsub.f32 %v1784, %v1809
        %v1818 = vmul.f32 %v1810, 1.442695
        %v1819 = vpow.pop %v1818
        %v1820 = vmul.f32 %v1811, 1.442695
        %v1821 = vpow.pop %v1820
        %v1822 = vmul.f32 %v1812, 1.442695
        %v1823 = vpow.pop %v1822
        %v1824 = vmul.f32 %v1813, 1.442695
        %v1825 = vpow.pop %v1824
        %v1826 = vmul.f32 %v1814, 1.442695
        %v1827 = vpow.pop %v1826
        %v1828 = vmul.f32 %v1815, 1.442695
        %v1829 = vpow.pop %v1828
        %v1830 = vmul.f32 %v1816, 1.442695
        %v1831 = vpow.pop %v1830
        %v1832 = vmul.f32 %v1817, 1.442695
        %v1833 = vpow.pop %v1832
        %v1834 = vsel %vm1143, %v1819, 0.0
        %1835 = vadd.xlane.f32.xlu0 %v1834
        %v1836 = vpop.xlane.xlu0 %1835
        %v1837 = vsel %vm1143, %v1821, 0.0
        %1838 = vadd.xlane.f32.xlu0 %v1837
        %v1839 = vpop.xlane.xlu0 %1838
        %v1840 = vsel %vm1143, %v1823, 0.0
        %1841 = vadd.xlane.f32.xlu0 %v1840
        %v1842 = vpop.xlane.xlu0 %1841
        %v1843 = vsel %vm1143, %v1825, 0.0
        %1844 = vadd.xlane.f32.xlu0 %v1843
        %v1845 = vpop.xlane.xlu0 %1844
        %v1846 = vsel %vm1143, %v1827, 0.0
        %1847 = vadd.xlane.f32.xlu0 %v1846
        %v1848 = vpop.xlane.xlu0 %1847
        %v1849 = vsel %vm1143, %v1829, 0.0
        %1850 = vadd.xlane.f32.xlu0 %v1849
        %v1851 = vpop.xlane.xlu0 %1850
        %v1852 = vsel %vm1143, %v1831, 0.0
        %1853 = vadd.xlane.f32.xlu0 %v1852
        %v1854 = vpop.xlane.xlu0 %1853
        %v1855 = vsel %vm1143, %v1833, 0.0
        %1856 = vadd.xlane.f32.xlu0 %v1855
        %v1857 = vpop.xlane.xlu0 %1856
        %v1858 = vrcp.pop %v1836
        %v1859 = vrcp.pop %v1839
        %v1860 = vrcp.pop %v1842
        %v1861 = vrcp.pop %v1845
        %v1862 = vrcp.pop %v1848
        %v1863 = vrcp.pop %v1851
        %v1864 = vrcp.pop %v1854
        %v1865 = vrcp.pop %v1857
        %v1866 = vmul.f32 %v1819, %v1858
        %v1867 = vmul.f32 %v1821, %v1859
        %v1868 = vmul.f32 %v1823, %v1860
        %v1869 = vmul.f32 %v1825, %v1861
        %v1870 = vmul.f32 %v1827, %v1862
        %v1871 = vmul.f32 %v1829, %v1863
        %v1872 = vmul.f32 %v1831, %v1864
        %v1873 = vmul.f32 %v1833, %v1865
        %v1874 = vpack.c.bf16 %v1867, %v1866
        %v1875 = vpack.c.bf16 %v1869, %v1868
        %v1876 = vpack.c.bf16 %v1871, %v1870
        %v1877 = vpack.c.bf16 %v1873, %v1872
        %1878 = vrot.lane.b32.xlu0 %v1085, 32
        %v1879 = vpop.permute.xlu0 %1878
        %1880 = vrot.lane.b32.xlu0 %v1086, 32
        %v1881 = vpop.permute.xlu0 %1880
        %1882 = vrot.lane.b32.xlu0 %v1087, 32
        %v1883 = vpop.permute.xlu0 %1882
        %1884 = vrot.lane.b32.xlu0 %v1088, 32
        %v1885 = vpop.permute.xlu0 %1884
        %v1891 = vsel %vm1143, %v1874, 0
        %v1894 = vsel %vm1143, %v1875, 0
        %v1897 = vsel %vm1143, %v1876, 0
        %v1900 = vsel %vm1143, %v1877, 0
        %1902 = vmatpush.bf16.msra.mxu0 0
        %1903 = vmatpush.bf16.msra.mxu0 0
        %1904 = vmatpush.bf16.msra.mxu0 0
        %1905 = vmatpush.bf16.msra.mxu0 0
        %1906 = vmatpush.bf16.msra.mxu0 %v1885
        %1907 = vmatpush.bf16.msra.mxu0 %v1883
        %1908 = vmatpush.bf16.msra.mxu0 %v1881
        %1909 = vmatpush.bf16.msra.mxu0 %v1879
        %1910 = vmatmul.bf16.gmra.mxu0 %v1891
        %v1911 = vpop.f32.mrf.mxu0
        %v1912 = vadd.f32 0.0, %v1911
        %v1913 = vpop.f32.mrf.mxu0
        %v1914 = vadd.f32 0.0, %v1913
        %1915 = vmatmul.bf16.gmra.mxu0 %v1894
        %v1916 = vpop.f32.mrf.mxu0
        %v1917 = vadd.f32 0.0, %v1916
        %v1918 = vpop.f32.mrf.mxu0
        %v1919 = vadd.f32 0.0, %v1918
        %1920 = vmatmul.bf16.gmra.mxu0 %v1897
        %v1921 = vpop.f32.mrf.mxu0
        %v1922 = vadd.f32 0.0, %v1921
        %v1923 = vpop.f32.mrf.mxu0
        %v1924 = vadd.f32 0.0, %v1923
        %1925 = vmatmul.bf16.gmra.mxu0 %v1900
        %v1926 = vpop.f32.mrf.mxu0
        %v1927 = vadd.f32 0.0, %v1926
        %v1928 = vpop.f32.mrf.mxu0
        %v1929 = vadd.f32 0.0, %v1928
        %1930 = vdwg.mxu0
        %1939 = vrot.lane.b32.xlu0 %v1484, 32
        %v1940 = vpop.permute.xlu0 %1939
        %1941 = vrot.lane.b32.xlu0 %v1486, 32
        %v1942 = vpop.permute.xlu0 %1941
        %1943 = vrot.lane.b32.xlu0 %v1489, 32
        %v1944 = vpop.permute.xlu0 %1943
        %1945 = vrot.lane.b32.xlu0 %v1491, 32
        %v1946 = vpop.permute.xlu0 %1945
        %1947 = vrot.lane.b32.xlu0 %v1494, 32
        %v1948 = vpop.permute.xlu0 %1947
        %1949 = vrot.lane.b32.xlu0 %v1496, 32
        %v1950 = vpop.permute.xlu0 %1949
        %1951 = vrot.lane.b32.xlu0 %v1499, 32
        %v1952 = vpop.permute.xlu0 %1951
        %1953 = vrot.lane.b32.xlu0 %v1501, 32
        %v1954 = vpop.permute.xlu0 %1953
        %1971 = vrot.lane.b32.xlu0 %v1698, 64
        %v1972 = vpop.permute.xlu0 %1971
        %1973 = vrot.lane.b32.xlu0 %v1700, 64
        %v1974 = vpop.permute.xlu0 %1973
        %1975 = vrot.lane.b32.xlu0 %v1703, 64
        %v1976 = vpop.permute.xlu0 %1975
        %1977 = vrot.lane.b32.xlu0 %v1705, 64
        %v1978 = vpop.permute.xlu0 %1977
        %1979 = vrot.lane.b32.xlu0 %v1708, 64
        %v1980 = vpop.permute.xlu0 %1979
        %1981 = vrot.lane.b32.xlu0 %v1710, 64
        %v1982 = vpop.permute.xlu0 %1981
        %1983 = vrot.lane.b32.xlu0 %v1713, 64
        %v1984 = vpop.permute.xlu0 %1983
        %1985 = vrot.lane.b32.xlu0 %v1715, 64
        %v1986 = vpop.permute.xlu0 %1985
        %2003 = vrot.lane.b32.xlu0 %v1912, 96
        %v2004 = vpop.permute.xlu0 %2003
        %2005 = vrot.lane.b32.xlu0 %v1914, 96
        %v2006 = vpop.permute.xlu0 %2005
        %2007 = vrot.lane.b32.xlu0 %v1917, 96
        %v2008 = vpop.permute.xlu0 %2007
        %2009 = vrot.lane.b32.xlu0 %v1919, 96
        %v2010 = vpop.permute.xlu0 %2009
        %2011 = vrot.lane.b32.xlu0 %v1922, 96
        %v2012 = vpop.permute.xlu0 %2011
        %2013 = vrot.lane.b32.xlu0 %v1924, 96
        %v2014 = vpop.permute.xlu0 %2013
        %2015 = vrot.lane.b32.xlu0 %v1927, 96
        %v2016 = vpop.permute.xlu0 %2015
        %2017 = vrot.lane.b32.xlu0 %v1929, 96
        %v2018 = vpop.permute.xlu0 %2017
        %v2027 = vsel %vm1089, %v1258, %v1940
        %v2028 = vsel %vm1089, %v1260, %v1942
        %v2029 = vsel %vm1089, %v1263, %v1944
        %v2030 = vsel %vm1089, %v1265, %v1946
        %v2031 = vsel %vm1089, %v1268, %v1948
        %v2032 = vsel %vm1089, %v1270, %v1950
        %v2033 = vsel %vm1089, %v1273, %v1952
        %v2034 = vsel %vm1089, %v1275, %v1954
        %v2035 = vsel %vm1143, %v2027, %v1972
        %v2036 = vsel %vm1143, %v2028, %v1974
        %v2037 = vsel %vm1143, %v2029, %v1976
        %v2038 = vsel %vm1143, %v2030, %v1978
        %v2039 = vsel %vm1143, %v2031, %v1980
        %v2040 = vsel %vm1143, %v2032, %v1982
        %v2041 = vsel %vm1143, %v2033, %v1984
        %v2042 = vsel %vm1143, %v2034, %v1986
        %vm2043 = vcmask 785408
        %v2044 = vsel %vm2043, %v2035, %v2004
        %v2045 = vsel %vm2043, %v2036, %v2006
        %v2046 = vsel %vm2043, %v2037, %v2008
        %v2047 = vsel %vm2043, %v2038, %v2010
        %v2048 = vsel %vm2043, %v2039, %v2012
        %v2049 = vsel %vm2043, %v2040, %v2014
        %v2050 = vsel %vm2043, %v2041, %v2016
        %v2051 = vsel %vm2043, %v2042, %v2018
        %v2052 = vpack.c.bf16 %v2045, %v2044
        %v2053 = vpack.c.bf16 %v2047, %v2046
        %v2054 = vpack.c.bf16 %v2049, %v2048
        %v2055 = vpack.c.bf16 %v2051, %v2050
        %v2056 = vld [vmem:[#allocation2] sm:$0xf]
        %v2057 = vld [vmem:[#allocation2 + $0x4] sm:$0xf]
        %v2058 = vld [vmem:[#allocation2 + $0x8] sm:$0xf]
        %v2059 = vld [vmem:[#allocation2 + $0xc] sm:$0xf]
        %v2060 = vld [vmem:[#allocation2 + $0x10] sm:$0xf]
        %v2061 = vld [vmem:[#allocation2 + $0x14] sm:$0xf]
        %v2062 = vld [vmem:[#allocation2 + $0x18] sm:$0xf]
        %v2063 = vld [vmem:[#allocation2 + $0x1c] sm:$0xf]
        %v2064 = vld [vmem:[#allocation2 + $0x20] sm:$0xf]
        %v2065 = vld [vmem:[#allocation2 + $0x24] sm:$0xf]
        %v2066 = vld [vmem:[#allocation2 + $0x28] sm:$0xf]
        %v2067 = vld [vmem:[#allocation2 + $0x2c] sm:$0xf]
        %v2068 = vld [vmem:[#allocation2 + $0x30] sm:$0xf]
        %v2069 = vld [vmem:[#allocation2 + $0x34] sm:$0xf]
        %v2070 = vld [vmem:[#allocation2 + $0x38] sm:$0xf]
        %v2071 = vld [vmem:[#allocation2 + $0x3c] sm:$0xf]
        %v2072 = vld [vmem:[%s5] sm:$0x1]
        %v2074 = vperm.slane %v2072, 0
        %v2092 = vunpack.c.l.b16 %v2056
        %v2093 = vunpack.c.l.b16 %v2057
        %v2094 = vunpack.c.l.b16 %v2058
        %v2095 = vunpack.c.l.b16 %v2059
        %v2096 = vunpack.c.l.b16 %v2060
        %v2097 = vunpack.c.l.b16 %v2061
        %v2098 = vunpack.c.l.b16 %v2062
        %v2099 = vunpack.c.l.b16 %v2063
        %v2100 = vunpack.c.l.b16 %v2064
        %v2101 = vunpack.c.l.b16 %v2065
        %v2102 = vunpack.c.l.b16 %v2066
        %v2103 = vunpack.c.l.b16 %v2067
        %v2104 = vunpack.c.l.b16 %v2068
        %v2105 = vunpack.c.l.b16 %v2069
        %v2106 = vunpack.c.l.b16 %v2070
        %v2107 = vunpack.c.l.b16 %v2071
        %v2108 = vpack.c.b16 %v2093, %v2092
        %v2109 = vpack.c.b16 %v2095, %v2094
        %v2110 = vpack.c.b16 %v2097, %v2096
        %v2111 = vpack.c.b16 %v2099, %v2098
        %v2112 = vpack.c.b16 %v2101, %v2100
        %v2113 = vpack.c.b16 %v2103, %v2102
        %v2114 = vpack.c.b16 %v2105, %v2104
        %v2115 = vpack.c.b16 %v2107, %v2106
        %2124 = vmatpush.bf16.msra.mxu0 %v2115
        %2125 = vmatpush.bf16.msra.mxu0 %v2114
        %2126 = vmatpush.bf16.msra.mxu0 %v2113
        %2127 = vmatpush.bf16.msra.mxu0 %v2112
        %2128 = vmatpush.bf16.msra.mxu0 %v2111
        %2129 = vmatpush.bf16.msra.mxu0 %v2110
        %2130 = vmatpush.bf16.msra.mxu0 %v2109
        %2131 = vmatpush.bf16.msra.mxu0 %v2108
        %2132 = vmatmul.bf16.gmra.mxu0 %v2052
        %v2133 = vpop.f32.mrf.mxu0
        %v2134 = vadd.f32 %v2074, %v2133
        %v2135 = vpop.f32.mrf.mxu0
        %v2136 = vadd.f32 %v2074, %v2135
        %2137 = vmatmul.bf16.gmra.mxu0 %v2053
        %v2138 = vpop.f32.mrf.mxu0
        %v2139 = vadd.f32 %v2074, %v2138
        %v2140 = vpop.f32.mrf.mxu0
        %v2141 = vadd.f32 %v2074, %v2140
        %2142 = vmatmul.bf16.gmra.mxu0 %v2054
        %v2143 = vpop.f32.mrf.mxu0
        %v2144 = vadd.f32 %v2074, %v2143
        %v2145 = vpop.f32.mrf.mxu0
        %v2146 = vadd.f32 %v2074, %v2145
        %2147 = vmatmul.bf16.gmra.mxu0 %v2055
        %v2148 = vpop.f32.mrf.mxu0
        %v2149 = vadd.f32 %v2074, %v2148
        %v2150 = vpop.f32.mrf.mxu0
        %v2151 = vadd.f32 %v2074, %v2150
        %2152 = vdwg.mxu0
        %v2153 = vadd.f32 %v600, %v2134
        %v2154 = vadd.f32 %v601, %v2136
        %v2155 = vadd.f32 %v602, %v2139
        %v2156 = vadd.f32 %v603, %v2141
        %v2157 = vadd.f32 %v604, %v2144
        %v2158 = vadd.f32 %v605, %v2146
        %v2159 = vadd.f32 %v606, %v2149
        %v2160 = vadd.f32 %v607, %v2151
        %v2161 = vld [vmem:[%s6] sm:$0x1]
        %v2162 = vld [vmem:[%s7] sm:$0x1]
        %2163 = vadd.xlane.f32.xlu0 %v2153
        %v2164 = vpop.xlane.xlu0 %2163
        %2165 = vadd.xlane.f32.xlu0 %v2154
        %v2166 = vpop.xlane.xlu0 %2165
        %2167 = vadd.xlane.f32.xlu0 %v2155
        %v2168 = vpop.xlane.xlu0 %2167
        %2169 = vadd.xlane.f32.xlu0 %v2156
        %v2170 = vpop.xlane.xlu0 %2169
        %2171 = vadd.xlane.f32.xlu0 %v2157
        %v2172 = vpop.xlane.xlu0 %2171
        %2173 = vadd.xlane.f32.xlu0 %v2158
        %v2174 = vpop.xlane.xlu0 %2173
        %2175 = vadd.xlane.f32.xlu0 %v2159
        %v2176 = vpop.xlane.xlu0 %2175
        %2177 = vadd.xlane.f32.xlu0 %v2160
        %v2178 = vpop.xlane.xlu0 %2177
        %v2179 = vmul.f32 %v2164, %v659
        %v2180 = vmul.f32 %v2166, %v659
        %v2181 = vmul.f32 %v2168, %v659
        %v2182 = vmul.f32 %v2170, %v659
        %v2183 = vmul.f32 %v2172, %v659
        %v2184 = vmul.f32 %v2174, %v659
        %v2185 = vmul.f32 %v2176, %v659
        %v2186 = vmul.f32 %v2178, %v659
        %v2187 = vsub.f32 %v2153, %v2179
        %v2188 = vsub.f32 %v2154, %v2180
        %v2189 = vsub.f32 %v2155, %v2181
        %v2190 = vsub.f32 %v2156, %v2182
        %v2191 = vsub.f32 %v2157, %v2183
        %v2192 = vsub.f32 %v2158, %v2184
        %v2193 = vsub.f32 %v2159, %v2185
        %v2194 = vsub.f32 %v2160, %v2186
        %v2195 = vmul.f32 %v2187, %v2187
        %v2196 = vmul.f32 %v2188, %v2188
        %v2197 = vmul.f32 %v2189, %v2189
        %v2198 = vmul.f32 %v2190, %v2190
        %v2199 = vmul.f32 %v2191, %v2191
        %v2200 = vmul.f32 %v2192, %v2192
        %v2201 = vmul.f32 %v2193, %v2193
        %v2202 = vmul.f32 %v2194, %v2194
        %2203 = vadd.xlane.f32.xlu0 %v2195
        %v2204 = vpop.xlane.xlu0 %2203
        %2205 = vadd.xlane.f32.xlu0 %v2196
        %v2206 = vpop.xlane.xlu0 %2205
        %2207 = vadd.xlane.f32.xlu0 %v2197
        %v2208 = vpop.xlane.xlu0 %2207
        %2209 = vadd.xlane.f32.xlu0 %v2198
        %v2210 = vpop.xlane.xlu0 %2209
        %2211 = vadd.xlane.f32.xlu0 %v2199
        %v2212 = vpop.xlane.xlu0 %2211
        %2213 = vadd.xlane.f32.xlu0 %v2200
        %v2214 = vpop.xlane.xlu0 %2213
        %2215 = vadd.xlane.f32.xlu0 %v2201
        %v2216 = vpop.xlane.xlu0 %2215
        %2217 = vadd.xlane.f32.xlu0 %v2202
        %v2218 = vpop.xlane.xlu0 %2217
        %v2219 = vmul.f32 %v2204, %v659
        %v2220 = vmul.f32 %v2206, %v659
        %v2221 = vmul.f32 %v2208, %v659
        %v2222 = vmul.f32 %v2210, %v659
        %v2223 = vmul.f32 %v2212, %v659
        %v2224 = vmul.f32 %v2214, %v659
        %v2225 = vmul.f32 %v2216, %v659
        %v2226 = vmul.f32 %v2218, %v659
        %v2227 = vadd.f32 %v2219, 1e-05
        %v2228 = vadd.f32 %v2220, 1e-05
        %v2229 = vadd.f32 %v2221, 1e-05
        %v2230 = vadd.f32 %v2222, 1e-05
        %v2231 = vadd.f32 %v2223, 1e-05
        %v2232 = vadd.f32 %v2224, 1e-05
        %v2233 = vadd.f32 %v2225, 1e-05
        %v2234 = vadd.f32 %v2226, 1e-05
        %v2235 = vrsqrt.pop %v2227
        %v2236 = vmul.f32 %v2235, %v2227
        %v2237 = vmul.f32 %v2236, %v2235
        %v2238 = vmul.f32 0.5, %v2237
        %v2239 = vsub.f32 1.5, %v2238
        %v2240 = vmul.f32 %v2235, %v2239
        %vm2241 = vweird.f32 %v2227
        %vm2242 = vweird.f32 %v2235
        %vm2243 = vmor %vm2241, %vm2242
        %v2244 = vsel %vm2243, %v2235, %v2240
        %v2245 = vrsqrt.pop %v2228
        %v2246 = vmul.f32 %v2245, %v2228
        %v2247 = vmul.f32 %v2246, %v2245
        %v2248 = vmul.f32 0.5, %v2247
        %v2249 = vsub.f32 1.5, %v2248
        %v2250 = vmul.f32 %v2245, %v2249
        %vm2251 = vweird.f32 %v2228
        %vm2252 = vweird.f32 %v2245
        %vm2253 = vmor %vm2251, %vm2252
        %v2254 = vsel %vm2253, %v2245, %v2250
        %v2255 = vrsqrt.pop %v2229
        %v2256 = vmul.f32 %v2255, %v2229
        %v2257 = vmul.f32 %v2256, %v2255
        %v2258 = vmul.f32 0.5, %v2257
        %v2259 = vsub.f32 1.5, %v2258
        %v2260 = vmul.f32 %v2255, %v2259
        %vm2261 = vweird.f32 %v2229
        %vm2262 = vweird.f32 %v2255
        %vm2263 = vmor %vm2261, %vm2262
        %v2264 = vsel %vm2263, %v2255, %v2260
        %v2265 = vrsqrt.pop %v2230
        %v2266 = vmul.f32 %v2265, %v2230
        %v2267 = vmul.f32 %v2266, %v2265
        %v2268 = vmul.f32 0.5, %v2267
        %v2269 = vsub.f32 1.5, %v2268
        %v2270 = vmul.f32 %v2265, %v2269
        %vm2271 = vweird.f32 %v2230
        %vm2272 = vweird.f32 %v2265
        %vm2273 = vmor %vm2271, %vm2272
        %v2274 = vsel %vm2273, %v2265, %v2270
        %v2275 = vrsqrt.pop %v2231
        %v2276 = vmul.f32 %v2275, %v2231
        %v2277 = vmul.f32 %v2276, %v2275
        %v2278 = vmul.f32 0.5, %v2277
        %v2279 = vsub.f32 1.5, %v2278
        %v2280 = vmul.f32 %v2275, %v2279
        %vm2281 = vweird.f32 %v2231
        %vm2282 = vweird.f32 %v2275
        %vm2283 = vmor %vm2281, %vm2282
        %v2284 = vsel %vm2283, %v2275, %v2280
        %v2285 = vrsqrt.pop %v2232
        %v2286 = vmul.f32 %v2285, %v2232
        %v2287 = vmul.f32 %v2286, %v2285
        %v2288 = vmul.f32 0.5, %v2287
        %v2289 = vsub.f32 1.5, %v2288
        %v2290 = vmul.f32 %v2285, %v2289
        %vm2291 = vweird.f32 %v2232
        %vm2292 = vweird.f32 %v2285
        %vm2293 = vmor %vm2291, %vm2292
        %v2294 = vsel %vm2293, %v2285, %v2290
        %v2295 = vrsqrt.pop %v2233
        %v2296 = vmul.f32 %v2295, %v2233
        %v2297 = vmul.f32 %v2296, %v2295
        %v2298 = vmul.f32 0.5, %v2297
        %v2299 = vsub.f32 1.5, %v2298
        %v2300 = vmul.f32 %v2295, %v2299
        %vm2301 = vweird.f32 %v2233
        %vm2302 = vweird.f32 %v2295
        %vm2303 = vmor %vm2301, %vm2302
        %v2304 = vsel %vm2303, %v2295, %v2300
        %v2305 = vrsqrt.pop %v2234
        %v2306 = vmul.f32 %v2305, %v2234
        %v2307 = vmul.f32 %v2306, %v2305
        %v2308 = vmul.f32 0.5, %v2307
        %v2309 = vsub.f32 1.5, %v2308
        %v2310 = vmul.f32 %v2305, %v2309
        %vm2311 = vweird.f32 %v2234
        %vm2312 = vweird.f32 %v2305
        %vm2313 = vmor %vm2311, %vm2312
        %v2314 = vsel %vm2313, %v2305, %v2310
        %v2315 = vmul.f32 %v2187, %v2244
        %v2316 = vmul.f32 %v2188, %v2254
        %v2317 = vmul.f32 %v2189, %v2264
        %v2318 = vmul.f32 %v2190, %v2274
        %v2319 = vmul.f32 %v2191, %v2284
        %v2320 = vmul.f32 %v2192, %v2294
        %v2321 = vmul.f32 %v2193, %v2304
        %v2322 = vmul.f32 %v2194, %v2314
        %v2324 = vperm.slane %v2161, 0
        %v2326 = vmul.f32 %v2315, %v2324
        %v2327 = vmul.f32 %v2316, %v2324
        %v2328 = vmul.f32 %v2317, %v2324
        %v2329 = vmul.f32 %v2318, %v2324
        %v2330 = vmul.f32 %v2319, %v2324
        %v2331 = vmul.f32 %v2320, %v2324
        %v2332 = vmul.f32 %v2321, %v2324
        %v2333 = vmul.f32 %v2322, %v2324
        %v2335 = vperm.slane %v2162, 0
        %v2337 = vadd.f32 %v2326, %v2335
        %v2338 = vadd.f32 %v2327, %v2335
        %v2339 = vadd.f32 %v2328, %v2335
        %v2340 = vadd.f32 %v2329, %v2335
        %v2341 = vadd.f32 %v2330, %v2335
        %v2342 = vadd.f32 %v2331, %v2335
        %v2343 = vadd.f32 %v2332, %v2335
        %v2344 = vadd.f32 %v2333, %v2335
        %v2345 = vpack.c.bf16 %v2338, %v2337
        %v2346 = vpack.c.bf16 %v2340, %v2339
        %v2347 = vpack.c.bf16 %v2342, %v2341
        %v2348 = vpack.c.bf16 %v2344, %v2343
        %v2349 = vld [vmem:[%s8] sm:$0xff]
        %v2350 = vld [vmem:[%s8 + $0x8] sm:$0xff]
        %v2351 = vld [vmem:[%s8 + $0x10] sm:$0xff]
        %v2352 = vld [vmem:[%s8 + $0x18] sm:$0xff]
        %v2353 = vld [vmem:[%s8 + $0x20] sm:$0xff]
        %v2354 = vld [vmem:[%s8 + $0x28] sm:$0xff]
        %v2355 = vld [vmem:[%s8 + $0x30] sm:$0xff]
        %v2356 = vld [vmem:[%s8 + $0x38] sm:$0xff]
        %v2357 = vld [vmem:[%s8 + $0x40] sm:$0xff]
        %v2358 = vld [vmem:[%s8 + $0x48] sm:$0xff]
        %v2359 = vld [vmem:[%s8 + $0x50] sm:$0xff]
        %v2360 = vld [vmem:[%s8 + $0x58] sm:$0xff]
        %v2361 = vld [vmem:[%s8 + $0x60] sm:$0xff]
        %v2362 = vld [vmem:[%s8 + $0x68] sm:$0xff]
        %v2363 = vld [vmem:[%s8 + $0x70] sm:$0xff]
        %v2364 = vld [vmem:[%s8 + $0x78] sm:$0xff]
        %v2365 = vld [vmem:[%s8 + $0x80] sm:$0xff]
        %v2366 = vld [vmem:[%s8 + $0x88] sm:$0xff]
        %v2367 = vld [vmem:[%s8 + $0x90] sm:$0xff]
        %v2368 = vld [vmem:[%s8 + $0x98] sm:$0xff]
        %v2369 = vld [vmem:[%s8 + $0xa0] sm:$0xff]
        %v2370 = vld [vmem:[%s8 + $0xa8] sm:$0xff]
        %v2371 = vld [vmem:[%s8 + $0xb0] sm:$0xff]
        %v2372 = vld [vmem:[%s8 + $0xb8] sm:$0xff]
        %v2373 = vld [vmem:[%s8 + $0xc0] sm:$0xff]
        %v2374 = vld [vmem:[%s8 + $0xc8] sm:$0xff]
        %v2375 = vld [vmem:[%s8 + $0xd0] sm:$0xff]
        %v2376 = vld [vmem:[%s8 + $0xd8] sm:$0xff]
        %v2377 = vld [vmem:[%s8 + $0xe0] sm:$0xff]
        %v2378 = vld [vmem:[%s8 + $0xe8] sm:$0xff]
        %v2379 = vld [vmem:[%s8 + $0xf0] sm:$0xff]
        %v2380 = vld [vmem:[%s8 + $0xf8] sm:$0xff]
        %v2381 = vld [vmem:[%s9] sm:$0xf]
        %v2383 = vperm.slane %v2381, 0
        %v2384 = vperm.slane %v2381, 1
        %v2385 = vperm.slane %v2381, 2
        %v2386 = vperm.slane %v2381, 3
        %v2423 = vunpack.c.l.b16 %v2349
        %v2424 = vunpack.c.h.b16 %v2349
        %v2425 = vunpack.c.l.b16 %v2350
        %v2426 = vunpack.c.h.b16 %v2350
        %v2427 = vunpack.c.l.b16 %v2351
        %v2428 = vunpack.c.h.b16 %v2351
        %v2429 = vunpack.c.l.b16 %v2352
        %v2430 = vunpack.c.h.b16 %v2352
        %v2431 = vunpack.c.l.b16 %v2353
        %v2432 = vunpack.c.h.b16 %v2353
        %v2433 = vunpack.c.l.b16 %v2354
        %v2434 = vunpack.c.h.b16 %v2354
        %v2435 = vunpack.c.l.b16 %v2355
        %v2436 = vunpack.c.h.b16 %v2355
        %v2437 = vunpack.c.l.b16 %v2356
        %v2438 = vunpack.c.h.b16 %v2356
        %v2439 = vunpack.c.l.b16 %v2357
        %v2440 = vunpack.c.h.b16 %v2357
        %v2441 = vunpack.c.l.b16 %v2358
        %v2442 = vunpack.c.h.b16 %v2358
        %v2443 = vunpack.c.l.b16 %v2359
        %v2444 = vunpack.c.h.b16 %v2359
        %v2445 = vunpack.c.l.b16 %v2360
        %v2446 = vunpack.c.h.b16 %v2360
        %v2447 = vunpack.c.l.b16 %v2361
        %v2448 = vunpack.c.h.b16 %v2361
        %v2449 = vunpack.c.l.b16 %v2362
        %v2450 = vunpack.c.h.b16 %v2362
        %v2451 = vunpack.c.l.b16 %v2363
        %v2452 = vunpack.c.h.b16 %v2363
        %v2453 = vunpack.c.l.b16 %v2364
        %v2454 = vunpack.c.h.b16 %v2364
        %v2455 = vunpack.c.l.b16 %v2365
        %v2456 = vunpack.c.h.b16 %v2365
        %v2457 = vunpack.c.l.b16 %v2366
        %v2458 = vunpack.c.h.b16 %v2366
        %v2459 = vunpack.c.l.b16 %v2367
        %v2460 = vunpack.c.h.b16 %v2367
        %v2461 = vunpack.c.l.b16 %v2368
        %v2462 = vunpack.c.h.b16 %v2368
        %v2463 = vunpack.c.l.b16 %v2369
        %v2464 = vunpack.c.h.b16 %v2369
        %v2465 = vunpack.c.l.b16 %v2370
        %v2466 = vunpack.c.h.b16 %v2370
        %v2467 = vunpack.c.l.b16 %v2371
        %v2468 = vunpack.c.h.b16 %v2371
        %v2469 = vunpack.c.l.b16 %v2372
        %v2470 = vunpack.c.h.b16 %v2372
        %v2471 = vunpack.c.l.b16 %v2373
        %v2472 = vunpack.c.h.b16 %v2373
        %v2473 = vunpack.c.l.b16 %v2374
        %v2474 = vunpack.c.h.b16 %v2374
        %v2475 = vunpack.c.l.b16 %v2375
        %v2476 = vunpack.c.h.b16 %v2375
        %v2477 = vunpack.c.l.b16 %v2376
        %v2478 = vunpack.c.h.b16 %v2376
        %v2479 = vunpack.c.l.b16 %v2377
        %v2480 = vunpack.c.h.b16 %v2377
        %v2481 = vunpack.c.l.b16 %v2378
        %v2482 = vunpack.c.h.b16 %v2378
        %v2483 = vunpack.c.l.b16 %v2379
        %v2484 = vunpack.c.h.b16 %v2379
        %v2485 = vunpack.c.l.b16 %v2380
        %v2486 = vunpack.c.h.b16 %v2380
        %v2487 = vpack.c.b16 %v2427, %v2423
        %v2488 = vpack.c.b16 %v2428, %v2424
        %v2489 = vpack.c.b16 %v2429, %v2425
        %v2490 = vpack.c.b16 %v2430, %v2426
        %v2491 = vpack.c.b16 %v2435, %v2431
        %v2492 = vpack.c.b16 %v2436, %v2432
        %v2493 = vpack.c.b16 %v2437, %v2433
        %v2494 = vpack.c.b16 %v2438, %v2434
        %v2495 = vpack.c.b16 %v2443, %v2439
        %v2496 = vpack.c.b16 %v2444, %v2440
        %v2497 = vpack.c.b16 %v2445, %v2441
        %v2498 = vpack.c.b16 %v2446, %v2442
        %v2499 = vpack.c.b16 %v2451, %v2447
        %v2500 = vpack.c.b16 %v2452, %v2448
        %v2501 = vpack.c.b16 %v2453, %v2449
        %v2502 = vpack.c.b16 %v2454, %v2450
        %v2503 = vpack.c.b16 %v2459, %v2455
        %v2504 = vpack.c.b16 %v2460, %v2456
        %v2505 = vpack.c.b16 %v2461, %v2457
        %v2506 = vpack.c.b16 %v2462, %v2458
        %v2507 = vpack.c.b16 %v2467, %v2463
        %v2508 = vpack.c.b16 %v2468, %v2464
        %v2509 = vpack.c.b16 %v2469, %v2465
        %v2510 = vpack.c.b16 %v2470, %v2466
        %v2511 = vpack.c.b16 %v2475, %v2471
        %v2512 = vpack.c.b16 %v2476, %v2472
        %v2513 = vpack.c.b16 %v2477, %v2473
        %v2514 = vpack.c.b16 %v2478, %v2474
        %v2515 = vpack.c.b16 %v2483, %v2479
        %v2516 = vpack.c.b16 %v2484, %v2480
        %v2517 = vpack.c.b16 %v2485, %v2481
        %v2518 = vpack.c.b16 %v2486, %v2482
        %2551 = vmatpush.bf16.msra.mxu0 %v2515
        %2552 = vmatpush.bf16.msra.mxu0 %v2511
        %2553 = vmatpush.bf16.msra.mxu0 %v2507
        %2554 = vmatpush.bf16.msra.mxu0 %v2503
        %2555 = vmatpush.bf16.msra.mxu0 %v2499
        %2556 = vmatpush.bf16.msra.mxu0 %v2495
        %2557 = vmatpush.bf16.msra.mxu0 %v2491
        %2558 = vmatpush.bf16.msra.mxu0 %v2487
        %2559 = vmatmul.bf16.gmra.mxu0 %v2345
        %v2560 = vpop.f32.mrf.mxu0
        %v2561 = vadd.f32 %v2383, %v2560
        %v2562 = vpop.f32.mrf.mxu0
        %v2563 = vadd.f32 %v2383, %v2562
        %2564 = vmatmul.bf16.gmra.mxu0 %v2346
        %v2565 = vpop.f32.mrf.mxu0
        %v2566 = vadd.f32 %v2383, %v2565
        %v2567 = vpop.f32.mrf.mxu0
        %v2568 = vadd.f32 %v2383, %v2567
        %2569 = vmatmul.bf16.gmra.mxu0 %v2347
        %v2570 = vpop.f32.mrf.mxu0
        %v2571 = vadd.f32 %v2383, %v2570
        %v2572 = vpop.f32.mrf.mxu0
        %v2573 = vadd.f32 %v2383, %v2572
        %2574 = vmatmul.bf16.gmra.mxu0 %v2348
        %v2575 = vpop.f32.mrf.mxu0
        %v2576 = vadd.f32 %v2383, %v2575
        %v2577 = vpop.f32.mrf.mxu0
        %v2578 = vadd.f32 %v2383, %v2577
        %2579 = vdwg.mxu0
        %2580 = vmatpush.bf16.msra.mxu0 %v2516
        %2581 = vmatpush.bf16.msra.mxu0 %v2512
        %2582 = vmatpush.bf16.msra.mxu0 %v2508
        %2583 = vmatpush.bf16.msra.mxu0 %v2504
        %2584 = vmatpush.bf16.msra.mxu0 %v2500
        %2585 = vmatpush.bf16.msra.mxu0 %v2496
        %2586 = vmatpush.bf16.msra.mxu0 %v2492
        %2587 = vmatpush.bf16.msra.mxu0 %v2488
        %2588 = vmatmul.bf16.gmra.mxu0 %v2345
        %v2589 = vpop.f32.mrf.mxu0
        %v2590 = vadd.f32 %v2384, %v2589
        %v2591 = vpop.f32.mrf.mxu0
        %v2592 = vadd.f32 %v2384, %v2591
        %2593 = vmatmul.bf16.gmra.mxu0 %v2346
        %v2594 = vpop.f32.mrf.mxu0
        %v2595 = vadd.f32 %v2384, %v2594
        %v2596 = vpop.f32.mrf.mxu0
        %v2597 = vadd.f32 %v2384, %v2596
        %2598 = vmatmul.bf16.gmra.mxu0 %v2347
        %v2599 = vpop.f32.mrf.mxu0
        %v2600 = vadd.f32 %v2384, %v2599
        %v2601 = vpop.f32.mrf.mxu0
        %v2602 = vadd.f32 %v2384, %v2601
        %2603 = vmatmul.bf16.gmra.mxu0 %v2348
        %v2604 = vpop.f32.mrf.mxu0
        %v2605 = vadd.f32 %v2384, %v2604
        %v2606 = vpop.f32.mrf.mxu0
        %v2607 = vadd.f32 %v2384, %v2606
        %2608 = vdwg.mxu0
        %2609 = vmatpush.bf16.msra.mxu0 %v2517
        %2610 = vmatpush.bf16.msra.mxu0 %v2513
        %2611 = vmatpush.bf16.msra.mxu0 %v2509
        %2612 = vmatpush.bf16.msra.mxu0 %v2505
        %2613 = vmatpush.bf16.msra.mxu0 %v2501
        %2614 = vmatpush.bf16.msra.mxu0 %v2497
        %2615 = vmatpush.bf16.msra.mxu0 %v2493
        %2616 = vmatpush.bf16.msra.mxu0 %v2489
        %2617 = vmatmul.bf16.gmra.mxu0 %v2345
        %v2618 = vpop.f32.mrf.mxu0
        %v2619 = vadd.f32 %v2385, %v2618
        %v2620 = vpop.f32.mrf.mxu0
        %v2621 = vadd.f32 %v2385, %v2620
        %2622 = vmatmul.bf16.gmra.mxu0 %v2346
        %v2623 = vpop.f32.mrf.mxu0
        %v2624 = vadd.f32 %v2385, %v2623
        %v2625 = vpop.f32.mrf.mxu0
        %v2626 = vadd.f32 %v2385, %v2625
        %2627 = vmatmul.bf16.gmra.mxu0 %v2347
        %v2628 = vpop.f32.mrf.mxu0
        %v2629 = vadd.f32 %v2385, %v2628
        %v2630 = vpop.f32.mrf.mxu0
        %v2631 = vadd.f32 %v2385, %v2630
        %2632 = vmatmul.bf16.gmra.mxu0 %v2348
        %v2633 = vpop.f32.mrf.mxu0
        %v2634 = vadd.f32 %v2385, %v2633
        %v2635 = vpop.f32.mrf.mxu0
        %v2636 = vadd.f32 %v2385, %v2635
        %2637 = vdwg.mxu0
        %2638 = vmatpush.bf16.msra.mxu0 %v2518
        %2639 = vmatpush.bf16.msra.mxu0 %v2514
        %2640 = vmatpush.bf16.msra.mxu0 %v2510
        %2641 = vmatpush.bf16.msra.mxu0 %v2506
        %2642 = vmatpush.bf16.msra.mxu0 %v2502
        %2643 = vmatpush.bf16.msra.mxu0 %v2498
        %2644 = vmatpush.bf16.msra.mxu0 %v2494
        %2645 = vmatpush.bf16.msra.mxu0 %v2490
        %2646 = vmatmul.bf16.gmra.mxu0 %v2345
        %v2647 = vpop.f32.mrf.mxu0
        %v2648 = vadd.f32 %v2386, %v2647
        %v2649 = vpop.f32.mrf.mxu0
        %v2650 = vadd.f32 %v2386, %v2649
        %2651 = vmatmul.bf16.gmra.mxu0 %v2346
        %v2652 = vpop.f32.mrf.mxu0
        %v2653 = vadd.f32 %v2386, %v2652
        %v2654 = vpop.f32.mrf.mxu0
        %v2655 = vadd.f32 %v2386, %v2654
        %2656 = vmatmul.bf16.gmra.mxu0 %v2347
        %v2657 = vpop.f32.mrf.mxu0
        %v2658 = vadd.f32 %v2386, %v2657
        %v2659 = vpop.f32.mrf.mxu0
        %v2660 = vadd.f32 %v2386, %v2659
        %2661 = vmatmul.bf16.gmra.mxu0 %v2348
        %v2662 = vpop.f32.mrf.mxu0
        %v2663 = vadd.f32 %v2386, %v2662
        %v2664 = vpop.f32.mrf.mxu0
        %v2665 = vadd.f32 %v2386, %v2664
        %2666 = vdwg.mxu0
        %v2667 = vmax.f32 %v2561, 0.0
        %v2668 = vmax.f32 %v2590, 0.0
        %v2669 = vmax.f32 %v2619, 0.0
        %v2670 = vmax.f32 %v2648, 0.0
        %v2671 = vmax.f32 %v2563, 0.0
        %v2672 = vmax.f32 %v2592, 0.0
        %v2673 = vmax.f32 %v2621, 0.0
        %v2674 = vmax.f32 %v2650, 0.0
        %v2675 = vmax.f32 %v2566, 0.0
        %v2676 = vmax.f32 %v2595, 0.0
        %v2677 = vmax.f32 %v2624, 0.0
        %v2678 = vmax.f32 %v2653, 0.0
        %v2679 = vmax.f32 %v2568, 0.0
        %v2680 = vmax.f32 %v2597, 0.0
        %v2681 = vmax.f32 %v2626, 0.0
        %v2682 = vmax.f32 %v2655, 0.0
        %v2683 = vmax.f32 %v2571, 0.0
        %v2684 = vmax.f32 %v2600, 0.0
        %v2685 = vmax.f32 %v2629, 0.0
        %v2686 = vmax.f32 %v2658, 0.0
        %v2687 = vmax.f32 %v2573, 0.0
        %v2688 = vmax.f32 %v2602, 0.0
        %v2689 = vmax.f32 %v2631, 0.0
        %v2690 = vmax.f32 %v2660, 0.0
        %v2691 = vmax.f32 %v2576, 0.0
        %v2692 = vmax.f32 %v2605, 0.0
        %v2693 = vmax.f32 %v2634, 0.0
        %v2694 = vmax.f32 %v2663, 0.0
        %v2695 = vmax.f32 %v2578, 0.0
        %v2696 = vmax.f32 %v2607, 0.0
        %v2697 = vmax.f32 %v2636, 0.0
        %v2698 = vmax.f32 %v2665, 0.0
        %v2699 = vpack.c.bf16 %v2671, %v2667
        %v2700 = vpack.c.bf16 %v2672, %v2668
        %v2701 = vpack.c.bf16 %v2673, %v2669
        %v2702 = vpack.c.bf16 %v2674, %v2670
        %v2703 = vpack.c.bf16 %v2679, %v2675
        %v2704 = vpack.c.bf16 %v2680, %v2676
        %v2705 = vpack.c.bf16 %v2681, %v2677
        %v2706 = vpack.c.bf16 %v2682, %v2678
        %v2707 = vpack.c.bf16 %v2687, %v2683
        %v2708 = vpack.c.bf16 %v2688, %v2684
        %v2709 = vpack.c.bf16 %v2689, %v2685
        %v2710 = vpack.c.bf16 %v2690, %v2686
        %v2711 = vpack.c.bf16 %v2695, %v2691
        %v2712 = vpack.c.bf16 %v2696, %v2692
        %v2713 = vpack.c.bf16 %v2697, %v2693
        %v2714 = vpack.c.bf16 %v2698, %v2694
        %v2715 = vld [vmem:[%s10] sm:$0xf]
        %v2716 = vld [vmem:[%s10 + $0x4] sm:$0xf]
        %v2717 = vld [vmem:[%s10 + $0x8] sm:$0xf]
        %v2718 = vld [vmem:[%s10 + $0xc] sm:$0xf]
        %v2719 = vld [vmem:[%s10 + $0x10] sm:$0xf]
        %v2720 = vld [vmem:[%s10 + $0x14] sm:$0xf]
        %v2721 = vld [vmem:[%s10 + $0x18] sm:$0xf]
        %v2722 = vld [vmem:[%s10 + $0x1c] sm:$0xf]
        %v2723 = vld [vmem:[%s10 + $0x20] sm:$0xf]
        %v2724 = vld [vmem:[%s10 + $0x24] sm:$0xf]
        %v2725 = vld [vmem:[%s10 + $0x28] sm:$0xf]
        %v2726 = vld [vmem:[%s10 + $0x2c] sm:$0xf]
        %v2727 = vld [vmem:[%s10 + $0x30] sm:$0xf]
        %v2728 = vld [vmem:[%s10 + $0x34] sm:$0xf]
        %v2729 = vld [vmem:[%s10 + $0x38] sm:$0xf]
        %v2730 = vld [vmem:[%s10 + $0x3c] sm:$0xf]
        %v2731 = vld [vmem:[%s10 + $0x40] sm:$0xf]
        %v2732 = vld [vmem:[%s10 + $0x44] sm:$0xf]
        %v2733 = vld [vmem:[%s10 + $0x48] sm:$0xf]
        %v2734 = vld [vmem:[%s10 + $0x4c] sm:$0xf]
        %v2735 = vld [vmem:[%s10 + $0x50] sm:$0xf]
        %v2736 = vld [vmem:[%s10 + $0x54] sm:$0xf]
        %v2737 = vld [vmem:[%s10 + $0x58] sm:$0xf]
        %v2738 = vld [vmem:[%s10 + $0x5c] sm:$0xf]
        %v2739 = vld [vmem:[%s10 + $0x60] sm:$0xf]
        %v2740 = vld [vmem:[%s10 + $0x64] sm:$0xf]
        %v2741 = vld [vmem:[%s10 + $0x68] sm:$0xf]
        %v2742 = vld [vmem:[%s10 + $0x6c] sm:$0xf]
        %v2743 = vld [vmem:[%s10 + $0x70] sm:$0xf]
        %v2744 = vld [vmem:[%s10 + $0x74] sm:$0xf]
        %v2745 = vld [vmem:[%s10 + $0x78] sm:$0xf]
        %v2746 = vld [vmem:[%s10 + $0x7c] sm:$0xf]
        %v2747 = vld [vmem:[%s10 + $0x80] sm:$0xf]
        %v2748 = vld [vmem:[%s10 + $0x84] sm:$0xf]
        %v2749 = vld [vmem:[%s10 + $0x88] sm:$0xf]
        %v2750 = vld [vmem:[%s10 + $0x8c] sm:$0xf]
        %v2751 = vld [vmem:[%s10 + $0x90] sm:$0xf]
        %v2752 = vld [vmem:[%s10 + $0x94] sm:$0xf]
        %v2753 = vld [vmem:[%s10 + $0x98] sm:$0xf]
        %v2754 = vld [vmem:[%s10 + $0x9c] sm:$0xf]
        %v2755 = vld [vmem:[%s10 + $0xa0] sm:$0xf]
        %v2756 = vld [vmem:[%s10 + $0xa4] sm:$0xf]
        %v2757 = vld [vmem:[%s10 + $0xa8] sm:$0xf]
        %v2758 = vld [vmem:[%s10 + $0xac] sm:$0xf]
        %v2759 = vld [vmem:[%s10 + $0xb0] sm:$0xf]
        %v2760 = vld [vmem:[%s10 + $0xb4] sm:$0xf]
        %v2761 = vld [vmem:[%s10 + $0xb8] sm:$0xf]
        %v2762 = vld [vmem:[%s10 + $0xbc] sm:$0xf]
        %v2763 = vld [vmem:[%s10 + $0xc0] sm:$0xf]
        %v2764 = vld [vmem:[%s10 + $0xc4] sm:$0xf]
        %v2765 = vld [vmem:[%s10 + $0xc8] sm:$0xf]
        %v2766 = vld [vmem:[%s10 + $0xcc] sm:$0xf]
        %v2767 = vld [vmem:[%s10 + $0xd0] sm:$0xf]
        %v2768 = vld [vmem:[%s10 + $0xd4] sm:$0xf]
        %v2769 = vld [vmem:[%s10 + $0xd8] sm:$0xf]
        %v2770 = vld [vmem:[%s10 + $0xdc] sm:$0xf]
        %v2771 = vld [vmem:[%s10 + $0xe0] sm:$0xf]
        %v2772 = vld [vmem:[%s10 + $0xe4] sm:$0xf]
        %v2773 = vld [vmem:[%s10 + $0xe8] sm:$0xf]
        %v2774 = vld [vmem:[%s10 + $0xec] sm:$0xf]
        %v2775 = vld [vmem:[%s10 + $0xf0] sm:$0xf]
        %v2776 = vld [vmem:[%s10 + $0xf4] sm:$0xf]
        %v2777 = vld [vmem:[%s10 + $0xf8] sm:$0xf]
        %v2778 = vld [vmem:[%s10 + $0xfc] sm:$0xf]
        %v2779 = vld [vmem:[#allocation5] sm:$0x1]
        %v2781 = vperm.slane %v2779, 0
        %v2847 = vunpack.c.l.b16 %v2715
        %v2848 = vunpack.c.l.b16 %v2716
        %v2849 = vunpack.c.l.b16 %v2717
        %v2850 = vunpack.c.l.b16 %v2718
        %v2851 = vunpack.c.l.b16 %v2719
        %v2852 = vunpack.c.l.b16 %v2720
        %v2853 = vunpack.c.l.b16 %v2721
        %v2854 = vunpack.c.l.b16 %v2722
        %v2855 = vunpack.c.l.b16 %v2723
        %v2856 = vunpack.c.l.b16 %v2724
        %v2857 = vunpack.c.l.b16 %v2725
        %v2858 = vunpack.c.l.b16 %v2726
        %v2859 = vunpack.c.l.b16 %v2727
        %v2860 = vunpack.c.l.b16 %v2728
        %v2861 = vunpack.c.l.b16 %v2729
        %v2862 = vunpack.c.l.b16 %v2730
        %v2863 = vunpack.c.l.b16 %v2731
        %v2864 = vunpack.c.l.b16 %v2732
        %v2865 = vunpack.c.l.b16 %v2733
        %v2866 = vunpack.c.l.b16 %v2734
        %v2867 = vunpack.c.l.b16 %v2735
        %v2868 = vunpack.c.l.b16 %v2736
        %v2869 = vunpack.c.l.b16 %v2737
        %v2870 = vunpack.c.l.b16 %v2738
        %v2871 = vunpack.c.l.b16 %v2739
        %v2872 = vunpack.c.l.b16 %v2740
        %v2873 = vunpack.c.l.b16 %v2741
        %v2874 = vunpack.c.l.b16 %v2742
        %v2875 = vunpack.c.l.b16 %v2743
        %v2876 = vunpack.c.l.b16 %v2744
        %v2877 = vunpack.c.l.b16 %v2745
        %v2878 = vunpack.c.l.b16 %v2746
        %v2879 = vunpack.c.l.b16 %v2747
        %v2880 = vunpack.c.l.b16 %v2748
        %v2881 = vunpack.c.l.b16 %v2749
        %v2882 = vunpack.c.l.b16 %v2750
        %v2883 = vunpack.c.l.b16 %v2751
        %v2884 = vunpack.c.l.b16 %v2752
        %v2885 = vunpack.c.l.b16 %v2753
        %v2886 = vunpack.c.l.b16 %v2754
        %v2887 = vunpack.c.l.b16 %v2755
        %v2888 = vunpack.c.l.b16 %v2756
        %v2889 = vunpack.c.l.b16 %v2757
        %v2890 = vunpack.c.l.b16 %v2758
        %v2891 = vunpack.c.l.b16 %v2759
        %v2892 = vunpack.c.l.b16 %v2760
        %v2893 = vunpack.c.l.b16 %v2761
        %v2894 = vunpack.c.l.b16 %v2762
        %v2895 = vunpack.c.l.b16 %v2763
        %v2896 = vunpack.c.l.b16 %v2764
        %v2897 = vunpack.c.l.b16 %v2765
        %v2898 = vunpack.c.l.b16 %v2766
        %v2899 = vunpack.c.l.b16 %v2767
        %v2900 = vunpack.c.l.b16 %v2768
        %v2901 = vunpack.c.l.b16 %v2769
        %v2902 = vunpack.c.l.b16 %v2770
        %v2903 = vunpack.c.l.b16 %v2771
        %v2904 = vunpack.c.l.b16 %v2772
        %v2905 = vunpack.c.l.b16 %v2773
        %v2906 = vunpack.c.l.b16 %v2774
        %v2907 = vunpack.c.l.b16 %v2775
        %v2908 = vunpack.c.l.b16 %v2776
        %v2909 = vunpack.c.l.b16 %v2777
        %v2910 = vunpack.c.l.b16 %v2778
        %v2911 = vpack.c.b16 %v2848, %v2847
        %v2912 = vpack.c.b16 %v2850, %v2849
        %v2913 = vpack.c.b16 %v2852, %v2851
        %v2914 = vpack.c.b16 %v2854, %v2853
        %v2915 = vpack.c.b16 %v2856, %v2855
        %v2916 = vpack.c.b16 %v2858, %v2857
        %v2917 = vpack.c.b16 %v2860, %v2859
        %v2918 = vpack.c.b16 %v2862, %v2861
        %v2919 = vpack.c.b16 %v2864, %v2863
        %v2920 = vpack.c.b16 %v2866, %v2865
        %v2921 = vpack.c.b16 %v2868, %v2867
        %v2922 = vpack.c.b16 %v2870, %v2869
        %v2923 = vpack.c.b16 %v2872, %v2871
        %v2924 = vpack.c.b16 %v2874, %v2873
        %v2925 = vpack.c.b16 %v2876, %v2875
        %v2926 = vpack.c.b16 %v2878, %v2877
        %v2927 = vpack.c.b16 %v2880, %v2879
        %v2928 = vpack.c.b16 %v2882, %v2881
        %v2929 = vpack.c.b16 %v2884, %v2883
        %v2930 = vpack.c.b16 %v2886, %v2885
        %v2931 = vpack.c.b16 %v2888, %v2887
        %v2932 = vpack.c.b16 %v2890, %v2889
        %v2933 = vpack.c.b16 %v2892, %v2891
        %v2934 = vpack.c.b16 %v2894, %v2893
        %v2935 = vpack.c.b16 %v2896, %v2895
        %v2936 = vpack.c.b16 %v2898, %v2897
        %v2937 = vpack.c.b16 %v2900, %v2899
        %v2938 = vpack.c.b16 %v2902, %v2901
        %v2939 = vpack.c.b16 %v2904, %v2903
        %v2940 = vpack.c.b16 %v2906, %v2905
        %v2941 = vpack.c.b16 %v2908, %v2907
        %v2942 = vpack.c.b16 %v2910, %v2909
        %2975 = vmatpush.bf16.msra.mxu0 %v2918
        %2976 = vmatpush.bf16.msra.mxu0 %v2917
        %2977 = vmatpush.bf16.msra.mxu0 %v2916
        %2978 = vmatpush.bf16.msra.mxu0 %v2915
        %2979 = vmatpush.bf16.msra.mxu0 %v2914
        %2980 = vmatpush.bf16.msra.mxu0 %v2913
        %2981 = vmatpush.bf16.msra.mxu0 %v2912
        %2982 = vmatpush.bf16.msra.mxu0 %v2911
        %2983 = vmatmul.bf16.gmra.mxu0 %v2699
        %v2984 = vpop.f32.mrf.mxu0
        %v2985 = vadd.f32 %v2781, %v2984
        %v2986 = vpop.f32.mrf.mxu0
        %v2987 = vadd.f32 %v2781, %v2986
        %2988 = vmatmul.bf16.gmra.mxu0 %v2703
        %v2989 = vpop.f32.mrf.mxu0
        %v2990 = vadd.f32 %v2781, %v2989
        %v2991 = vpop.f32.mrf.mxu0
        %v2992 = vadd.f32 %v2781, %v2991
        %2993 = vmatmul.bf16.gmra.mxu0 %v2707
        %v2994 = vpop.f32.mrf.mxu0
        %v2995 = vadd.f32 %v2781, %v2994
        %v2996 = vpop.f32.mrf.mxu0
        %v2997 = vadd.f32 %v2781, %v2996
        %2998 = vmatmul.bf16.gmra.mxu0 %v2711
        %v2999 = vpop.f32.mrf.mxu0
        %v3000 = vadd.f32 %v2781, %v2999
        %v3001 = vpop.f32.mrf.mxu0
        %v3002 = vadd.f32 %v2781, %v3001
        %3003 = vdwg.mxu0
        %3004 = vmatpush.bf16.msra.mxu0 %v2926
        %3005 = vmatpush.bf16.msra.mxu0 %v2925
        %3006 = vmatpush.bf16.msra.mxu0 %v2924
        %3007 = vmatpush.bf16.msra.mxu0 %v2923
        %3008 = vmatpush.bf16.msra.mxu0 %v2922
        %3009 = vmatpush.bf16.msra.mxu0 %v2921
        %3010 = vmatpush.bf16.msra.mxu0 %v2920
        %3011 = vmatpush.bf16.msra.mxu0 %v2919
        %3012 = vmatmul.bf16.gmra.mxu0 %v2700
        %v3013 = vpop.f32.mrf.mxu0
        %v3014 = vadd.f32 %v2985, %v3013
        %v3015 = vpop.f32.mrf.mxu0
        %v3016 = vadd.f32 %v2987, %v3015
        %3017 = vmatmul.bf16.gmra.mxu0 %v2704
        %v3018 = vpop.f32.mrf.mxu0
        %v3019 = vadd.f32 %v2990, %v3018
        %v3020 = vpop.f32.mrf.mxu0
        %v3021 = vadd.f32 %v2992, %v3020
        %3022 = vmatmul.bf16.gmra.mxu0 %v2708
        %v3023 = vpop.f32.mrf.mxu0
        %v3024 = vadd.f32 %v2995, %v3023
        %v3025 = vpop.f32.mrf.mxu0
        %v3026 = vadd.f32 %v2997, %v3025
        %3027 = vmatmul.bf16.gmra.mxu0 %v2712
        %v3028 = vpop.f32.mrf.mxu0
        %v3029 = vadd.f32 %v3000, %v3028
        %v3030 = vpop.f32.mrf.mxu0
        %v3031 = vadd.f32 %v3002, %v3030
        %3032 = vdwg.mxu0
        %3033 = vmatpush.bf16.msra.mxu0 %v2934
        %3034 = vmatpush.bf16.msra.mxu0 %v2933
        %3035 = vmatpush.bf16.msra.mxu0 %v2932
        %3036 = vmatpush.bf16.msra.mxu0 %v2931
        %3037 = vmatpush.bf16.msra.mxu0 %v2930
        %3038 = vmatpush.bf16.msra.mxu0 %v2929
        %3039 = vmatpush.bf16.msra.mxu0 %v2928
        %3040 = vmatpush.bf16.msra.mxu0 %v2927
        %3041 = vmatmul.bf16.gmra.mxu0 %v2701
        %v3042 = vpop.f32.mrf.mxu0
        %v3043 = vadd.f32 %v3014, %v3042
        %v3044 = vpop.f32.mrf.mxu0
        %v3045 = vadd.f32 %v3016, %v3044
        %3046 = vmatmul.bf16.gmra.mxu0 %v2705
        %v3047 = vpop.f32.mrf.mxu0
        %v3048 = vadd.f32 %v3019, %v3047
        %v3049 = vpop.f32.mrf.mxu0
        %v3050 = vadd.f32 %v3021, %v3049
        %3051 = vmatmul.bf16.gmra.mxu0 %v2709
        %v3052 = vpop.f32.mrf.mxu0
        %v3053 = vadd.f32 %v3024, %v3052
        %v3054 = vpop.f32.mrf.mxu0
        %v3055 = vadd.f32 %v3026, %v3054
        %3056 = vmatmul.bf16.gmra.mxu0 %v2713
        %v3057 = vpop.f32.mrf.mxu0
        %v3058 = vadd.f32 %v3029, %v3057
        %v3059 = vpop.f32.mrf.mxu0
        %v3060 = vadd.f32 %v3031, %v3059
        %3061 = vdwg.mxu0
        %3062 = vmatpush.bf16.msra.mxu0 %v2942
        %3063 = vmatpush.bf16.msra.mxu0 %v2941
        %3064 = vmatpush.bf16.msra.mxu0 %v2940
        %3065 = vmatpush.bf16.msra.mxu0 %v2939
        %3066 = vmatpush.bf16.msra.mxu0 %v2938
        %3067 = vmatpush.bf16.msra.mxu0 %v2937
        %3068 = vmatpush.bf16.msra.mxu0 %v2936
        %3069 = vmatpush.bf16.msra.mxu0 %v2935
        %3070 = vmatmul.bf16.gmra.mxu0 %v2702
        %v3071 = vpop.f32.mrf.mxu0
        %v3072 = vadd.f32 %v3043, %v3071
        %v3073 = vpop.f32.mrf.mxu0
        %v3074 = vadd.f32 %v3045, %v3073
        %3075 = vmatmul.bf16.gmra.mxu0 %v2706
        %v3076 = vpop.f32.mrf.mxu0
        %v3077 = vadd.f32 %v3048, %v3076
        %v3078 = vpop.f32.mrf.mxu0
        %v3079 = vadd.f32 %v3050, %v3078
        %3080 = vmatmul.bf16.gmra.mxu0 %v2710
        %v3081 = vpop.f32.mrf.mxu0
        %v3082 = vadd.f32 %v3053, %v3081
        %v3083 = vpop.f32.mrf.mxu0
        %v3084 = vadd.f32 %v3055, %v3083
        %3085 = vmatmul.bf16.gmra.mxu0 %v2714
        %v3086 = vpop.f32.mrf.mxu0
        %v3087 = vadd.f32 %v3058, %v3086
        %v3088 = vpop.f32.mrf.mxu0
        %v3089 = vadd.f32 %v3060, %v3088
        %3090 = vdwg.mxu0
        %v3091 = vadd.f32 %v2153, %v3072
        %v3092 = vadd.f32 %v2154, %v3074
        %v3093 = vadd.f32 %v2155, %v3077
        %v3094 = vadd.f32 %v2156, %v3079
        %v3095 = vadd.f32 %v2157, %v3082
        %v3096 = vadd.f32 %v2158, %v3084
        %v3097 = vadd.f32 %v2159, %v3087
        %v3098 = vadd.f32 %v2160, %v3089
        %s3099 = scalar_lea.vmem %s1, 1
        %v3100 = vld [vmem:[%s3099] sm:$0x1]
        %s3101 = scalar_lea.vmem %s2, 1
        %v3102 = vld [vmem:[%s3101] sm:$0x1]
        %3103 = vadd.xlane.f32.xlu0 %v3091
        %v3104 = vpop.xlane.xlu0 %3103
        %3105 = vadd.xlane.f32.xlu0 %v3092
        %v3106 = vpop.xlane.xlu0 %3105
        %3107 = vadd.xlane.f32.xlu0 %v3093
        %v3108 = vpop.xlane.xlu0 %3107
        %3109 = vadd.xlane.f32.xlu0 %v3094
        %v3110 = vpop.xlane.xlu0 %3109
        %3111 = vadd.xlane.f32.xlu0 %v3095
        %v3112 = vpop.xlane.xlu0 %3111
        %3113 = vadd.xlane.f32.xlu0 %v3096
        %v3114 = vpop.xlane.xlu0 %3113
        %3115 = vadd.xlane.f32.xlu0 %v3097
        %v3116 = vpop.xlane.xlu0 %3115
        %3117 = vadd.xlane.f32.xlu0 %v3098
        %v3118 = vpop.xlane.xlu0 %3117
        %v3119 = vmul.f32 %v3104, %v659
        %v3120 = vmul.f32 %v3106, %v659
        %v3121 = vmul.f32 %v3108, %v659
        %v3122 = vmul.f32 %v3110, %v659
        %v3123 = vmul.f32 %v3112, %v659
        %v3124 = vmul.f32 %v3114, %v659
        %v3125 = vmul.f32 %v3116, %v659
        %v3126 = vmul.f32 %v3118, %v659
        %v3127 = vsub.f32 %v3091, %v3119
        %v3128 = vsub.f32 %v3092, %v3120
        %v3129 = vsub.f32 %v3093, %v3121
        %v3130 = vsub.f32 %v3094, %v3122
        %v3131 = vsub.f32 %v3095, %v3123
        %v3132 = vsub.f32 %v3096, %v3124
        %v3133 = vsub.f32 %v3097, %v3125
        %v3134 = vsub.f32 %v3098, %v3126
        %v3135 = vmul.f32 %v3127, %v3127
        %v3136 = vmul.f32 %v3128, %v3128
        %v3137 = vmul.f32 %v3129, %v3129
        %v3138 = vmul.f32 %v3130, %v3130
        %v3139 = vmul.f32 %v3131, %v3131
        %v3140 = vmul.f32 %v3132, %v3132
        %v3141 = vmul.f32 %v3133, %v3133
        %v3142 = vmul.f32 %v3134, %v3134
        %3143 = vadd.xlane.f32.xlu0 %v3135
        %v3144 = vpop.xlane.xlu0 %3143
        %3145 = vadd.xlane.f32.xlu0 %v3136
        %v3146 = vpop.xlane.xlu0 %3145
        %3147 = vadd.xlane.f32.xlu0 %v3137
        %v3148 = vpop.xlane.xlu0 %3147
        %3149 = vadd.xlane.f32.xlu0 %v3138
        %v3150 = vpop.xlane.xlu0 %3149
        %3151 = vadd.xlane.f32.xlu0 %v3139
        %v3152 = vpop.xlane.xlu0 %3151
        %3153 = vadd.xlane.f32.xlu0 %v3140
        %v3154 = vpop.xlane.xlu0 %3153
        %3155 = vadd.xlane.f32.xlu0 %v3141
        %v3156 = vpop.xlane.xlu0 %3155
        %3157 = vadd.xlane.f32.xlu0 %v3142
        %v3158 = vpop.xlane.xlu0 %3157
        %v3159 = vmul.f32 %v3144, %v659
        %v3160 = vmul.f32 %v3146, %v659
        %v3161 = vmul.f32 %v3148, %v659
        %v3162 = vmul.f32 %v3150, %v659
        %v3163 = vmul.f32 %v3152, %v659
        %v3164 = vmul.f32 %v3154, %v659
        %v3165 = vmul.f32 %v3156, %v659
        %v3166 = vmul.f32 %v3158, %v659
        %v3167 = vadd.f32 %v3159, 1e-05
        %v3168 = vadd.f32 %v3160, 1e-05
        %v3169 = vadd.f32 %v3161, 1e-05
        %v3170 = vadd.f32 %v3162, 1e-05
        %v3171 = vadd.f32 %v3163, 1e-05
        %v3172 = vadd.f32 %v3164, 1e-05
        %v3173 = vadd.f32 %v3165, 1e-05
        %v3174 = vadd.f32 %v3166, 1e-05
        %v3175 = vrsqrt.pop %v3167
        %v3176 = vmul.f32 %v3175, %v3167
        %v3177 = vmul.f32 %v3176, %v3175
        %v3178 = vmul.f32 0.5, %v3177
        %v3179 = vsub.f32 1.5, %v3178
        %v3180 = vmul.f32 %v3175, %v3179
        %vm3181 = vweird.f32 %v3167
        %vm3182 = vweird.f32 %v3175
        %vm3183 = vmor %vm3181, %vm3182
        %v3184 = vsel %vm3183, %v3175, %v3180
        %v3185 = vrsqrt.pop %v3168
        %v3186 = vmul.f32 %v3185, %v3168
        %v3187 = vmul.f32 %v3186, %v3185
        %v3188 = vmul.f32 0.5, %v3187
        %v3189 = vsub.f32 1.5, %v3188
        %v3190 = vmul.f32 %v3185, %v3189
        %vm3191 = vweird.f32 %v3168
        %vm3192 = vweird.f32 %v3185
        %vm3193 = vmor %vm3191, %vm3192
        %v3194 = vsel %vm3193, %v3185, %v3190
        %v3195 = vrsqrt.pop %v3169
        %v3196 = vmul.f32 %v3195, %v3169
        %v3197 = vmul.f32 %v3196, %v3195
        %v3198 = vmul.f32 0.5, %v3197
        %v3199 = vsub.f32 1.5, %v3198
        %v3200 = vmul.f32 %v3195, %v3199
        %vm3201 = vweird.f32 %v3169
        %vm3202 = vweird.f32 %v3195
        %vm3203 = vmor %vm3201, %vm3202
        %v3204 = vsel %vm3203, %v3195, %v3200
        %v3205 = vrsqrt.pop %v3170
        %v3206 = vmul.f32 %v3205, %v3170
        %v3207 = vmul.f32 %v3206, %v3205
        %v3208 = vmul.f32 0.5, %v3207
        %v3209 = vsub.f32 1.5, %v3208
        %v3210 = vmul.f32 %v3205, %v3209
        %vm3211 = vweird.f32 %v3170
        %vm3212 = vweird.f32 %v3205
        %vm3213 = vmor %vm3211, %vm3212
        %v3214 = vsel %vm3213, %v3205, %v3210
        %v3215 = vrsqrt.pop %v3171
        %v3216 = vmul.f32 %v3215, %v3171
        %v3217 = vmul.f32 %v3216, %v3215
        %v3218 = vmul.f32 0.5, %v3217
        %v3219 = vsub.f32 1.5, %v3218
        %v3220 = vmul.f32 %v3215, %v3219
        %vm3221 = vweird.f32 %v3171
        %vm3222 = vweird.f32 %v3215
        %vm3223 = vmor %vm3221, %vm3222
        %v3224 = vsel %vm3223, %v3215, %v3220
        %v3225 = vrsqrt.pop %v3172
        %v3226 = vmul.f32 %v3225, %v3172
        %v3227 = vmul.f32 %v3226, %v3225
        %v3228 = vmul.f32 0.5, %v3227
        %v3229 = vsub.f32 1.5, %v3228
        %v3230 = vmul.f32 %v3225, %v3229
        %vm3231 = vweird.f32 %v3172
        %vm3232 = vweird.f32 %v3225
        %vm3233 = vmor %vm3231, %vm3232
        %v3234 = vsel %vm3233, %v3225, %v3230
        %v3235 = vrsqrt.pop %v3173
        %v3236 = vmul.f32 %v3235, %v3173
        %v3237 = vmul.f32 %v3236, %v3235
        %v3238 = vmul.f32 0.5, %v3237
        %v3239 = vsub.f32 1.5, %v3238
        %v3240 = vmul.f32 %v3235, %v3239
        %vm3241 = vweird.f32 %v3173
        %vm3242 = vweird.f32 %v3235
        %vm3243 = vmor %vm3241, %vm3242
        %v3244 = vsel %vm3243, %v3235, %v3240
        %v3245 = vrsqrt.pop %v3174
        %v3246 = vmul.f32 %v3245, %v3174
        %v3247 = vmul.f32 %v3246, %v3245
        %v3248 = vmul.f32 0.5, %v3247
        %v3249 = vsub.f32 1.5, %v3248
        %v3250 = vmul.f32 %v3245, %v3249
        %vm3251 = vweird.f32 %v3174
        %vm3252 = vweird.f32 %v3245
        %vm3253 = vmor %vm3251, %vm3252
        %v3254 = vsel %vm3253, %v3245, %v3250
        %v3255 = vmul.f32 %v3127, %v3184
        %v3256 = vmul.f32 %v3128, %v3194
        %v3257 = vmul.f32 %v3129, %v3204
        %v3258 = vmul.f32 %v3130, %v3214
        %v3259 = vmul.f32 %v3131, %v3224
        %v3260 = vmul.f32 %v3132, %v3234
        %v3261 = vmul.f32 %v3133, %v3244
        %v3262 = vmul.f32 %v3134, %v3254
        %v3264 = vperm.slane %v3100, 0
        %v3266 = vmul.f32 %v3255, %v3264
        %v3267 = vmul.f32 %v3256, %v3264
        %v3268 = vmul.f32 %v3257, %v3264
        %v3269 = vmul.f32 %v3258, %v3264
        %v3270 = vmul.f32 %v3259, %v3264
        %v3271 = vmul.f32 %v3260, %v3264
        %v3272 = vmul.f32 %v3261, %v3264
        %v3273 = vmul.f32 %v3262, %v3264
        %v3275 = vperm.slane %v3102, 0
        %v3277 = vadd.f32 %v3266, %v3275
        %v3278 = vadd.f32 %v3267, %v3275
        %v3279 = vadd.f32 %v3268, %v3275
        %v3280 = vadd.f32 %v3269, %v3275
        %v3281 = vadd.f32 %v3270, %v3275
        %v3282 = vadd.f32 %v3271, %v3275
        %v3283 = vadd.f32 %v3272, %v3275
        %v3284 = vadd.f32 %v3273, %v3275
        %v3285 = vpack.c.bf16 %v3278, %v3277
        %v3286 = vpack.c.bf16 %v3280, %v3279
        %v3287 = vpack.c.bf16 %v3282, %v3281
        %v3288 = vpack.c.bf16 %v3284, %v3283
        %s3289 = scalar_lea.vmem %s3, 192
        %v3290 = vld [vmem:[%s3289] sm:$0xff]
        %v3291 = vld [vmem:[%s3289 + $0x8] sm:$0xf]
        %v3292 = vld [vmem:[%s3289 + $0xc] sm:$0xff]
        %v3293 = vld [vmem:[%s3289 + $0x14] sm:$0xf]
        %v3294 = vld [vmem:[%s3289 + $0x18] sm:$0xff]
        %v3295 = vld [vmem:[%s3289 + $0x20] sm:$0xf]
        %v3296 = vld [vmem:[%s3289 + $0x24] sm:$0xff]
        %v3297 = vld [vmem:[%s3289 + $0x2c] sm:$0xf]
        %v3298 = vld [vmem:[%s3289 + $0x30] sm:$0xff]
        %v3299 = vld [vmem:[%s3289 + $0x38] sm:$0xf]
        %v3300 = vld [vmem:[%s3289 + $0x3c] sm:$0xff]
        %v3301 = vld [vmem:[%s3289 + $0x44] sm:$0xf]
        %v3302 = vld [vmem:[%s3289 + $0x48] sm:$0xff]
        %v3303 = vld [vmem:[%s3289 + $0x50] sm:$0xf]
        %v3304 = vld [vmem:[%s3289 + $0x54] sm:$0xff]
        %v3305 = vld [vmem:[%s3289 + $0x5c] sm:$0xf]
        %v3306 = vld [vmem:[%s3289 + $0x60] sm:$0xff]
        %v3307 = vld [vmem:[%s3289 + $0x68] sm:$0xf]
        %v3308 = vld [vmem:[%s3289 + $0x6c] sm:$0xff]
        %v3309 = vld [vmem:[%s3289 + $0x74] sm:$0xf]
        %v3310 = vld [vmem:[%s3289 + $0x78] sm:$0xff]
        %v3311 = vld [vmem:[%s3289 + $0x80] sm:$0xf]
        %v3312 = vld [vmem:[%s3289 + $0x84] sm:$0xff]
        %v3313 = vld [vmem:[%s3289 + $0x8c] sm:$0xf]
        %v3314 = vld [vmem:[%s3289 + $0x90] sm:$0xff]
        %v3315 = vld [vmem:[%s3289 + $0x98] sm:$0xf]
        %v3316 = vld [vmem:[%s3289 + $0x9c] sm:$0xff]
        %v3317 = vld [vmem:[%s3289 + $0xa4] sm:$0xf]
        %v3318 = vld [vmem:[%s3289 + $0xa8] sm:$0xff]
        %v3319 = vld [vmem:[%s3289 + $0xb0] sm:$0xf]
        %v3320 = vld [vmem:[%s3289 + $0xb4] sm:$0xff]
        %v3321 = vld [vmem:[%s3289 + $0xbc] sm:$0xf]
        %v3354 = vunpack.c.l.b16 %v3290
        %v3355 = vunpack.c.h.b16 %v3290
        %v3356 = vunpack.c.l.b16 %v3291
        %v3357 = vunpack.c.l.b16 %v3292
        %v3358 = vunpack.c.h.b16 %v3292
        %v3359 = vunpack.c.l.b16 %v3293
        %v3360 = vunpack.c.l.b16 %v3294
        %v3361 = vunpack.c.h.b16 %v3294
        %v3362 = vunpack.c.l.b16 %v3295
        %v3363 = vunpack.c.l.b16 %v3296
        %v3364 = vunpack.c.h.b16 %v3296
        %v3365 = vunpack.c.l.b16 %v3297
        %v3366 = vunpack.c.l.b16 %v3298
        %v3367 = vunpack.c.h.b16 %v3298
        %v3368 = vunpack.c.l.b16 %v3299
        %v3369 = vunpack.c.l.b16 %v3300
        %v3370 = vunpack.c.h.b16 %v3300
        %v3371 = vunpack.c.l.b16 %v3301
        %v3372 = vunpack.c.l.b16 %v3302
        %v3373 = vunpack.c.h.b16 %v3302
        %v3374 = vunpack.c.l.b16 %v3303
        %v3375 = vunpack.c.l.b16 %v3304
        %v3376 = vunpack.c.h.b16 %v3304
        %v3377 = vunpack.c.l.b16 %v3305
        %v3378 = vunpack.c.l.b16 %v3306
        %v3379 = vunpack.c.h.b16 %v3306
        %v3380 = vunpack.c.l.b16 %v3307
        %v3381 = vunpack.c.l.b16 %v3308
        %v3382 = vunpack.c.h.b16 %v3308
        %v3383 = vunpack.c.l.b16 %v3309
        %v3384 = vunpack.c.l.b16 %v3310
        %v3385 = vunpack.c.h.b16 %v3310
        %v3386 = vunpack.c.l.b16 %v3311
        %v3387 = vunpack.c.l.b16 %v3312
        %v3388 = vunpack.c.h.b16 %v3312
        %v3389 = vunpack.c.l.b16 %v3313
        %v3390 = vunpack.c.l.b16 %v3314
        %v3391 = vunpack.c.h.b16 %v3314
        %v3392 = vunpack.c.l.b16 %v3315
        %v3393 = vunpack.c.l.b16 %v3316
        %v3394 = vunpack.c.h.b16 %v3316
        %v3395 = vunpack.c.l.b16 %v3317
        %v3396 = vunpack.c.l.b16 %v3318
        %v3397 = vunpack.c.h.b16 %v3318
        %v3398 = vunpack.c.l.b16 %v3319
        %v3399 = vunpack.c.l.b16 %v3320
        %v3400 = vunpack.c.h.b16 %v3320
        %v3401 = vunpack.c.l.b16 %v3321
        %v3402 = vpack.c.b16 %v3357, %v3354
        %v3403 = vpack.c.b16 %v3358, %v3355
        %v3404 = vpack.c.b16 %v3359, %v3356
        %v3405 = vpack.c.b16 %v3363, %v3360
        %v3406 = vpack.c.b16 %v3364, %v3361
        %v3407 = vpack.c.b16 %v3365, %v3362
        %v3408 = vpack.c.b16 %v3369, %v3366
        %v3409 = vpack.c.b16 %v3370, %v3367
        %v3410 = vpack.c.b16 %v3371, %v3368
        %v3411 = vpack.c.b16 %v3375, %v3372
        %v3412 = vpack.c.b16 %v3376, %v3373
        %v3413 = vpack.c.b16 %v3377, %v3374
        %v3414 = vpack.c.b16 %v3381, %v3378
        %v3415 = vpack.c.b16 %v3382, %v3379
        %v3416 = vpack.c.b16 %v3383, %v3380
        %v3417 = vpack.c.b16 %v3387, %v3384
        %v3418 = vpack.c.b16 %v3388, %v3385
        %v3419 = vpack.c.b16 %v3389, %v3386
        %v3420 = vpack.c.b16 %v3393, %v3390
        %v3421 = vpack.c.b16 %v3394, %v3391
        %v3422 = vpack.c.b16 %v3395, %v3392
        %v3423 = vpack.c.b16 %v3399, %v3396
        %v3424 = vpack.c.b16 %v3400, %v3397
        %v3425 = vpack.c.b16 %v3401, %v3398
        %3450 = vmatpush.bf16.msra.mxu0 %v3423
        %3451 = vmatpush.bf16.msra.mxu0 %v3420
        %3452 = vmatpush.bf16.msra.mxu0 %v3417
        %3453 = vmatpush.bf16.msra.mxu0 %v3414
        %3454 = vmatpush.bf16.msra.mxu0 %v3411
        %3455 = vmatpush.bf16.msra.mxu0 %v3408
        %3456 = vmatpush.bf16.msra.mxu0 %v3405
        %3457 = vmatpush.bf16.msra.mxu0 %v3402
        %3458 = vmatmul.bf16.gmra.mxu0 %v3285
        %v3459 = vpop.f32.mrf.mxu0
        %v3460 = vadd.f32 0.0, %v3459
        %v3461 = vpop.f32.mrf.mxu0
        %v3462 = vadd.f32 0.0, %v3461
        %3463 = vmatmul.bf16.gmra.mxu0 %v3286
        %v3464 = vpop.f32.mrf.mxu0
        %v3465 = vadd.f32 0.0, %v3464
        %v3466 = vpop.f32.mrf.mxu0
        %v3467 = vadd.f32 0.0, %v3466
        %3468 = vmatmul.bf16.gmra.mxu0 %v3287
        %v3469 = vpop.f32.mrf.mxu0
        %v3470 = vadd.f32 0.0, %v3469
        %v3471 = vpop.f32.mrf.mxu0
        %v3472 = vadd.f32 0.0, %v3471
        %3473 = vmatmul.bf16.gmra.mxu0 %v3288
        %v3474 = vpop.f32.mrf.mxu0
        %v3475 = vadd.f32 0.0, %v3474
        %v3476 = vpop.f32.mrf.mxu0
        %v3477 = vadd.f32 0.0, %v3476
        %3478 = vdwg.mxu0
        %3479 = vmatpush.bf16.msra.mxu0 %v3424
        %3480 = vmatpush.bf16.msra.mxu0 %v3421
        %3481 = vmatpush.bf16.msra.mxu0 %v3418
        %3482 = vmatpush.bf16.msra.mxu0 %v3415
        %3483 = vmatpush.bf16.msra.mxu0 %v3412
        %3484 = vmatpush.bf16.msra.mxu0 %v3409
        %3485 = vmatpush.bf16.msra.mxu0 %v3406
        %3486 = vmatpush.bf16.msra.mxu0 %v3403
        %3487 = vmatmul.bf16.gmra.mxu0 %v3285
        %v3488 = vpop.f32.mrf.mxu0
        %v3489 = vadd.f32 0.0, %v3488
        %v3490 = vpop.f32.mrf.mxu0
        %v3491 = vadd.f32 0.0, %v3490
        %3492 = vmatmul.bf16.gmra.mxu0 %v3286
        %v3493 = vpop.f32.mrf.mxu0
        %v3494 = vadd.f32 0.0, %v3493
        %v3495 = vpop.f32.mrf.mxu0
        %v3496 = vadd.f32 0.0, %v3495
        %3497 = vmatmul.bf16.gmra.mxu0 %v3287
        %v3498 = vpop.f32.mrf.mxu0
        %v3499 = vadd.f32 0.0, %v3498
        %v3500 = vpop.f32.mrf.mxu0
        %v3501 = vadd.f32 0.0, %v3500
        %3502 = vmatmul.bf16.gmra.mxu0 %v3288
        %v3503 = vpop.f32.mrf.mxu0
        %v3504 = vadd.f32 0.0, %v3503
        %v3505 = vpop.f32.mrf.mxu0
        %v3506 = vadd.f32 0.0, %v3505
        %3507 = vdwg.mxu0
        %3508 = vmatpush.bf16.msra.mxu0 %v3425
        %3509 = vmatpush.bf16.msra.mxu0 %v3422
        %3510 = vmatpush.bf16.msra.mxu0 %v3419
        %3511 = vmatpush.bf16.msra.mxu0 %v3416
        %3512 = vmatpush.bf16.msra.mxu0 %v3413
        %3513 = vmatpush.bf16.msra.mxu0 %v3410
        %3514 = vmatpush.bf16.msra.mxu0 %v3407
        %3515 = vmatpush.bf16.msra.mxu0 %v3404
        %3516 = vmatmul.bf16.gmra.mxu0 %v3285
        %v3517 = vpop.f32.mrf.mxu0
        %v3518 = vadd.f32 0.0, %v3517
        %v3519 = vpop.f32.mrf.mxu0
        %v3520 = vadd.f32 0.0, %v3519
        %3521 = vmatmul.bf16.gmra.mxu0 %v3286
        %v3522 = vpop.f32.mrf.mxu0
        %v3523 = vadd.f32 0.0, %v3522
        %v3524 = vpop.f32.mrf.mxu0
        %v3525 = vadd.f32 0.0, %v3524
        %3526 = vmatmul.bf16.gmra.mxu0 %v3287
        %v3527 = vpop.f32.mrf.mxu0
        %v3528 = vadd.f32 0.0, %v3527
        %v3529 = vpop.f32.mrf.mxu0
        %v3530 = vadd.f32 0.0, %v3529
        %3531 = vmatmul.bf16.gmra.mxu0 %v3288
        %v3532 = vpop.f32.mrf.mxu0
        %v3533 = vadd.f32 0.0, %v3532
        %v3534 = vpop.f32.mrf.mxu0
        %v3535 = vadd.f32 0.0, %v3534
        %3536 = vdwg.mxu0
        %v3537 = vpack.c.bf16 %v3462, %v3460
        %v3538 = vpack.c.bf16 %v3467, %v3465
        %v3539 = vpack.c.bf16 %v3472, %v3470
        %v3540 = vpack.c.bf16 %v3477, %v3475
        %v3541 = vpack.c.bf16 %v3491, %v3489
        %v3542 = vpack.c.bf16 %v3496, %v3494
        %v3543 = vpack.c.bf16 %v3501, %v3499
        %v3544 = vpack.c.bf16 %v3506, %v3504
        %v3545 = vpack.c.bf16 %v3520, %v3518
        %v3546 = vpack.c.bf16 %v3525, %v3523
        %v3547 = vpack.c.bf16 %v3530, %v3528
        %v3548 = vpack.c.bf16 %v3535, %v3533
        %v3550 = vsel %vm1089, %v3537, 0
        %v3553 = vsel %vm1089, %v3538, 0
        %v3556 = vsel %vm1089, %v3539, 0
        %v3559 = vsel %vm1089, %v3540, 0
        %v3562 = vsel %vm1089, %v3541, 0
        %v3565 = vsel %vm1089, %v3542, 0
        %v3568 = vsel %vm1089, %v3543, 0
        %v3571 = vsel %vm1089, %v3544, 0
        %3573 = vmatpush.bf16.xpose.msra.mxu0 0
        %3574 = vmatpush.bf16.xpose.msra.mxu0 0
        %3575 = vmatpush.bf16.xpose.msra.mxu0 0
        %3576 = vmatpush.bf16.xpose.msra.mxu0 0
        %3577 = vmatpush.bf16.xpose.msra.mxu0 %v3571
        %3578 = vmatpush.bf16.xpose.msra.mxu0 %v3568
        %3579 = vmatpush.bf16.xpose.msra.mxu0 %v3565
        %3580 = vmatpush.bf16.xpose.msra.mxu0 %v3562
        %3581 = vmatmul.bf16.gmra.mxu0 %v3550
        %v3582 = vpop.f32.mrf.mxu0
        %v3583 = vadd.f32 %v627, %v3582
        %v3584 = vpop.f32.mrf.mxu0
        %v3585 = vadd.f32 %v628, %v3584
        %3586 = vmatmul.bf16.gmra.mxu0 %v3553
        %v3587 = vpop.f32.mrf.mxu0
        %v3588 = vadd.f32 %v629, %v3587
        %v3589 = vpop.f32.mrf.mxu0
        %v3590 = vadd.f32 %v630, %v3589
        %3591 = vmatmul.bf16.gmra.mxu0 %v3556
        %v3592 = vpop.f32.mrf.mxu0
        %v3593 = vadd.f32 %v631, %v3592
        %v3594 = vpop.f32.mrf.mxu0
        %v3595 = vadd.f32 %v632, %v3594
        %3596 = vmatmul.bf16.gmra.mxu0 %v3559
        %v3597 = vpop.f32.mrf.mxu0
        %v3598 = vadd.f32 %v633, %v3597
        %v3599 = vpop.f32.mrf.mxu0
        %v3600 = vadd.f32 %v634, %v3599
        %3601 = vdwg.mxu0
        %v3602 = vsel %vm1143, %v3583, -inf
        %3603 = vmax.xlane.f32.xlu0 %v3602
        %v3604 = vpop.xlane.xlu0 %3603
        %v3605 = vsel %vm1143, %v3585, -inf
        %3606 = vmax.xlane.f32.xlu0 %v3605
        %v3607 = vpop.xlane.xlu0 %3606
        %v3608 = vsel %vm1143, %v3588, -inf
        %3609 = vmax.xlane.f32.xlu0 %v3608
        %v3610 = vpop.xlane.xlu0 %3609
        %v3611 = vsel %vm1143, %v3590, -inf
        %3612 = vmax.xlane.f32.xlu0 %v3611
        %v3613 = vpop.xlane.xlu0 %3612
        %v3614 = vsel %vm1143, %v3593, -inf
        %3615 = vmax.xlane.f32.xlu0 %v3614
        %v3616 = vpop.xlane.xlu0 %3615
        %v3617 = vsel %vm1143, %v3595, -inf
        %3618 = vmax.xlane.f32.xlu0 %v3617
        %v3619 = vpop.xlane.xlu0 %3618
        %v3620 = vsel %vm1143, %v3598, -inf
        %3621 = vmax.xlane.f32.xlu0 %v3620
        %v3622 = vpop.xlane.xlu0 %3621
        %v3623 = vsel %vm1143, %v3600, -inf
        %3624 = vmax.xlane.f32.xlu0 %v3623
        %v3625 = vpop.xlane.xlu0 %3624
        %v3626 = vsub.f32 %v3583, %v3604
        %v3627 = vsub.f32 %v3585, %v3607
        %v3628 = vsub.f32 %v3588, %v3610
        %v3629 = vsub.f32 %v3590, %v3613
        %v3630 = vsub.f32 %v3593, %v3616
        %v3631 = vsub.f32 %v3595, %v3619
        %v3632 = vsub.f32 %v3598, %v3622
        %v3633 = vsub.f32 %v3600, %v3625
        %v3634 = vmul.f32 %v3626, 1.442695
        %v3635 = vpow.pop %v3634
        %v3636 = vmul.f32 %v3627, 1.442695
        %v3637 = vpow.pop %v3636
        %v3638 = vmul.f32 %v3628, 1.442695
        %v3639 = vpow.pop %v3638
        %v3640 = vmul.f32 %v3629, 1.442695
        %v3641 = vpow.pop %v3640
        %v3642 = vmul.f32 %v3630, 1.442695
        %v3643 = vpow.pop %v3642
        %v3644 = vmul.f32 %v3631, 1.442695
        %v3645 = vpow.pop %v3644
        %v3646 = vmul.f32 %v3632, 1.442695
        %v3647 = vpow.pop %v3646
        %v3648 = vmul.f32 %v3633, 1.442695
        %v3649 = vpow.pop %v3648
        %v3650 = vsel %vm1143, %v3635, 0.0
        %3651 = vadd.xlane.f32.xlu0 %v3650
        %v3652 = vpop.xlane.xlu0 %3651
        %v3653 = vsel %vm1143, %v3637, 0.0
        %3654 = vadd.xlane.f32.xlu0 %v3653
        %v3655 = vpop.xlane.xlu0 %3654
        %v3656 = vsel %vm1143, %v3639, 0.0
        %3657 = vadd.xlane.f32.xlu0 %v3656
        %v3658 = vpop.xlane.xlu0 %3657
        %v3659 = vsel %vm1143, %v3641, 0.0
        %3660 = vadd.xlane.f32.xlu0 %v3659
        %v3661 = vpop.xlane.xlu0 %3660
        %v3662 = vsel %vm1143, %v3643, 0.0
        %3663 = vadd.xlane.f32.xlu0 %v3662
        %v3664 = vpop.xlane.xlu0 %3663
        %v3665 = vsel %vm1143, %v3645, 0.0
        %3666 = vadd.xlane.f32.xlu0 %v3665
        %v3667 = vpop.xlane.xlu0 %3666
        %v3668 = vsel %vm1143, %v3647, 0.0
        %3669 = vadd.xlane.f32.xlu0 %v3668
        %v3670 = vpop.xlane.xlu0 %3669
        %v3671 = vsel %vm1143, %v3649, 0.0
        %3672 = vadd.xlane.f32.xlu0 %v3671
        %v3673 = vpop.xlane.xlu0 %3672
        %v3674 = vrcp.pop %v3652
        %v3675 = vrcp.pop %v3655
        %v3676 = vrcp.pop %v3658
        %v3677 = vrcp.pop %v3661
        %v3678 = vrcp.pop %v3664
        %v3679 = vrcp.pop %v3667
        %v3680 = vrcp.pop %v3670
        %v3681 = vrcp.pop %v3673
        %v3682 = vmul.f32 %v3635, %v3674
        %v3683 = vmul.f32 %v3637, %v3675
        %v3684 = vmul.f32 %v3639, %v3676
        %v3685 = vmul.f32 %v3641, %v3677
        %v3686 = vmul.f32 %v3643, %v3678
        %v3687 = vmul.f32 %v3645, %v3679
        %v3688 = vmul.f32 %v3647, %v3680
        %v3689 = vmul.f32 %v3649, %v3681
        %v3690 = vpack.c.bf16 %v3683, %v3682
        %v3691 = vpack.c.bf16 %v3685, %v3684
        %v3692 = vpack.c.bf16 %v3687, %v3686
        %v3693 = vpack.c.bf16 %v3689, %v3688
        %v3695 = vsel %vm1143, %v3690, 0
        %v3698 = vsel %vm1143, %v3691, 0
        %v3701 = vsel %vm1143, %v3692, 0
        %v3704 = vsel %vm1143, %v3693, 0
        %3706 = vmatpush.bf16.msra.mxu0 0
        %3707 = vmatpush.bf16.msra.mxu0 0
        %3708 = vmatpush.bf16.msra.mxu0 0
        %3709 = vmatpush.bf16.msra.mxu0 0
        %3710 = vmatpush.bf16.msra.mxu0 %v3548
        %3711 = vmatpush.bf16.msra.mxu0 %v3547
        %3712 = vmatpush.bf16.msra.mxu0 %v3546
        %3713 = vmatpush.bf16.msra.mxu0 %v3545
        %3714 = vmatmul.bf16.gmra.mxu0 %v3695
        %v3715 = vpop.f32.mrf.mxu0
        %v3716 = vadd.f32 0.0, %v3715
        %v3717 = vpop.f32.mrf.mxu0
        %v3718 = vadd.f32 0.0, %v3717
        %3719 = vmatmul.bf16.gmra.mxu0 %v3698
        %v3720 = vpop.f32.mrf.mxu0
        %v3721 = vadd.f32 0.0, %v3720
        %v3722 = vpop.f32.mrf.mxu0
        %v3723 = vadd.f32 0.0, %v3722
        %3724 = vmatmul.bf16.gmra.mxu0 %v3701
        %v3725 = vpop.f32.mrf.mxu0
        %v3726 = vadd.f32 0.0, %v3725
        %v3727 = vpop.f32.mrf.mxu0
        %v3728 = vadd.f32 0.0, %v3727
        %3729 = vmatmul.bf16.gmra.mxu0 %v3704
        %v3730 = vpop.f32.mrf.mxu0
        %v3731 = vadd.f32 0.0, %v3730
        %v3732 = vpop.f32.mrf.mxu0
        %v3733 = vadd.f32 0.0, %v3732
        %3734 = vdwg.mxu0
        %3739 = vrot.lane.b32.xlu0 %v3537, 96
        %v3740 = vpop.permute.xlu0 %3739
        %3741 = vrot.lane.b32.xlu0 %v3538, 96
        %v3742 = vpop.permute.xlu0 %3741
        %3743 = vrot.lane.b32.xlu0 %v3539, 96
        %v3744 = vpop.permute.xlu0 %3743
        %3745 = vrot.lane.b32.xlu0 %v3540, 96
        %v3746 = vpop.permute.xlu0 %3745
        %3751 = vrot.lane.b32.xlu0 %v3541, 96
        %v3752 = vpop.permute.xlu0 %3751
        %3753 = vrot.lane.b32.xlu0 %v3542, 96
        %v3754 = vpop.permute.xlu0 %3753
        %3755 = vrot.lane.b32.xlu0 %v3543, 96
        %v3756 = vpop.permute.xlu0 %3755
        %3757 = vrot.lane.b32.xlu0 %v3544, 96
        %v3758 = vpop.permute.xlu0 %3757
        %v3760 = vsel %vm1089, %v3740, 0
        %v3763 = vsel %vm1089, %v3742, 0
        %v3766 = vsel %vm1089, %v3744, 0
        %v3769 = vsel %vm1089, %v3746, 0
        %v3772 = vsel %vm1089, %v3752, 0
        %v3775 = vsel %vm1089, %v3754, 0
        %v3778 = vsel %vm1089, %v3756, 0
        %v3781 = vsel %vm1089, %v3758, 0
        %3783 = vmatpush.bf16.xpose.msra.mxu0 0
        %3784 = vmatpush.bf16.xpose.msra.mxu0 0
        %3785 = vmatpush.bf16.xpose.msra.mxu0 0
        %3786 = vmatpush.bf16.xpose.msra.mxu0 0
        %3787 = vmatpush.bf16.xpose.msra.mxu0 %v3781
        %3788 = vmatpush.bf16.xpose.msra.mxu0 %v3778
        %3789 = vmatpush.bf16.xpose.msra.mxu0 %v3775
        %3790 = vmatpush.bf16.xpose.msra.mxu0 %v3772
        %3791 = vmatmul.bf16.gmra.mxu0 %v3760
        %v3792 = vpop.f32.mrf.mxu0
        %v3793 = vadd.f32 %v627, %v3792
        %v3794 = vpop.f32.mrf.mxu0
        %v3795 = vadd.f32 %v628, %v3794
        %3796 = vmatmul.bf16.gmra.mxu0 %v3763
        %v3797 = vpop.f32.mrf.mxu0
        %v3798 = vadd.f32 %v629, %v3797
        %v3799 = vpop.f32.mrf.mxu0
        %v3800 = vadd.f32 %v630, %v3799
        %3801 = vmatmul.bf16.gmra.mxu0 %v3766
        %v3802 = vpop.f32.mrf.mxu0
        %v3803 = vadd.f32 %v631, %v3802
        %v3804 = vpop.f32.mrf.mxu0
        %v3805 = vadd.f32 %v632, %v3804
        %3806 = vmatmul.bf16.gmra.mxu0 %v3769
        %v3807 = vpop.f32.mrf.mxu0
        %v3808 = vadd.f32 %v633, %v3807
        %v3809 = vpop.f32.mrf.mxu0
        %v3810 = vadd.f32 %v634, %v3809
        %3811 = vdwg.mxu0
        %v3812 = vsel %vm1143, %v3793, -inf
        %3813 = vmax.xlane.f32.xlu0 %v3812
        %v3814 = vpop.xlane.xlu0 %3813
        %v3815 = vsel %vm1143, %v3795, -inf
        %3816 = vmax.xlane.f32.xlu0 %v3815
        %v3817 = vpop.xlane.xlu0 %3816
        %v3818 = vsel %vm1143, %v3798, -inf
        %3819 = vmax.xlane.f32.xlu0 %v3818
        %v3820 = vpop.xlane.xlu0 %3819
        %v3821 = vsel %vm1143, %v3800, -inf
        %3822 = vmax.xlane.f32.xlu0 %v3821
        %v3823 = vpop.xlane.xlu0 %3822
        %v3824 = vsel %vm1143, %v3803, -inf
        %3825 = vmax.xlane.f32.xlu0 %v3824
        %v3826 = vpop.xlane.xlu0 %3825
        %v3827 = vsel %vm1143, %v3805, -inf
        %3828 = vmax.xlane.f32.xlu0 %v3827
        %v3829 = vpop.xlane.xlu0 %3828
        %v3830 = vsel %vm1143, %v3808, -inf
        %3831 = vmax.xlane.f32.xlu0 %v3830
        %v3832 = vpop.xlane.xlu0 %3831
        %v3833 = vsel %vm1143, %v3810, -inf
        %3834 = vmax.xlane.f32.xlu0 %v3833
        %v3835 = vpop.xlane.xlu0 %3834
        %v3836 = vsub.f32 %v3793, %v3814
        %v3837 = vsub.f32 %v3795, %v3817
        %v3838 = vsub.f32 %v3798, %v3820
        %v3839 = vsub.f32 %v3800, %v3823
        %v3840 = vsub.f32 %v3803, %v3826
        %v3841 = vsub.f32 %v3805, %v3829
        %v3842 = vsub.f32 %v3808, %v3832
        %v3843 = vsub.f32 %v3810, %v3835
        %v3844 = vmul.f32 %v3836, 1.442695
        %v3845 = vpow.pop %v3844
        %v3846 = vmul.f32 %v3837, 1.442695
        %v3847 = vpow.pop %v3846
        %v3848 = vmul.f32 %v3838, 1.442695
        %v3849 = vpow.pop %v3848
        %v3850 = vmul.f32 %v3839, 1.442695
        %v3851 = vpow.pop %v3850
        %v3852 = vmul.f32 %v3840, 1.442695
        %v3853 = vpow.pop %v3852
        %v3854 = vmul.f32 %v3841, 1.442695
        %v3855 = vpow.pop %v3854
        %v3856 = vmul.f32 %v3842, 1.442695
        %v3857 = vpow.pop %v3856
        %v3858 = vmul.f32 %v3843, 1.442695
        %v3859 = vpow.pop %v3858
        %v3860 = vsel %vm1143, %v3845, 0.0
        %3861 = vadd.xlane.f32.xlu0 %v3860
        %v3862 = vpop.xlane.xlu0 %3861
        %v3863 = vsel %vm1143, %v3847, 0.0
        %3864 = vadd.xlane.f32.xlu0 %v3863
        %v3865 = vpop.xlane.xlu0 %3864
        %v3866 = vsel %vm1143, %v3849, 0.0
        %3867 = vadd.xlane.f32.xlu0 %v3866
        %v3868 = vpop.xlane.xlu0 %3867
        %v3869 = vsel %vm1143, %v3851, 0.0
        %3870 = vadd.xlane.f32.xlu0 %v3869
        %v3871 = vpop.xlane.xlu0 %3870
        %v3872 = vsel %vm1143, %v3853, 0.0
        %3873 = vadd.xlane.f32.xlu0 %v3872
        %v3874 = vpop.xlane.xlu0 %3873
        %v3875 = vsel %vm1143, %v3855, 0.0
        %3876 = vadd.xlane.f32.xlu0 %v3875
        %v3877 = vpop.xlane.xlu0 %3876
        %v3878 = vsel %vm1143, %v3857, 0.0
        %3879 = vadd.xlane.f32.xlu0 %v3878
        %v3880 = vpop.xlane.xlu0 %3879
        %v3881 = vsel %vm1143, %v3859, 0.0
        %3882 = vadd.xlane.f32.xlu0 %v3881
        %v3883 = vpop.xlane.xlu0 %3882
        %v3884 = vrcp.pop %v3862
        %v3885 = vrcp.pop %v3865
        %v3886 = vrcp.pop %v3868
        %v3887 = vrcp.pop %v3871
        %v3888 = vrcp.pop %v3874
        %v3889 = vrcp.pop %v3877
        %v3890 = vrcp.pop %v3880
        %v3891 = vrcp.pop %v3883
        %v3892 = vmul.f32 %v3845, %v3884
        %v3893 = vmul.f32 %v3847, %v3885
        %v3894 = vmul.f32 %v3849, %v3886
        %v3895 = vmul.f32 %v3851, %v3887
        %v3896 = vmul.f32 %v3853, %v3888
        %v3897 = vmul.f32 %v3855, %v3889
        %v3898 = vmul.f32 %v3857, %v3890
        %v3899 = vmul.f32 %v3859, %v3891
        %v3900 = vpack.c.bf16 %v3893, %v3892
        %v3901 = vpack.c.bf16 %v3895, %v3894
        %v3902 = vpack.c.bf16 %v3897, %v3896
        %v3903 = vpack.c.bf16 %v3899, %v3898
        %3908 = vrot.lane.b32.xlu0 %v3545, 96
        %v3909 = vpop.permute.xlu0 %3908
        %3910 = vrot.lane.b32.xlu0 %v3546, 96
        %v3911 = vpop.permute.xlu0 %3910
        %3912 = vrot.lane.b32.xlu0 %v3547, 96
        %v3913 = vpop.permute.xlu0 %3912
        %3914 = vrot.lane.b32.xlu0 %v3548, 96
        %v3915 = vpop.permute.xlu0 %3914
        %v3921 = vsel %vm1143, %v3900, 0
        %v3924 = vsel %vm1143, %v3901, 0
        %v3927 = vsel %vm1143, %v3902, 0
        %v3930 = vsel %vm1143, %v3903, 0
        %3932 = vmatpush.bf16.msra.mxu0 0
        %3933 = vmatpush.bf16.msra.mxu0 0
        %3934 = vmatpush.bf16.msra.mxu0 0
        %3935 = vmatpush.bf16.msra.mxu0 0
        %3936 = vmatpush.bf16.msra.mxu0 %v3915
        %3937 = vmatpush.bf16.msra.mxu0 %v3913
        %3938 = vmatpush.bf16.msra.mxu0 %v3911
        %3939 = vmatpush.bf16.msra.mxu0 %v3909
        %3940 = vmatmul.bf16.gmra.mxu0 %v3921
        %v3941 = vpop.f32.mrf.mxu0
        %v3942 = vadd.f32 0.0, %v3941
        %v3943 = vpop.f32.mrf.mxu0
        %v3944 = vadd.f32 0.0, %v3943
        %3945 = vmatmul.bf16.gmra.mxu0 %v3924
        %v3946 = vpop.f32.mrf.mxu0
        %v3947 = vadd.f32 0.0, %v3946
        %v3948 = vpop.f32.mrf.mxu0
        %v3949 = vadd.f32 0.0, %v3948
        %3950 = vmatmul.bf16.gmra.mxu0 %v3927
        %v3951 = vpop.f32.mrf.mxu0
        %v3952 = vadd.f32 0.0, %v3951
        %v3953 = vpop.f32.mrf.mxu0
        %v3954 = vadd.f32 0.0, %v3953
        %3955 = vmatmul.bf16.gmra.mxu0 %v3930
        %v3956 = vpop.f32.mrf.mxu0
        %v3957 = vadd.f32 0.0, %v3956
        %v3958 = vpop.f32.mrf.mxu0
        %v3959 = vadd.f32 0.0, %v3958
        %3960 = vdwg.mxu0
        %3961 = vrot.lane.b32.xlu0 %v3537, 64
        %v3962 = vpop.permute.xlu0 %3961
        %3963 = vrot.lane.b32.xlu0 %v3538, 64
        %v3964 = vpop.permute.xlu0 %3963
        %3965 = vrot.lane.b32.xlu0 %v3539, 64
        %v3966 = vpop.permute.xlu0 %3965
        %3967 = vrot.lane.b32.xlu0 %v3540, 64
        %v3968 = vpop.permute.xlu0 %3967
        %3969 = vrot.lane.b32.xlu0 %v3541, 64
        %v3970 = vpop.permute.xlu0 %3969
        %3971 = vrot.lane.b32.xlu0 %v3542, 64
        %v3972 = vpop.permute.xlu0 %3971
        %3973 = vrot.lane.b32.xlu0 %v3543, 64
        %v3974 = vpop.permute.xlu0 %3973
        %3975 = vrot.lane.b32.xlu0 %v3544, 64
        %v3976 = vpop.permute.xlu0 %3975
        %v3978 = vsel %vm1089, %v3962, 0
        %v3981 = vsel %vm1089, %v3964, 0
        %v3984 = vsel %vm1089, %v3966, 0
        %v3987 = vsel %vm1089, %v3968, 0
        %v3990 = vsel %vm1089, %v3970, 0
        %v3993 = vsel %vm1089, %v3972, 0
        %v3996 = vsel %vm1089, %v3974, 0
        %v3999 = vsel %vm1089, %v3976, 0
        %4001 = vmatpush.bf16.xpose.msra.mxu0 0
        %4002 = vmatpush.bf16.xpose.msra.mxu0 0
        %4003 = vmatpush.bf16.xpose.msra.mxu0 0
        %4004 = vmatpush.bf16.xpose.msra.mxu0 0
        %4005 = vmatpush.bf16.xpose.msra.mxu0 %v3999
        %4006 = vmatpush.bf16.xpose.msra.mxu0 %v3996
        %4007 = vmatpush.bf16.xpose.msra.mxu0 %v3993
        %4008 = vmatpush.bf16.xpose.msra.mxu0 %v3990
        %4009 = vmatmul.bf16.gmra.mxu0 %v3978
        %v4010 = vpop.f32.mrf.mxu0
        %v4011 = vadd.f32 %v627, %v4010
        %v4012 = vpop.f32.mrf.mxu0
        %v4013 = vadd.f32 %v628, %v4012
        %4014 = vmatmul.bf16.gmra.mxu0 %v3981
        %v4015 = vpop.f32.mrf.mxu0
        %v4016 = vadd.f32 %v629, %v4015
        %v4017 = vpop.f32.mrf.mxu0
        %v4018 = vadd.f32 %v630, %v4017
        %4019 = vmatmul.bf16.gmra.mxu0 %v3984
        %v4020 = vpop.f32.mrf.mxu0
        %v4021 = vadd.f32 %v631, %v4020
        %v4022 = vpop.f32.mrf.mxu0
        %v4023 = vadd.f32 %v632, %v4022
        %4024 = vmatmul.bf16.gmra.mxu0 %v3987
        %v4025 = vpop.f32.mrf.mxu0
        %v4026 = vadd.f32 %v633, %v4025
        %v4027 = vpop.f32.mrf.mxu0
        %v4028 = vadd.f32 %v634, %v4027
        %4029 = vdwg.mxu0
        %v4030 = vsel %vm1143, %v4011, -inf
        %4031 = vmax.xlane.f32.xlu0 %v4030
        %v4032 = vpop.xlane.xlu0 %4031
        %v4033 = vsel %vm1143, %v4013, -inf
        %4034 = vmax.xlane.f32.xlu0 %v4033
        %v4035 = vpop.xlane.xlu0 %4034
        %v4036 = vsel %vm1143, %v4016, -inf
        %4037 = vmax.xlane.f32.xlu0 %v4036
        %v4038 = vpop.xlane.xlu0 %4037
        %v4039 = vsel %vm1143, %v4018, -inf
        %4040 = vmax.xlane.f32.xlu0 %v4039
        %v4041 = vpop.xlane.xlu0 %4040
        %v4042 = vsel %vm1143, %v4021, -inf
        %4043 = vmax.xlane.f32.xlu0 %v4042
        %v4044 = vpop.xlane.xlu0 %4043
        %v4045 = vsel %vm1143, %v4023, -inf
        %4046 = vmax.xlane.f32.xlu0 %v4045
        %v4047 = vpop.xlane.xlu0 %4046
        %v4048 = vsel %vm1143, %v4026, -inf
        %4049 = vmax.xlane.f32.xlu0 %v4048
        %v4050 = vpop.xlane.xlu0 %4049
        %v4051 = vsel %vm1143, %v4028, -inf
        %4052 = vmax.xlane.f32.xlu0 %v4051
        %v4053 = vpop.xlane.xlu0 %4052
        %v4054 = vsub.f32 %v4011, %v4032
        %v4055 = vsub.f32 %v4013, %v4035
        %v4056 = vsub.f32 %v4016, %v4038
        %v4057 = vsub.f32 %v4018, %v4041
        %v4058 = vsub.f32 %v4021, %v4044
        %v4059 = vsub.f32 %v4023, %v4047
        %v4060 = vsub.f32 %v4026, %v4050
        %v4061 = vsub.f32 %v4028, %v4053
        %v4062 = vmul.f32 %v4054, 1.442695
        %v4063 = vpow.pop %v4062
        %v4064 = vmul.f32 %v4055, 1.442695
        %v4065 = vpow.pop %v4064
        %v4066 = vmul.f32 %v4056, 1.442695
        %v4067 = vpow.pop %v4066
        %v4068 = vmul.f32 %v4057, 1.442695
        %v4069 = vpow.pop %v4068
        %v4070 = vmul.f32 %v4058, 1.442695
        %v4071 = vpow.pop %v4070
        %v4072 = vmul.f32 %v4059, 1.442695
        %v4073 = vpow.pop %v4072
        %v4074 = vmul.f32 %v4060, 1.442695
        %v4075 = vpow.pop %v4074
        %v4076 = vmul.f32 %v4061, 1.442695
        %v4077 = vpow.pop %v4076
        %v4078 = vsel %vm1143, %v4063, 0.0
        %4079 = vadd.xlane.f32.xlu0 %v4078
        %v4080 = vpop.xlane.xlu0 %4079
        %v4081 = vsel %vm1143, %v4065, 0.0
        %4082 = vadd.xlane.f32.xlu0 %v4081
        %v4083 = vpop.xlane.xlu0 %4082
        %v4084 = vsel %vm1143, %v4067, 0.0
        %4085 = vadd.xlane.f32.xlu0 %v4084
        %v4086 = vpop.xlane.xlu0 %4085
        %v4087 = vsel %vm1143, %v4069, 0.0
        %4088 = vadd.xlane.f32.xlu0 %v4087
        %v4089 = vpop.xlane.xlu0 %4088
        %v4090 = vsel %vm1143, %v4071, 0.0
        %4091 = vadd.xlane.f32.xlu0 %v4090
        %v4092 = vpop.xlane.xlu0 %4091
        %v4093 = vsel %vm1143, %v4073, 0.0
        %4094 = vadd.xlane.f32.xlu0 %v4093
        %v4095 = vpop.xlane.xlu0 %4094
        %v4096 = vsel %vm1143, %v4075, 0.0
        %4097 = vadd.xlane.f32.xlu0 %v4096
        %v4098 = vpop.xlane.xlu0 %4097
        %v4099 = vsel %vm1143, %v4077, 0.0
        %4100 = vadd.xlane.f32.xlu0 %v4099
        %v4101 = vpop.xlane.xlu0 %4100
        %v4102 = vrcp.pop %v4080
        %v4103 = vrcp.pop %v4083
        %v4104 = vrcp.pop %v4086
        %v4105 = vrcp.pop %v4089
        %v4106 = vrcp.pop %v4092
        %v4107 = vrcp.pop %v4095
        %v4108 = vrcp.pop %v4098
        %v4109 = vrcp.pop %v4101
        %v4110 = vmul.f32 %v4063, %v4102
        %v4111 = vmul.f32 %v4065, %v4103
        %v4112 = vmul.f32 %v4067, %v4104
        %v4113 = vmul.f32 %v4069, %v4105
        %v4114 = vmul.f32 %v4071, %v4106
        %v4115 = vmul.f32 %v4073, %v4107
        %v4116 = vmul.f32 %v4075, %v4108
        %v4117 = vmul.f32 %v4077, %v4109
        %v4118 = vpack.c.bf16 %v4111, %v4110
        %v4119 = vpack.c.bf16 %v4113, %v4112
        %v4120 = vpack.c.bf16 %v4115, %v4114
        %v4121 = vpack.c.bf16 %v4117, %v4116
        %4122 = vrot.lane.b32.xlu0 %v3545, 64
        %v4123 = vpop.permute.xlu0 %4122
        %4124 = vrot.lane.b32.xlu0 %v3546, 64
        %v4125 = vpop.permute.xlu0 %4124
        %4126 = vrot.lane.b32.xlu0 %v3547, 64
        %v4127 = vpop.permute.xlu0 %4126
        %4128 = vrot.lane.b32.xlu0 %v3548, 64
        %v4129 = vpop.permute.xlu0 %4128
        %v4135 = vsel %vm1143, %v4118, 0
        %v4138 = vsel %vm1143, %v4119, 0
        %v4141 = vsel %vm1143, %v4120, 0
        %v4144 = vsel %vm1143, %v4121, 0
        %4146 = vmatpush.bf16.msra.mxu0 0
        %4147 = vmatpush.bf16.msra.mxu0 0
        %4148 = vmatpush.bf16.msra.mxu0 0
        %4149 = vmatpush.bf16.msra.mxu0 0
        %4150 = vmatpush.bf16.msra.mxu0 %v4129
        %4151 = vmatpush.bf16.msra.mxu0 %v4127
        %4152 = vmatpush.bf16.msra.mxu0 %v4125
        %4153 = vmatpush.bf16.msra.mxu0 %v4123
        %4154 = vmatmul.bf16.gmra.mxu0 %v4135
        %v4155 = vpop.f32.mrf.mxu0
        %v4156 = vadd.f32 0.0, %v4155
        %v4157 = vpop.f32.mrf.mxu0
        %v4158 = vadd.f32 0.0, %v4157
        %4159 = vmatmul.bf16.gmra.mxu0 %v4138
        %v4160 = vpop.f32.mrf.mxu0
        %v4161 = vadd.f32 0.0, %v4160
        %v4162 = vpop.f32.mrf.mxu0
        %v4163 = vadd.f32 0.0, %v4162
        %4164 = vmatmul.bf16.gmra.mxu0 %v4141
        %v4165 = vpop.f32.mrf.mxu0
        %v4166 = vadd.f32 0.0, %v4165
        %v4167 = vpop.f32.mrf.mxu0
        %v4168 = vadd.f32 0.0, %v4167
        %4169 = vmatmul.bf16.gmra.mxu0 %v4144
        %v4170 = vpop.f32.mrf.mxu0
        %v4171 = vadd.f32 0.0, %v4170
        %v4172 = vpop.f32.mrf.mxu0
        %v4173 = vadd.f32 0.0, %v4172
        %4174 = vdwg.mxu0
        %4175 = vrot.lane.b32.xlu0 %v3537, 32
        %v4176 = vpop.permute.xlu0 %4175
        %4177 = vrot.lane.b32.xlu0 %v3538, 32
        %v4178 = vpop.permute.xlu0 %4177
        %4179 = vrot.lane.b32.xlu0 %v3539, 32
        %v4180 = vpop.permute.xlu0 %4179
        %4181 = vrot.lane.b32.xlu0 %v3540, 32
        %v4182 = vpop.permute.xlu0 %4181
        %4183 = vrot.lane.b32.xlu0 %v3541, 32
        %v4184 = vpop.permute.xlu0 %4183
        %4185 = vrot.lane.b32.xlu0 %v3542, 32
        %v4186 = vpop.permute.xlu0 %4185
        %4187 = vrot.lane.b32.xlu0 %v3543, 32
        %v4188 = vpop.permute.xlu0 %4187
        %4189 = vrot.lane.b32.xlu0 %v3544, 32
        %v4190 = vpop.permute.xlu0 %4189
        %v4192 = vsel %vm1089, %v4176, 0
        %v4195 = vsel %vm1089, %v4178, 0
        %v4198 = vsel %vm1089, %v4180, 0
        %v4201 = vsel %vm1089, %v4182, 0
        %v4204 = vsel %vm1089, %v4184, 0
        %v4207 = vsel %vm1089, %v4186, 0
        %v4210 = vsel %vm1089, %v4188, 0
        %v4213 = vsel %vm1089, %v4190, 0
        %4215 = vmatpush.bf16.xpose.msra.mxu0 0
        %4216 = vmatpush.bf16.xpose.msra.mxu0 0
        %4217 = vmatpush.bf16.xpose.msra.mxu0 0
        %4218 = vmatpush.bf16.xpose.msra.mxu0 0
        %4219 = vmatpush.bf16.xpose.msra.mxu0 %v4213
        %4220 = vmatpush.bf16.xpose.msra.mxu0 %v4210
        %4221 = vmatpush.bf16.xpose.msra.mxu0 %v4207
        %4222 = vmatpush.bf16.xpose.msra.mxu0 %v4204
        %4223 = vmatmul.bf16.gmra.mxu0 %v4192
        %v4224 = vpop.f32.mrf.mxu0
        %v4225 = vadd.f32 %v627, %v4224
        %v4226 = vpop.f32.mrf.mxu0
        %v4227 = vadd.f32 %v628, %v4226
        %4228 = vmatmul.bf16.gmra.mxu0 %v4195
        %v4229 = vpop.f32.mrf.mxu0
        %v4230 = vadd.f32 %v629, %v4229
        %v4231 = vpop.f32.mrf.mxu0
        %v4232 = vadd.f32 %v630, %v4231
        %4233 = vmatmul.bf16.gmra.mxu0 %v4198
        %v4234 = vpop.f32.mrf.mxu0
        %v4235 = vadd.f32 %v631, %v4234
        %v4236 = vpop.f32.mrf.mxu0
        %v4237 = vadd.f32 %v632, %v4236
        %4238 = vmatmul.bf16.gmra.mxu0 %v4201
        %v4239 = vpop.f32.mrf.mxu0
        %v4240 = vadd.f32 %v633, %v4239
        %v4241 = vpop.f32.mrf.mxu0
        %v4242 = vadd.f32 %v634, %v4241
        %4243 = vdwg.mxu0
        %v4244 = vsel %vm1143, %v4225, -inf
        %4245 = vmax.xlane.f32.xlu0 %v4244
        %v4246 = vpop.xlane.xlu0 %4245
        %v4247 = vsel %vm1143, %v4227, -inf
        %4248 = vmax.xlane.f32.xlu0 %v4247
        %v4249 = vpop.xlane.xlu0 %4248
        %v4250 = vsel %vm1143, %v4230, -inf
        %4251 = vmax.xlane.f32.xlu0 %v4250
        %v4252 = vpop.xlane.xlu0 %4251
        %v4253 = vsel %vm1143, %v4232, -inf
        %4254 = vmax.xlane.f32.xlu0 %v4253
        %v4255 = vpop.xlane.xlu0 %4254
        %v4256 = vsel %vm1143, %v4235, -inf
        %4257 = vmax.xlane.f32.xlu0 %v4256
        %v4258 = vpop.xlane.xlu0 %4257
        %v4259 = vsel %vm1143, %v4237, -inf
        %4260 = vmax.xlane.f32.xlu0 %v4259
        %v4261 = vpop.xlane.xlu0 %4260
        %v4262 = vsel %vm1143, %v4240, -inf
        %4263 = vmax.xlane.f32.xlu0 %v4262
        %v4264 = vpop.xlane.xlu0 %4263
        %v4265 = vsel %vm1143, %v4242, -inf
        %4266 = vmax.xlane.f32.xlu0 %v4265
        %v4267 = vpop.xlane.xlu0 %4266
        %v4268 = vsub.f32 %v4225, %v4246
        %v4269 = vsub.f32 %v4227, %v4249
        %v4270 = vsub.f32 %v4230, %v4252
        %v4271 = vsub.f32 %v4232, %v4255
        %v4272 = vsub.f32 %v4235, %v4258
        %v4273 = vsub.f32 %v4237, %v4261
        %v4274 = vsub.f32 %v4240, %v4264
        %v4275 = vsub.f32 %v4242, %v4267
        %v4276 = vmul.f32 %v4268, 1.442695
        %v4277 = vpow.pop %v4276
        %v4278 = vmul.f32 %v4269, 1.442695
        %v4279 = vpow.pop %v4278
        %v4280 = vmul.f32 %v4270, 1.442695
        %v4281 = vpow.pop %v4280
        %v4282 = vmul.f32 %v4271, 1.442695
        %v4283 = vpow.pop %v4282
        %v4284 = vmul.f32 %v4272, 1.442695
        %v4285 = vpow.pop %v4284
        %v4286 = vmul.f32 %v4273, 1.442695
        %v4287 = vpow.pop %v4286
        %v4288 = vmul.f32 %v4274, 1.442695
        %v4289 = vpow.pop %v4288
        %v4290 = vmul.f32 %v4275, 1.442695
        %v4291 = vpow.pop %v4290
        %v4292 = vsel %vm1143, %v4277, 0.0
        %4293 = vadd.xlane.f32.xlu0 %v4292
        %v4294 = vpop.xlane.xlu0 %4293
        %v4295 = vsel %vm1143, %v4279, 0.0
        %4296 = vadd.xlane.f32.xlu0 %v4295
        %v4297 = vpop.xlane.xlu0 %4296
        %v4298 = vsel %vm1143, %v4281, 0.0
        %4299 = vadd.xlane.f32.xlu0 %v4298
        %v4300 = vpop.xlane.xlu0 %4299
        %v4301 = vsel %vm1143, %v4283, 0.0
        %4302 = vadd.xlane.f32.xlu0 %v4301
        %v4303 = vpop.xlane.xlu0 %4302
        %v4304 = vsel %vm1143, %v4285, 0.0
        %4305 = vadd.xlane.f32.xlu0 %v4304
        %v4306 = vpop.xlane.xlu0 %4305
        %v4307 = vsel %vm1143, %v4287, 0.0
        %4308 = vadd.xlane.f32.xlu0 %v4307
        %v4309 = vpop.xlane.xlu0 %4308
        %v4310 = vsel %vm1143, %v4289, 0.0
        %4311 = vadd.xlane.f32.xlu0 %v4310
        %v4312 = vpop.xlane.xlu0 %4311
        %v4313 = vsel %vm1143, %v4291, 0.0
        %4314 = vadd.xlane.f32.xlu0 %v4313
        %v4315 = vpop.xlane.xlu0 %4314
        %v4316 = vrcp.pop %v4294
        %v4317 = vrcp.pop %v4297
        %v4318 = vrcp.pop %v4300
        %v4319 = vrcp.pop %v4303
        %v4320 = vrcp.pop %v4306
        %v4321 = vrcp.pop %v4309
        %v4322 = vrcp.pop %v4312
        %v4323 = vrcp.pop %v4315
        %v4324 = vmul.f32 %v4277, %v4316
        %v4325 = vmul.f32 %v4279, %v4317
        %v4326 = vmul.f32 %v4281, %v4318
        %v4327 = vmul.f32 %v4283, %v4319
        %v4328 = vmul.f32 %v4285, %v4320
        %v4329 = vmul.f32 %v4287, %v4321
        %v4330 = vmul.f32 %v4289, %v4322
        %v4331 = vmul.f32 %v4291, %v4323
        %v4332 = vpack.c.bf16 %v4325, %v4324
        %v4333 = vpack.c.bf16 %v4327, %v4326
        %v4334 = vpack.c.bf16 %v4329, %v4328
        %v4335 = vpack.c.bf16 %v4331, %v4330
        %4336 = vrot.lane.b32.xlu0 %v3545, 32
        %v4337 = vpop.permute.xlu0 %4336
        %4338 = vrot.lane.b32.xlu0 %v3546, 32
        %v4339 = vpop.permute.xlu0 %4338
        %4340 = vrot.lane.b32.xlu0 %v3547, 32
        %v4341 = vpop.permute.xlu0 %4340
        %4342 = vrot.lane.b32.xlu0 %v3548, 32
        %v4343 = vpop.permute.xlu0 %4342
        %v4349 = vsel %vm1143, %v4332, 0
        %v4352 = vsel %vm1143, %v4333, 0
        %v4355 = vsel %vm1143, %v4334, 0
        %v4358 = vsel %vm1143, %v4335, 0
        %4360 = vmatpush.bf16.msra.mxu0 0
        %4361 = vmatpush.bf16.msra.mxu0 0
        %4362 = vmatpush.bf16.msra.mxu0 0
        %4363 = vmatpush.bf16.msra.mxu0 0
        %4364 = vmatpush.bf16.msra.mxu0 %v4343
        %4365 = vmatpush.bf16.msra.mxu0 %v4341
        %4366 = vmatpush.bf16.msra.mxu0 %v4339
        %4367 = vmatpush.bf16.msra.mxu0 %v4337
        %4368 = vmatmul.bf16.gmra.mxu0 %v4349
        %v4369 = vpop.f32.mrf.mxu0
        %v4370 = vadd.f32 0.0, %v4369
        %v4371 = vpop.f32.mrf.mxu0
        %v4372 = vadd.f32 0.0, %v4371
        %4373 = vmatmul.bf16.gmra.mxu0 %v4352
        %v4374 = vpop.f32.mrf.mxu0
        %v4375 = vadd.f32 0.0, %v4374
        %v4376 = vpop.f32.mrf.mxu0
        %v4377 = vadd.f32 0.0, %v4376
        %4378 = vmatmul.bf16.gmra.mxu0 %v4355
        %v4379 = vpop.f32.mrf.mxu0
        %v4380 = vadd.f32 0.0, %v4379
        %v4381 = vpop.f32.mrf.mxu0
        %v4382 = vadd.f32 0.0, %v4381
        %4383 = vmatmul.bf16.gmra.mxu0 %v4358
        %v4384 = vpop.f32.mrf.mxu0
        %v4385 = vadd.f32 0.0, %v4384
        %v4386 = vpop.f32.mrf.mxu0
        %v4387 = vadd.f32 0.0, %v4386
        %4388 = vdwg.mxu0
        %4397 = vrot.lane.b32.xlu0 %v3942, 32
        %v4398 = vpop.permute.xlu0 %4397
        %4399 = vrot.lane.b32.xlu0 %v3944, 32
        %v4400 = vpop.permute.xlu0 %4399
        %4401 = vrot.lane.b32.xlu0 %v3947, 32
        %v4402 = vpop.permute.xlu0 %4401
        %4403 = vrot.lane.b32.xlu0 %v3949, 32
        %v4404 = vpop.permute.xlu0 %4403
        %4405 = vrot.lane.b32.xlu0 %v3952, 32
        %v4406 = vpop.permute.xlu0 %4405
        %4407 = vrot.lane.b32.xlu0 %v3954, 32
        %v4408 = vpop.permute.xlu0 %4407
        %4409 = vrot.lane.b32.xlu0 %v3957, 32
        %v4410 = vpop.permute.xlu0 %4409
        %4411 = vrot.lane.b32.xlu0 %v3959, 32
        %v4412 = vpop.permute.xlu0 %4411
        %4429 = vrot.lane.b32.xlu0 %v4156, 64
        %v4430 = vpop.permute.xlu0 %4429
        %4431 = vrot.lane.b32.xlu0 %v4158, 64
        %v4432 = vpop.permute.xlu0 %4431
        %4433 = vrot.lane.b32.xlu0 %v4161, 64
        %v4434 = vpop.permute.xlu0 %4433
        %4435 = vrot.lane.b32.xlu0 %v4163, 64
        %v4436 = vpop.permute.xlu0 %4435
        %4437 = vrot.lane.b32.xlu0 %v4166, 64
        %v4438 = vpop.permute.xlu0 %4437
        %4439 = vrot.lane.b32.xlu0 %v4168, 64
        %v4440 = vpop.permute.xlu0 %4439
        %4441 = vrot.lane.b32.xlu0 %v4171, 64
        %v4442 = vpop.permute.xlu0 %4441
        %4443 = vrot.lane.b32.xlu0 %v4173, 64
        %v4444 = vpop.permute.xlu0 %4443
        %4461 = vrot.lane.b32.xlu0 %v4370, 96
        %v4462 = vpop.permute.xlu0 %4461
        %4463 = vrot.lane.b32.xlu0 %v4372, 96
        %v4464 = vpop.permute.xlu0 %4463
        %4465 = vrot.lane.b32.xlu0 %v4375, 96
        %v4466 = vpop.permute.xlu0 %4465
        %4467 = vrot.lane.b32.xlu0 %v4377, 96
        %v4468 = vpop.permute.xlu0 %4467
        %4469 = vrot.lane.b32.xlu0 %v4380, 96
        %v4470 = vpop.permute.xlu0 %4469
        %4471 = vrot.lane.b32.xlu0 %v4382, 96
        %v4472 = vpop.permute.xlu0 %4471
        %4473 = vrot.lane.b32.xlu0 %v4385, 96
        %v4474 = vpop.permute.xlu0 %4473
        %4475 = vrot.lane.b32.xlu0 %v4387, 96
        %v4476 = vpop.permute.xlu0 %4475
        %v4485 = vsel %vm1089, %v3716, %v4398
        %v4486 = vsel %vm1089, %v3718, %v4400
        %v4487 = vsel %vm1089, %v3721, %v4402
        %v4488 = vsel %vm1089, %v3723, %v4404
        %v4489 = vsel %vm1089, %v3726, %v4406
        %v4490 = vsel %vm1089, %v3728, %v4408
        %v4491 = vsel %vm1089, %v3731, %v4410
        %v4492 = vsel %vm1089, %v3733, %v4412
        %v4493 = vsel %vm1143, %v4485, %v4430
        %v4494 = vsel %vm1143, %v4486, %v4432
        %v4495 = vsel %vm1143, %v4487, %v4434
        %v4496 = vsel %vm1143, %v4488, %v4436
        %v4497 = vsel %vm1143, %v4489, %v4438
        %v4498 = vsel %vm1143, %v4490, %v4440
        %v4499 = vsel %vm1143, %v4491, %v4442
        %v4500 = vsel %vm1143, %v4492, %v4444
        %v4501 = vsel %vm2043, %v4493, %v4462
        %v4502 = vsel %vm2043, %v4494, %v4464
        %v4503 = vsel %vm2043, %v4495, %v4466
        %v4504 = vsel %vm2043, %v4496, %v4468
        %v4505 = vsel %vm2043, %v4497, %v4470
        %v4506 = vsel %vm2043, %v4498, %v4472
        %v4507 = vsel %vm2043, %v4499, %v4474
        %v4508 = vsel %vm2043, %v4500, %v4476
        %v4509 = vpack.c.bf16 %v4502, %v4501
        %v4510 = vpack.c.bf16 %v4504, %v4503
        %v4511 = vpack.c.bf16 %v4506, %v4505
        %v4512 = vpack.c.bf16 %v4508, %v4507
        %s4513 = scalar_lea.vmem [#allocation2], 64
        %v4514 = vld [vmem:[%s4513] sm:$0xf]
        %v4515 = vld [vmem:[%s4513 + $0x4] sm:$0xf]
        %v4516 = vld [vmem:[%s4513 + $0x8] sm:$0xf]
        %v4517 = vld [vmem:[%s4513 + $0xc] sm:$0xf]
        %v4518 = vld [vmem:[%s4513 + $0x10] sm:$0xf]
        %v4519 = vld [vmem:[%s4513 + $0x14] sm:$0xf]
        %v4520 = vld [vmem:[%s4513 + $0x18] sm:$0xf]
        %v4521 = vld [vmem:[%s4513 + $0x1c] sm:$0xf]
        %v4522 = vld [vmem:[%s4513 + $0x20] sm:$0xf]
        %v4523 = vld [vmem:[%s4513 + $0x24] sm:$0xf]
        %v4524 = vld [vmem:[%s4513 + $0x28] sm:$0xf]
        %v4525 = vld [vmem:[%s4513 + $0x2c] sm:$0xf]
        %v4526 = vld [vmem:[%s4513 + $0x30] sm:$0xf]
        %v4527 = vld [vmem:[%s4513 + $0x34] sm:$0xf]
        %v4528 = vld [vmem:[%s4513 + $0x38] sm:$0xf]
        %v4529 = vld [vmem:[%s4513 + $0x3c] sm:$0xf]
        %s4530 = scalar_lea.vmem %s5, 1
        %v4531 = vld [vmem:[%s4530] sm:$0x1]
        %v4533 = vperm.slane %v4531, 0
        %v4551 = vunpack.c.l.b16 %v4514
        %v4552 = vunpack.c.l.b16 %v4515
        %v4553 = vunpack.c.l.b16 %v4516
        %v4554 = vunpack.c.l.b16 %v4517
        %v4555 = vunpack.c.l.b16 %v4518
        %v4556 = vunpack.c.l.b16 %v4519
        %v4557 = vunpack.c.l.b16 %v4520
        %v4558 = vunpack.c.l.b16 %v4521
        %v4559 = vunpack.c.l.b16 %v4522
        %v4560 = vunpack.c.l.b16 %v4523
        %v4561 = vunpack.c.l.b16 %v4524
        %v4562 = vunpack.c.l.b16 %v4525
        %v4563 = vunpack.c.l.b16 %v4526
        %v4564 = vunpack.c.l.b16 %v4527
        %v4565 = vunpack.c.l.b16 %v4528
        %v4566 = vunpack.c.l.b16 %v4529
        %v4567 = vpack.c.b16 %v4552, %v4551
        %v4568 = vpack.c.b16 %v4554, %v4553
        %v4569 = vpack.c.b16 %v4556, %v4555
        %v4570 = vpack.c.b16 %v4558, %v4557
        %v4571 = vpack.c.b16 %v4560, %v4559
        %v4572 = vpack.c.b16 %v4562, %v4561
        %v4573 = vpack.c.b16 %v4564, %v4563
        %v4574 = vpack.c.b16 %v4566, %v4565
        %4583 = vmatpush.bf16.msra.mxu0 %v4574
        %4584 = vmatpush.bf16.msra.mxu0 %v4573
        %4585 = vmatpush.bf16.msra.mxu0 %v4572
        %4586 = vmatpush.bf16.msra.mxu0 %v4571
        %4587 = vmatpush.bf16.msra.mxu0 %v4570
        %4588 = vmatpush.bf16.msra.mxu0 %v4569
        %4589 = vmatpush.bf16.msra.mxu0 %v4568
        %4590 = vmatpush.bf16.msra.mxu0 %v4567
        %4591 = vmatmul.bf16.gmra.mxu0 %v4509
        %v4592 = vpop.f32.mrf.mxu0
        %v4593 = vadd.f32 %v4533, %v4592
        %v4594 = vpop.f32.mrf.mxu0
        %v4595 = vadd.f32 %v4533, %v4594
        %4596 = vmatmul.bf16.gmra.mxu0 %v4510
        %v4597 = vpop.f32.mrf.mxu0
        %v4598 = vadd.f32 %v4533, %v4597
        %v4599 = vpop.f32.mrf.mxu0
        %v4600 = vadd.f32 %v4533, %v4599
        %4601 = vmatmul.bf16.gmra.mxu0 %v4511
        %v4602 = vpop.f32.mrf.mxu0
        %v4603 = vadd.f32 %v4533, %v4602
        %v4604 = vpop.f32.mrf.mxu0
        %v4605 = vadd.f32 %v4533, %v4604
        %4606 = vmatmul.bf16.gmra.mxu0 %v4512
        %v4607 = vpop.f32.mrf.mxu0
        %v4608 = vadd.f32 %v4533, %v4607
        %v4609 = vpop.f32.mrf.mxu0
        %v4610 = vadd.f32 %v4533, %v4609
        %4611 = vdwg.mxu0
        %v4612 = vadd.f32 %v3091, %v4593
        %v4613 = vadd.f32 %v3092, %v4595
        %v4614 = vadd.f32 %v3093, %v4598
        %v4615 = vadd.f32 %v3094, %v4600
        %v4616 = vadd.f32 %v3095, %v4603
        %v4617 = vadd.f32 %v3096, %v4605
        %v4618 = vadd.f32 %v3097, %v4608
        %v4619 = vadd.f32 %v3098, %v4610
        %s4620 = scalar_lea.vmem %s6, 1
        %v4621 = vld [vmem:[%s4620] sm:$0x1]
        %s4622 = scalar_lea.vmem %s7, 1
        %v4623 = vld [vmem:[%s4622] sm:$0x1]
        %4624 = vadd.xlane.f32.xlu0 %v4612
        %v4625 = vpop.xlane.xlu0 %4624
        %4626 = vadd.xlane.f32.xlu0 %v4613
        %v4627 = vpop.xlane.xlu0 %4626
        %4628 = vadd.xlane.f32.xlu0 %v4614
        %v4629 = vpop.xlane.xlu0 %4628
        %4630 = vadd.xlane.f32.xlu0 %v4615
        %v4631 = vpop.xlane.xlu0 %4630
        %4632 = vadd.xlane.f32.xlu0 %v4616
        %v4633 = vpop.xlane.xlu0 %4632
        %4634 = vadd.xlane.f32.xlu0 %v4617
        %v4635 = vpop.xlane.xlu0 %4634
        %4636 = vadd.xlane.f32.xlu0 %v4618
        %v4637 = vpop.xlane.xlu0 %4636
        %4638 = vadd.xlane.f32.xlu0 %v4619
        %v4639 = vpop.xlane.xlu0 %4638
        %v4640 = vmul.f32 %v4625, %v659
        %v4641 = vmul.f32 %v4627, %v659
        %v4642 = vmul.f32 %v4629, %v659
        %v4643 = vmul.f32 %v4631, %v659
        %v4644 = vmul.f32 %v4633, %v659
        %v4645 = vmul.f32 %v4635, %v659
        %v4646 = vmul.f32 %v4637, %v659
        %v4647 = vmul.f32 %v4639, %v659
        %v4648 = vsub.f32 %v4612, %v4640
        %v4649 = vsub.f32 %v4613, %v4641
        %v4650 = vsub.f32 %v4614, %v4642
        %v4651 = vsub.f32 %v4615, %v4643
        %v4652 = vsub.f32 %v4616, %v4644
        %v4653 = vsub.f32 %v4617, %v4645
        %v4654 = vsub.f32 %v4618, %v4646
        %v4655 = vsub.f32 %v4619, %v4647
        %v4656 = vmul.f32 %v4648, %v4648
        %v4657 = vmul.f32 %v4649, %v4649
        %v4658 = vmul.f32 %v4650, %v4650
        %v4659 = vmul.f32 %v4651, %v4651
        %v4660 = vmul.f32 %v4652, %v4652
        %v4661 = vmul.f32 %v4653, %v4653
        %v4662 = vmul.f32 %v4654, %v4654
        %v4663 = vmul.f32 %v4655, %v4655
        %4664 = vadd.xlane.f32.xlu0 %v4656
        %v4665 = vpop.xlane.xlu0 %4664
        %4666 = vadd.xlane.f32.xlu0 %v4657
        %v4667 = vpop.xlane.xlu0 %4666
        %4668 = vadd.xlane.f32.xlu0 %v4658
        %v4669 = vpop.xlane.xlu0 %4668
        %4670 = vadd.xlane.f32.xlu0 %v4659
        %v4671 = vpop.xlane.xlu0 %4670
        %4672 = vadd.xlane.f32.xlu0 %v4660
        %v4673 = vpop.xlane.xlu0 %4672
        %4674 = vadd.xlane.f32.xlu0 %v4661
        %v4675 = vpop.xlane.xlu0 %4674
        %4676 = vadd.xlane.f32.xlu0 %v4662
        %v4677 = vpop.xlane.xlu0 %4676
        %4678 = vadd.xlane.f32.xlu0 %v4663
        %v4679 = vpop.xlane.xlu0 %4678
        %v4680 = vmul.f32 %v4665, %v659
        %v4681 = vmul.f32 %v4667, %v659
        %v4682 = vmul.f32 %v4669, %v659
        %v4683 = vmul.f32 %v4671, %v659
        %v4684 = vmul.f32 %v4673, %v659
        %v4685 = vmul.f32 %v4675, %v659
        %v4686 = vmul.f32 %v4677, %v659
        %v4687 = vmul.f32 %v4679, %v659
        %v4688 = vadd.f32 %v4680, 1e-05
        %v4689 = vadd.f32 %v4681, 1e-05
        %v4690 = vadd.f32 %v4682, 1e-05
        %v4691 = vadd.f32 %v4683, 1e-05
        %v4692 = vadd.f32 %v4684, 1e-05
        %v4693 = vadd.f32 %v4685, 1e-05
        %v4694 = vadd.f32 %v4686, 1e-05
        %v4695 = vadd.f32 %v4687, 1e-05
        %v4696 = vrsqrt.pop %v4688
        %v4697 = vmul.f32 %v4696, %v4688
        %v4698 = vmul.f32 %v4697, %v4696
        %v4699 = vmul.f32 0.5, %v4698
        %v4700 = vsub.f32 1.5, %v4699
        %v4701 = vmul.f32 %v4696, %v4700
        %vm4702 = vweird.f32 %v4688
        %vm4703 = vweird.f32 %v4696
        %vm4704 = vmor %vm4702, %vm4703
        %v4705 = vsel %vm4704, %v4696, %v4701
        %v4706 = vrsqrt.pop %v4689
        %v4707 = vmul.f32 %v4706, %v4689
        %v4708 = vmul.f32 %v4707, %v4706
        %v4709 = vmul.f32 0.5, %v4708
        %v4710 = vsub.f32 1.5, %v4709
        %v4711 = vmul.f32 %v4706, %v4710
        %vm4712 = vweird.f32 %v4689
        %vm4713 = vweird.f32 %v4706
        %vm4714 = vmor %vm4712, %vm4713
        %v4715 = vsel %vm4714, %v4706, %v4711
        %v4716 = vrsqrt.pop %v4690
        %v4717 = vmul.f32 %v4716, %v4690
        %v4718 = vmul.f32 %v4717, %v4716
        %v4719 = vmul.f32 0.5, %v4718
        %v4720 = vsub.f32 1.5, %v4719
        %v4721 = vmul.f32 %v4716, %v4720
        %vm4722 = vweird.f32 %v4690
        %vm4723 = vweird.f32 %v4716
        %vm4724 = vmor %vm4722, %vm4723
        %v4725 = vsel %vm4724, %v4716, %v4721
        %v4726 = vrsqrt.pop %v4691
        %v4727 = vmul.f32 %v4726, %v4691
        %v4728 = vmul.f32 %v4727, %v4726
        %v4729 = vmul.f32 0.5, %v4728
        %v4730 = vsub.f32 1.5, %v4729
        %v4731 = vmul.f32 %v4726, %v4730
        %vm4732 = vweird.f32 %v4691
        %vm4733 = vweird.f32 %v4726
        %vm4734 = vmor %vm4732, %vm4733
        %v4735 = vsel %vm4734, %v4726, %v4731
        %v4736 = vrsqrt.pop %v4692
        %v4737 = vmul.f32 %v4736, %v4692
        %v4738 = vmul.f32 %v4737, %v4736
        %v4739 = vmul.f32 0.5, %v4738
        %v4740 = vsub.f32 1.5, %v4739
        %v4741 = vmul.f32 %v4736, %v4740
        %vm4742 = vweird.f32 %v4692
        %vm4743 = vweird.f32 %v4736
        %vm4744 = vmor %vm4742, %vm4743
        %v4745 = vsel %vm4744, %v4736, %v4741
        %v4746 = vrsqrt.pop %v4693
        %v4747 = vmul.f32 %v4746, %v4693
        %v4748 = vmul.f32 %v4747, %v4746
        %v4749 = vmul.f32 0.5, %v4748
        %v4750 = vsub.f32 1.5, %v4749
        %v4751 = vmul.f32 %v4746, %v4750
        %vm4752 = vweird.f32 %v4693
        %vm4753 = vweird.f32 %v4746
        %vm4754 = vmor %vm4752, %vm4753
        %v4755 = vsel %vm4754, %v4746, %v4751
        %v4756 = vrsqrt.pop %v4694
        %v4757 = vmul.f32 %v4756, %v4694
        %v4758 = vmul.f32 %v4757, %v4756
        %v4759 = vmul.f32 0.5, %v4758
        %v4760 = vsub.f32 1.5, %v4759
        %v4761 = vmul.f32 %v4756, %v4760
        %vm4762 = vweird.f32 %v4694
        %vm4763 = vweird.f32 %v4756
        %vm4764 = vmor %vm4762, %vm4763
        %v4765 = vsel %vm4764, %v4756, %v4761
        %v4766 = vrsqrt.pop %v4695
        %v4767 = vmul.f32 %v4766, %v4695
        %v4768 = vmul.f32 %v4767, %v4766
        %v4769 = vmul.f32 0.5, %v4768
        %v4770 = vsub.f32 1.5, %v4769
        %v4771 = vmul.f32 %v4766, %v4770
        %vm4772 = vweird.f32 %v4695
        %vm4773 = vweird.f32 %v4766
        %vm4774 = vmor %vm4772, %vm4773
        %v4775 = vsel %vm4774, %v4766, %v4771
        %v4776 = vmul.f32 %v4648, %v4705
        %v4777 = vmul.f32 %v4649, %v4715
        %v4778 = vmul.f32 %v4650, %v4725
        %v4779 = vmul.f32 %v4651, %v4735
        %v4780 = vmul.f32 %v4652, %v4745
        %v4781 = vmul.f32 %v4653, %v4755
        %v4782 = vmul.f32 %v4654, %v4765
        %v4783 = vmul.f32 %v4655, %v4775
        %v4785 = vperm.slane %v4621, 0
        %v4787 = vmul.f32 %v4776, %v4785
        %v4788 = vmul.f32 %v4777, %v4785
        %v4789 = vmul.f32 %v4778, %v4785
        %v4790 = vmul.f32 %v4779, %v4785
        %v4791 = vmul.f32 %v4780, %v4785
        %v4792 = vmul.f32 %v4781, %v4785
        %v4793 = vmul.f32 %v4782, %v4785
        %v4794 = vmul.f32 %v4783, %v4785
        %v4796 = vperm.slane %v4623, 0
        %v4798 = vadd.f32 %v4787, %v4796
        %v4799 = vadd.f32 %v4788, %v4796
        %v4800 = vadd.f32 %v4789, %v4796
        %v4801 = vadd.f32 %v4790, %v4796
        %v4802 = vadd.f32 %v4791, %v4796
        %v4803 = vadd.f32 %v4792, %v4796
        %v4804 = vadd.f32 %v4793, %v4796
        %v4805 = vadd.f32 %v4794, %v4796
        %v4806 = vpack.c.bf16 %v4799, %v4798
        %v4807 = vpack.c.bf16 %v4801, %v4800
        %v4808 = vpack.c.bf16 %v4803, %v4802
        %v4809 = vpack.c.bf16 %v4805, %v4804
        %s4810 = scalar_lea.vmem %s8, 256
        %v4811 = vld [vmem:[%s4810] sm:$0xff]
        %v4812 = vld [vmem:[%s4810 + $0x8] sm:$0xff]
        %v4813 = vld [vmem:[%s4810 + $0x10] sm:$0xff]
        %v4814 = vld [vmem:[%s4810 + $0x18] sm:$0xff]
        %v4815 = vld [vmem:[%s4810 + $0x20] sm:$0xff]
        %v4816 = vld [vmem:[%s4810 + $0x28] sm:$0xff]
        %v4817 = vld [vmem:[%s4810 + $0x30] sm:$0xff]
        %v4818 = vld [vmem:[%s4810 + $0x38] sm:$0xff]
        %v4819 = vld [vmem:[%s4810 + $0x40] sm:$0xff]
        %v4820 = vld [vmem:[%s4810 + $0x48] sm:$0xff]
        %v4821 = vld [vmem:[%s4810 + $0x50] sm:$0xff]
        %v4822 = vld [vmem:[%s4810 + $0x58] sm:$0xff]
        %v4823 = vld [vmem:[%s4810 + $0x60] sm:$0xff]
        %v4824 = vld [vmem:[%s4810 + $0x68] sm:$0xff]
        %v4825 = vld [vmem:[%s4810 + $0x70] sm:$0xff]
        %v4826 = vld [vmem:[%s4810 + $0x78] sm:$0xff]
        %v4827 = vld [vmem:[%s4810 + $0x80] sm:$0xff]
        %v4828 = vld [vmem:[%s4810 + $0x88] sm:$0xff]
        %v4829 = vld [vmem:[%s4810 + $0x90] sm:$0xff]
        %v4830 = vld [vmem:[%s4810 + $0x98] sm:$0xff]
        %v4831 = vld [vmem:[%s4810 + $0xa0] sm:$0xff]
        %v4832 = vld [vmem:[%s4810 + $0xa8] sm:$0xff]
        %v4833 = vld [vmem:[%s4810 + $0xb0] sm:$0xff]
        %v4834 = vld [vmem:[%s4810 + $0xb8] sm:$0xff]
        %v4835 = vld [vmem:[%s4810 + $0xc0] sm:$0xff]
        %v4836 = vld [vmem:[%s4810 + $0xc8] sm:$0xff]
        %v4837 = vld [vmem:[%s4810 + $0xd0] sm:$0xff]
        %v4838 = vld [vmem:[%s4810 + $0xd8] sm:$0xff]
        %v4839 = vld [vmem:[%s4810 + $0xe0] sm:$0xff]
        %v4840 = vld [vmem:[%s4810 + $0xe8] sm:$0xff]
        %v4841 = vld [vmem:[%s4810 + $0xf0] sm:$0xff]
        %v4842 = vld [vmem:[%s4810 + $0xf8] sm:$0xff]
        %s4843 = scalar_lea.vmem %s9, 4
        %v4844 = vld [vmem:[%s4843] sm:$0xf]
        %v4846 = vperm.slane %v4844, 0
        %v4847 = vperm.slane %v4844, 1
        %v4848 = vperm.slane %v4844, 2
        %v4849 = vperm.slane %v4844, 3
        %v4886 = vunpack.c.l.b16 %v4811
        %v4887 = vunpack.c.h.b16 %v4811
        %v4888 = vunpack.c.l.b16 %v4812
        %v4889 = vunpack.c.h.b16 %v4812
        %v4890 = vunpack.c.l.b16 %v4813
        %v4891 = vunpack.c.h.b16 %v4813
        %v4892 = vunpack.c.l.b16 %v4814
        %v4893 = vunpack.c.h.b16 %v4814
        %v4894 = vunpack.c.l.b16 %v4815
        %v4895 = vunpack.c.h.b16 %v4815
        %v4896 = vunpack.c.l.b16 %v4816
        %v4897 = vunpack.c.h.b16 %v4816
        %v4898 = vunpack.c.l.b16 %v4817
        %v4899 = vunpack.c.h.b16 %v4817
        %v4900 = vunpack.c.l.b16 %v4818
        %v4901 = vunpack.c.h.b16 %v4818
        %v4902 = vunpack.c.l.b16 %v4819
        %v4903 = vunpack.c.h.b16 %v4819
        %v4904 = vunpack.c.l.b16 %v4820
        %v4905 = vunpack.c.h.b16 %v4820
        %v4906 = vunpack.c.l.b16 %v4821
        %v4907 = vunpack.c.h.b16 %v4821
        %v4908 = vunpack.c.l.b16 %v4822
        %v4909 = vunpack.c.h.b16 %v4822
        %v4910 = vunpack.c.l.b16 %v4823
        %v4911 = vunpack.c.h.b16 %v4823
        %v4912 = vunpack.c.l.b16 %v4824
        %v4913 = vunpack.c.h.b16 %v4824
        %v4914 = vunpack.c.l.b16 %v4825
        %v4915 = vunpack.c.h.b16 %v4825
        %v4916 = vunpack.c.l.b16 %v4826
        %v4917 = vunpack.c.h.b16 %v4826
        %v4918 = vunpack.c.l.b16 %v4827
        %v4919 = vunpack.c.h.b16 %v4827
        %v4920 = vunpack.c.l.b16 %v4828
        %v4921 = vunpack.c.h.b16 %v4828
        %v4922 = vunpack.c.l.b16 %v4829
        %v4923 = vunpack.c.h.b16 %v4829
        %v4924 = vunpack.c.l.b16 %v4830
        %v4925 = vunpack.c.h.b16 %v4830
        %v4926 = vunpack.c.l.b16 %v4831
        %v4927 = vunpack.c.h.b16 %v4831
        %v4928 = vunpack.c.l.b16 %v4832
        %v4929 = vunpack.c.h.b16 %v4832
        %v4930 = vunpack.c.l.b16 %v4833
        %v4931 = vunpack.c.h.b16 %v4833
        %v4932 = vunpack.c.l.b16 %v4834
        %v4933 = vunpack.c.h.b16 %v4834
        %v4934 = vunpack.c.l.b16 %v4835
        %v4935 = vunpack.c.h.b16 %v4835
        %v4936 = vunpack.c.l.b16 %v4836
        %v4937 = vunpack.c.h.b16 %v4836
        %v4938 = vunpack.c.l.b16 %v4837
        %v4939 = vunpack.c.h.b16 %v4837
        %v4940 = vunpack.c.l.b16 %v4838
        %v4941 = vunpack.c.h.b16 %v4838
        %v4942 = vunpack.c.l.b16 %v4839
        %v4943 = vunpack.c.h.b16 %v4839
        %v4944 = vunpack.c.l.b16 %v4840
        %v4945 = vunpack.c.h.b16 %v4840
        %v4946 = vunpack.c.l.b16 %v4841
        %v4947 = vunpack.c.h.b16 %v4841
        %v4948 = vunpack.c.l.b16 %v4842
        %v4949 = vunpack.c.h.b16 %v4842
        %v4950 = vpack.c.b16 %v4890, %v4886
        %v4951 = vpack.c.b16 %v4891, %v4887
        %v4952 = vpack.c.b16 %v4892, %v4888
        %v4953 = vpack.c.b16 %v4893, %v4889
        %v4954 = vpack.c.b16 %v4898, %v4894
        %v4955 = vpack.c.b16 %v4899, %v4895
        %v4956 = vpack.c.b16 %v4900, %v4896
        %v4957 = vpack.c.b16 %v4901, %v4897
        %v4958 = vpack.c.b16 %v4906, %v4902
        %v4959 = vpack.c.b16 %v4907, %v4903
        %v4960 = vpack.c.b16 %v4908, %v4904
        %v4961 = vpack.c.b16 %v4909, %v4905
        %v4962 = vpack.c.b16 %v4914, %v4910
        %v4963 = vpack.c.b16 %v4915, %v4911
        %v4964 = vpack.c.b16 %v4916, %v4912
        %v4965 = vpack.c.b16 %v4917, %v4913
        %v4966 = vpack.c.b16 %v4922, %v4918
        %v4967 = vpack.c.b16 %v4923, %v4919
        %v4968 = vpack.c.b16 %v4924, %v4920
        %v4969 = vpack.c.b16 %v4925, %v4921
        %v4970 = vpack.c.b16 %v4930, %v4926
        %v4971 = vpack.c.b16 %v4931, %v4927
        %v4972 = vpack.c.b16 %v4932, %v4928
        %v4973 = vpack.c.b16 %v4933, %v4929
        %v4974 = vpack.c.b16 %v4938, %v4934
        %v4975 = vpack.c.b16 %v4939, %v4935
        %v4976 = vpack.c.b16 %v4940, %v4936
        %v4977 = vpack.c.b16 %v4941, %v4937
        %v4978 = vpack.c.b16 %v4946, %v4942
        %v4979 = vpack.c.b16 %v4947, %v4943
        %v4980 = vpack.c.b16 %v4948, %v4944
        %v4981 = vpack.c.b16 %v4949, %v4945
        %5014 = vmatpush.bf16.msra.mxu0 %v4978
        %5015 = vmatpush.bf16.msra.mxu0 %v4974
        %5016 = vmatpush.bf16.msra.mxu0 %v4970
        %5017 = vmatpush.bf16.msra.mxu0 %v4966
        %5018 = vmatpush.bf16.msra.mxu0 %v4962
        %5019 = vmatpush.bf16.msra.mxu0 %v4958
        %5020 = vmatpush.bf16.msra.mxu0 %v4954
        %5021 = vmatpush.bf16.msra.mxu0 %v4950
        %5022 = vmatmul.bf16.gmra.mxu0 %v4806
        %v5023 = vpop.f32.mrf.mxu0
        %v5024 = vadd.f32 %v4846, %v5023
        %v5025 = vpop.f32.mrf.mxu0
        %v5026 = vadd.f32 %v4846, %v5025
        %5027 = vmatmul.bf16.gmra.mxu0 %v4807
        %v5028 = vpop.f32.mrf.mxu0
        %v5029 = vadd.f32 %v4846, %v5028
        %v5030 = vpop.f32.mrf.mxu0
        %v5031 = vadd.f32 %v4846, %v5030
        %5032 = vmatmul.bf16.gmra.mxu0 %v4808
        %v5033 = vpop.f32.mrf.mxu0
        %v5034 = vadd.f32 %v4846, %v5033
        %v5035 = vpop.f32.mrf.mxu0
        %v5036 = vadd.f32 %v4846, %v5035
        %5037 = vmatmul.bf16.gmra.mxu0 %v4809
        %v5038 = vpop.f32.mrf.mxu0
        %v5039 = vadd.f32 %v4846, %v5038
        %v5040 = vpop.f32.mrf.mxu0
        %v5041 = vadd.f32 %v4846, %v5040
        %5042 = vdwg.mxu0
        %5043 = vmatpush.bf16.msra.mxu0 %v4979
        %5044 = vmatpush.bf16.msra.mxu0 %v4975
        %5045 = vmatpush.bf16.msra.mxu0 %v4971
        %5046 = vmatpush.bf16.msra.mxu0 %v4967
        %5047 = vmatpush.bf16.msra.mxu0 %v4963
        %5048 = vmatpush.bf16.msra.mxu0 %v4959
        %5049 = vmatpush.bf16.msra.mxu0 %v4955
        %5050 = vmatpush.bf16.msra.mxu0 %v4951
        %5051 = vmatmul.bf16.gmra.mxu0 %v4806
        %v5052 = vpop.f32.mrf.mxu0
        %v5053 = vadd.f32 %v4847, %v5052
        %v5054 = vpop.f32.mrf.mxu0
        %v5055 = vadd.f32 %v4847, %v5054
        %5056 = vmatmul.bf16.gmra.mxu0 %v4807
        %v5057 = vpop.f32.mrf.mxu0
        %v5058 = vadd.f32 %v4847, %v5057
        %v5059 = vpop.f32.mrf.mxu0
        %v5060 = vadd.f32 %v4847, %v5059
        %5061 = vmatmul.bf16.gmra.mxu0 %v4808
        %v5062 = vpop.f32.mrf.mxu0
        %v5063 = vadd.f32 %v4847, %v5062
        %v5064 = vpop.f32.mrf.mxu0
        %v5065 = vadd.f32 %v4847, %v5064
        %5066 = vmatmul.bf16.gmra.mxu0 %v4809
        %v5067 = vpop.f32.mrf.mxu0
        %v5068 = vadd.f32 %v4847, %v5067
        %v5069 = vpop.f32.mrf.mxu0
        %v5070 = vadd.f32 %v4847, %v5069
        %5071 = vdwg.mxu0
        %5072 = vmatpush.bf16.msra.mxu0 %v4980
        %5073 = vmatpush.bf16.msra.mxu0 %v4976
        %5074 = vmatpush.bf16.msra.mxu0 %v4972
        %5075 = vmatpush.bf16.msra.mxu0 %v4968
        %5076 = vmatpush.bf16.msra.mxu0 %v4964
        %5077 = vmatpush.bf16.msra.mxu0 %v4960
        %5078 = vmatpush.bf16.msra.mxu0 %v4956
        %5079 = vmatpush.bf16.msra.mxu0 %v4952
        %5080 = vmatmul.bf16.gmra.mxu0 %v4806
        %v5081 = vpop.f32.mrf.mxu0
        %v5082 = vadd.f32 %v4848, %v5081
        %v5083 = vpop.f32.mrf.mxu0
        %v5084 = vadd.f32 %v4848, %v5083
        %5085 = vmatmul.bf16.gmra.mxu0 %v4807
        %v5086 = vpop.f32.mrf.mxu0
        %v5087 = vadd.f32 %v4848, %v5086
        %v5088 = vpop.f32.mrf.mxu0
        %v5089 = vadd.f32 %v4848, %v5088
        %5090 = vmatmul.bf16.gmra.mxu0 %v4808
        %v5091 = vpop.f32.mrf.mxu0
        %v5092 = vadd.f32 %v4848, %v5091
        %v5093 = vpop.f32.mrf.mxu0
        %v5094 = vadd.f32 %v4848, %v5093
        %5095 = vmatmul.bf16.gmra.mxu0 %v4809
        %v5096 = vpop.f32.mrf.mxu0
        %v5097 = vadd.f32 %v4848, %v5096
        %v5098 = vpop.f32.mrf.mxu0
        %v5099 = vadd.f32 %v4848, %v5098
        %5100 = vdwg.mxu0
        %5101 = vmatpush.bf16.msra.mxu0 %v4981
        %5102 = vmatpush.bf16.msra.mxu0 %v4977
        %5103 = vmatpush.bf16.msra.mxu0 %v4973
        %5104 = vmatpush.bf16.msra.mxu0 %v4969
        %5105 = vmatpush.bf16.msra.mxu0 %v4965
        %5106 = vmatpush.bf16.msra.mxu0 %v4961
        %5107 = vmatpush.bf16.msra.mxu0 %v4957
        %5108 = vmatpush.bf16.msra.mxu0 %v4953
        %5109 = vmatmul.bf16.gmra.mxu0 %v4806
        %v5110 = vpop.f32.mrf.mxu0
        %v5111 = vadd.f32 %v4849, %v5110
        %v5112 = vpop.f32.mrf.mxu0
        %v5113 = vadd.f32 %v4849, %v5112
        %5114 = vmatmul.bf16.gmra.mxu0 %v4807
        %v5115 = vpop.f32.mrf.mxu0
        %v5116 = vadd.f32 %v4849, %v5115
        %v5117 = vpop.f32.mrf.mxu0
        %v5118 = vadd.f32 %v4849, %v5117
        %5119 = vmatmul.bf16.gmra.mxu0 %v4808
        %v5120 = vpop.f32.mrf.mxu0
        %v5121 = vadd.f32 %v4849, %v5120
        %v5122 = vpop.f32.mrf.mxu0
        %v5123 = vadd.f32 %v4849, %v5122
        %5124 = vmatmul.bf16.gmra.mxu0 %v4809
        %v5125 = vpop.f32.mrf.mxu0
        %v5126 = vadd.f32 %v4849, %v5125
        %v5127 = vpop.f32.mrf.mxu0
        %v5128 = vadd.f32 %v4849, %v5127
        %5129 = vdwg.mxu0
        %v5130 = vmax.f32 %v5024, 0.0
        %v5131 = vmax.f32 %v5053, 0.0
        %v5132 = vmax.f32 %v5082, 0.0
        %v5133 = vmax.f32 %v5111, 0.0
        %v5134 = vmax.f32 %v5026, 0.0
        %v5135 = vmax.f32 %v5055, 0.0
        %v5136 = vmax.f32 %v5084, 0.0
        %v5137 = vmax.f32 %v5113, 0.0
        %v5138 = vmax.f32 %v5029, 0.0
        %v5139 = vmax.f32 %v5058, 0.0
        %v5140 = vmax.f32 %v5087, 0.0
        %v5141 = vmax.f32 %v5116, 0.0
        %v5142 = vmax.f32 %v5031, 0.0
        %v5143 = vmax.f32 %v5060, 0.0
        %v5144 = vmax.f32 %v5089, 0.0
        %v5145 = vmax.f32 %v5118, 0.0
        %v5146 = vmax.f32 %v5034, 0.0
        %v5147 = vmax.f32 %v5063, 0.0
        %v5148 = vmax.f32 %v5092, 0.0
        %v5149 = vmax.f32 %v5121, 0.0
        %v5150 = vmax.f32 %v5036, 0.0
        %v5151 = vmax.f32 %v5065, 0.0
        %v5152 = vmax.f32 %v5094, 0.0
        %v5153 = vmax.f32 %v5123, 0.0
        %v5154 = vmax.f32 %v5039, 0.0
        %v5155 = vmax.f32 %v5068, 0.0
        %v5156 = vmax.f32 %v5097, 0.0
        %v5157 = vmax.f32 %v5126, 0.0
        %v5158 = vmax.f32 %v5041, 0.0
        %v5159 = vmax.f32 %v5070, 0.0
        %v5160 = vmax.f32 %v5099, 0.0
        %v5161 = vmax.f32 %v5128, 0.0
        %v5162 = vpack.c.bf16 %v5134, %v5130
        %v5163 = vpack.c.bf16 %v5135, %v5131
        %v5164 = vpack.c.bf16 %v5136, %v5132
        %v5165 = vpack.c.bf16 %v5137, %v5133
        %v5166 = vpack.c.bf16 %v5142, %v5138
        %v5167 = vpack.c.bf16 %v5143, %v5139
        %v5168 = vpack.c.bf16 %v5144, %v5140
        %v5169 = vpack.c.bf16 %v5145, %v5141
        %v5170 = vpack.c.bf16 %v5150, %v5146
        %v5171 = vpack.c.bf16 %v5151, %v5147
        %v5172 = vpack.c.bf16 %v5152, %v5148
        %v5173 = vpack.c.bf16 %v5153, %v5149
        %v5174 = vpack.c.bf16 %v5158, %v5154
        %v5175 = vpack.c.bf16 %v5159, %v5155
        %v5176 = vpack.c.bf16 %v5160, %v5156
        %v5177 = vpack.c.bf16 %v5161, %v5157
        %s5178 = scalar_lea.vmem %s10, 256
        %v5179 = vld [vmem:[%s5178] sm:$0xf]
        %v5180 = vld [vmem:[%s5178 + $0x4] sm:$0xf]
        %v5181 = vld [vmem:[%s5178 + $0x8] sm:$0xf]
        %v5182 = vld [vmem:[%s5178 + $0xc] sm:$0xf]
        %v5183 = vld [vmem:[%s5178 + $0x10] sm:$0xf]
        %v5184 = vld [vmem:[%s5178 + $0x14] sm:$0xf]
        %v5185 = vld [vmem:[%s5178 + $0x18] sm:$0xf]
        %v5186 = vld [vmem:[%s5178 + $0x1c] sm:$0xf]
        %v5187 = vld [vmem:[%s5178 + $0x20] sm:$0xf]
        %v5188 = vld [vmem:[%s5178 + $0x24] sm:$0xf]
        %v5189 = vld [vmem:[%s5178 + $0x28] sm:$0xf]
        %v5190 = vld [vmem:[%s5178 + $0x2c] sm:$0xf]
        %v5191 = vld [vmem:[%s5178 + $0x30] sm:$0xf]
        %v5192 = vld [vmem:[%s5178 + $0x34] sm:$0xf]
        %v5193 = vld [vmem:[%s5178 + $0x38] sm:$0xf]
        %v5194 = vld [vmem:[%s5178 + $0x3c] sm:$0xf]
        %v5195 = vld [vmem:[%s5178 + $0x40] sm:$0xf]
        %v5196 = vld [vmem:[%s5178 + $0x44] sm:$0xf]
        %v5197 = vld [vmem:[%s5178 + $0x48] sm:$0xf]
        %v5198 = vld [vmem:[%s5178 + $0x4c] sm:$0xf]
        %v5199 = vld [vmem:[%s5178 + $0x50] sm:$0xf]
        %v5200 = vld [vmem:[%s5178 + $0x54] sm:$0xf]
        %v5201 = vld [vmem:[%s5178 + $0x58] sm:$0xf]
        %v5202 = vld [vmem:[%s5178 + $0x5c] sm:$0xf]
        %v5203 = vld [vmem:[%s5178 + $0x60] sm:$0xf]
        %v5204 = vld [vmem:[%s5178 + $0x64] sm:$0xf]
        %v5205 = vld [vmem:[%s5178 + $0x68] sm:$0xf]
        %v5206 = vld [vmem:[%s5178 + $0x6c] sm:$0xf]
        %v5207 = vld [vmem:[%s5178 + $0x70] sm:$0xf]
        %v5208 = vld [vmem:[%s5178 + $0x74] sm:$0xf]
        %v5209 = vld [vmem:[%s5178 + $0x78] sm:$0xf]
        %v5210 = vld [vmem:[%s5178 + $0x7c] sm:$0xf]
        %v5211 = vld [vmem:[%s5178 + $0x80] sm:$0xf]
        %v5212 = vld [vmem:[%s5178 + $0x84] sm:$0xf]
        %v5213 = vld [vmem:[%s5178 + $0x88] sm:$0xf]
        %v5214 = vld [vmem:[%s5178 + $0x8c] sm:$0xf]
        %v5215 = vld [vmem:[%s5178 + $0x90] sm:$0xf]
        %v5216 = vld [vmem:[%s5178 + $0x94] sm:$0xf]
        %v5217 = vld [vmem:[%s5178 + $0x98] sm:$0xf]
        %v5218 = vld [vmem:[%s5178 + $0x9c] sm:$0xf]
        %v5219 = vld [vmem:[%s5178 + $0xa0] sm:$0xf]
        %v5220 = vld [vmem:[%s5178 + $0xa4] sm:$0xf]
        %v5221 = vld [vmem:[%s5178 + $0xa8] sm:$0xf]
        %v5222 = vld [vmem:[%s5178 + $0xac] sm:$0xf]
        %v5223 = vld [vmem:[%s5178 + $0xb0] sm:$0xf]
        %v5224 = vld [vmem:[%s5178 + $0xb4] sm:$0xf]
        %v5225 = vld [vmem:[%s5178 + $0xb8] sm:$0xf]
        %v5226 = vld [vmem:[%s5178 + $0xbc] sm:$0xf]
        %v5227 = vld [vmem:[%s5178 + $0xc0] sm:$0xf]
        %v5228 = vld [vmem:[%s5178 + $0xc4] sm:$0xf]
        %v5229 = vld [vmem:[%s5178 + $0xc8] sm:$0xf]
        %v5230 = vld [vmem:[%s5178 + $0xcc] sm:$0xf]
        %v5231 = vld [vmem:[%s5178 + $0xd0] sm:$0xf]
        %v5232 = vld [vmem:[%s5178 + $0xd4] sm:$0xf]
        %v5233 = vld [vmem:[%s5178 + $0xd8] sm:$0xf]
        %v5234 = vld [vmem:[%s5178 + $0xdc] sm:$0xf]
        %v5235 = vld [vmem:[%s5178 + $0xe0] sm:$0xf]
        %v5236 = vld [vmem:[%s5178 + $0xe4] sm:$0xf]
        %v5237 = vld [vmem:[%s5178 + $0xe8] sm:$0xf]
        %v5238 = vld [vmem:[%s5178 + $0xec] sm:$0xf]
        %v5239 = vld [vmem:[%s5178 + $0xf0] sm:$0xf]
        %v5240 = vld [vmem:[%s5178 + $0xf4] sm:$0xf]
        %v5241 = vld [vmem:[%s5178 + $0xf8] sm:$0xf]
        %v5242 = vld [vmem:[%s5178 + $0xfc] sm:$0xf]
        %s5243 = scalar_lea.vmem [#allocation5], 1
        %v5244 = vld [vmem:[%s5243] sm:$0x1]
        %v5246 = vperm.slane %v5244, 0
        %v5312 = vunpack.c.l.b16 %v5179
        %v5313 = vunpack.c.l.b16 %v5180
        %v5314 = vunpack.c.l.b16 %v5181
        %v5315 = vunpack.c.l.b16 %v5182
        %v5316 = vunpack.c.l.b16 %v5183
        %v5317 = vunpack.c.l.b16 %v5184
        %v5318 = vunpack.c.l.b16 %v5185
        %v5319 = vunpack.c.l.b16 %v5186
        %v5320 = vunpack.c.l.b16 %v5187
        %v5321 = vunpack.c.l.b16 %v5188
        %v5322 = vunpack.c.l.b16 %v5189
        %v5323 = vunpack.c.l.b16 %v5190
        %v5324 = vunpack.c.l.b16 %v5191
        %v5325 = vunpack.c.l.b16 %v5192
        %v5326 = vunpack.c.l.b16 %v5193
        %v5327 = vunpack.c.l.b16 %v5194
        %v5328 = vunpack.c.l.b16 %v5195
        %v5329 = vunpack.c.l.b16 %v5196
        %v5330 = vunpack.c.l.b16 %v5197
        %v5331 = vunpack.c.l.b16 %v5198
        %v5332 = vunpack.c.l.b16 %v5199
        %v5333 = vunpack.c.l.b16 %v5200
        %v5334 = vunpack.c.l.b16 %v5201
        %v5335 = vunpack.c.l.b16 %v5202
        %v5336 = vunpack.c.l.b16 %v5203
        %v5337 = vunpack.c.l.b16 %v5204
        %v5338 = vunpack.c.l.b16 %v5205
        %v5339 = vunpack.c.l.b16 %v5206
        %v5340 = vunpack.c.l.b16 %v5207
        %v5341 = vunpack.c.l.b16 %v5208
        %v5342 = vunpack.c.l.b16 %v5209
        %v5343 = vunpack.c.l.b16 %v5210
        %v5344 = vunpack.c.l.b16 %v5211
        %v5345 = vunpack.c.l.b16 %v5212
        %v5346 = vunpack.c.l.b16 %v5213
        %v5347 = vunpack.c.l.b16 %v5214
        %v5348 = vunpack.c.l.b16 %v5215
        %v5349 = vunpack.c.l.b16 %v5216
        %v5350 = vunpack.c.l.b16 %v5217
        %v5351 = vunpack.c.l.b16 %v5218
        %v5352 = vunpack.c.l.b16 %v5219
        %v5353 = vunpack.c.l.b16 %v5220
        %v5354 = vunpack.c.l.b16 %v5221
        %v5355 = vunpack.c.l.b16 %v5222
        %v5356 = vunpack.c.l.b16 %v5223
        %v5357 = vunpack.c.l.b16 %v5224
        %v5358 = vunpack.c.l.b16 %v5225
        %v5359 = vunpack.c.l.b16 %v5226
        %v5360 = vunpack.c.l.b16 %v5227
        %v5361 = vunpack.c.l.b16 %v5228
        %v5362 = vunpack.c.l.b16 %v5229
        %v5363 = vunpack.c.l.b16 %v5230
        %v5364 = vunpack.c.l.b16 %v5231
        %v5365 = vunpack.c.l.b16 %v5232
        %v5366 = vunpack.c.l.b16 %v5233
        %v5367 = vunpack.c.l.b16 %v5234
        %v5368 = vunpack.c.l.b16 %v5235
        %v5369 = vunpack.c.l.b16 %v5236
        %v5370 = vunpack.c.l.b16 %v5237
        %v5371 = vunpack.c.l.b16 %v5238
        %v5372 = vunpack.c.l.b16 %v5239
        %v5373 = vunpack.c.l.b16 %v5240
        %v5374 = vunpack.c.l.b16 %v5241
        %v5375 = vunpack.c.l.b16 %v5242
        %v5376 = vpack.c.b16 %v5313, %v5312
        %v5377 = vpack.c.b16 %v5315, %v5314
        %v5378 = vpack.c.b16 %v5317, %v5316
        %v5379 = vpack.c.b16 %v5319, %v5318
        %v5380 = vpack.c.b16 %v5321, %v5320
        %v5381 = vpack.c.b16 %v5323, %v5322
        %v5382 = vpack.c.b16 %v5325, %v5324
        %v5383 = vpack.c.b16 %v5327, %v5326
        %v5384 = vpack.c.b16 %v5329, %v5328
        %v5385 = vpack.c.b16 %v5331, %v5330
        %v5386 = vpack.c.b16 %v5333, %v5332
        %v5387 = vpack.c.b16 %v5335, %v5334
        %v5388 = vpack.c.b16 %v5337, %v5336
        %v5389 = vpack.c.b16 %v5339, %v5338
        %v5390 = vpack.c.b16 %v5341, %v5340
        %v5391 = vpack.c.b16 %v5343, %v5342
        %v5392 = vpack.c.b16 %v5345, %v5344
        %v5393 = vpack.c.b16 %v5347, %v5346
        %v5394 = vpack.c.b16 %v5349, %v5348
        %v5395 = vpack.c.b16 %v5351, %v5350
        %v5396 = vpack.c.b16 %v5353, %v5352
        %v5397 = vpack.c.b16 %v5355, %v5354
        %v5398 = vpack.c.b16 %v5357, %v5356
        %v5399 = vpack.c.b16 %v5359, %v5358
        %v5400 = vpack.c.b16 %v5361, %v5360
        %v5401 = vpack.c.b16 %v5363, %v5362
        %v5402 = vpack.c.b16 %v5365, %v5364
        %v5403 = vpack.c.b16 %v5367, %v5366
        %v5404 = vpack.c.b16 %v5369, %v5368
        %v5405 = vpack.c.b16 %v5371, %v5370
        %v5406 = vpack.c.b16 %v5373, %v5372
        %v5407 = vpack.c.b16 %v5375, %v5374
        %5440 = vmatpush.bf16.msra.mxu0 %v5383
        %5441 = vmatpush.bf16.msra.mxu0 %v5382
        %5442 = vmatpush.bf16.msra.mxu0 %v5381
        %5443 = vmatpush.bf16.msra.mxu0 %v5380
        %5444 = vmatpush.bf16.msra.mxu0 %v5379
        %5445 = vmatpush.bf16.msra.mxu0 %v5378
        %5446 = vmatpush.bf16.msra.mxu0 %v5377
        %5447 = vmatpush.bf16.msra.mxu0 %v5376
        %5448 = vmatmul.bf16.gmra.mxu0 %v5162
        %v5449 = vpop.f32.mrf.mxu0
        %v5450 = vadd.f32 %v5246, %v5449
        %v5451 = vpop.f32.mrf.mxu0
        %v5452 = vadd.f32 %v5246, %v5451
        %5453 = vmatmul.bf16.gmra.mxu0 %v5166
        %v5454 = vpop.f32.mrf.mxu0
        %v5455 = vadd.f32 %v5246, %v5454
        %v5456 = vpop.f32.mrf.mxu0
        %v5457 = vadd.f32 %v5246, %v5456
        %5458 = vmatmul.bf16.gmra.mxu0 %v5170
        %v5459 = vpop.f32.mrf.mxu0
        %v5460 = vadd.f32 %v5246, %v5459
        %v5461 = vpop.f32.mrf.mxu0
        %v5462 = vadd.f32 %v5246, %v5461
        %5463 = vmatmul.bf16.gmra.mxu0 %v5174
        %v5464 = vpop.f32.mrf.mxu0
        %v5465 = vadd.f32 %v5246, %v5464
        %v5466 = vpop.f32.mrf.mxu0
        %v5467 = vadd.f32 %v5246, %v5466
        %5468 = vdwg.mxu0
        %5469 = vmatpush.bf16.msra.mxu0 %v5391
        %5470 = vmatpush.bf16.msra.mxu0 %v5390
        %5471 = vmatpush.bf16.msra.mxu0 %v5389
        %5472 = vmatpush.bf16.msra.mxu0 %v5388
        %5473 = vmatpush.bf16.msra.mxu0 %v5387
        %5474 = vmatpush.bf16.msra.mxu0 %v5386
        %5475 = vmatpush.bf16.msra.mxu0 %v5385
        %5476 = vmatpush.bf16.msra.mxu0 %v5384
        %5477 = vmatmul.bf16.gmra.mxu0 %v5163
        %v5478 = vpop.f32.mrf.mxu0
        %v5479 = vadd.f32 %v5450, %v5478
        %v5480 = vpop.f32.mrf.mxu0
        %v5481 = vadd.f32 %v5452, %v5480
        %5482 = vmatmul.bf16.gmra.mxu0 %v5167
        %v5483 = vpop.f32.mrf.mxu0
        %v5484 = vadd.f32 %v5455, %v5483
        %v5485 = vpop.f32.mrf.mxu0
        %v5486 = vadd.f32 %v5457, %v5485
        %5487 = vmatmul.bf16.gmra.mxu0 %v5171
        %v5488 = vpop.f32.mrf.mxu0
        %v5489 = vadd.f32 %v5460, %v5488
        %v5490 = vpop.f32.mrf.mxu0
        %v5491 = vadd.f32 %v5462, %v5490
        %5492 = vmatmul.bf16.gmra.mxu0 %v5175
        %v5493 = vpop.f32.mrf.mxu0
        %v5494 = vadd.f32 %v5465, %v5493
        %v5495 = vpop.f32.mrf.mxu0
        %v5496 = vadd.f32 %v5467, %v5495
        %5497 = vdwg.mxu0
        %5498 = vmatpush.bf16.msra.mxu0 %v5399
        %5499 = vmatpush.bf16.msra.mxu0 %v5398
        %5500 = vmatpush.bf16.msra.mxu0 %v5397
        %5501 = vmatpush.bf16.msra.mxu0 %v5396
        %5502 = vmatpush.bf16.msra.mxu0 %v5395
        %5503 = vmatpush.bf16.msra.mxu0 %v5394
        %5504 = vmatpush.bf16.msra.mxu0 %v5393
        %5505 = vmatpush.bf16.msra.mxu0 %v5392
        %5506 = vmatmul.bf16.gmra.mxu0 %v5164
        %v5507 = vpop.f32.mrf.mxu0
        %v5508 = vadd.f32 %v5479, %v5507
        %v5509 = vpop.f32.mrf.mxu0
        %v5510 = vadd.f32 %v5481, %v5509
        %5511 = vmatmul.bf16.gmra.mxu0 %v5168
        %v5512 = vpop.f32.mrf.mxu0
        %v5513 = vadd.f32 %v5484, %v5512
        %v5514 = vpop.f32.mrf.mxu0
        %v5515 = vadd.f32 %v5486, %v5514
        %5516 = vmatmul.bf16.gmra.mxu0 %v5172
        %v5517 = vpop.f32.mrf.mxu0
        %v5518 = vadd.f32 %v5489, %v5517
        %v5519 = vpop.f32.mrf.mxu0
        %v5520 = vadd.f32 %v5491, %v5519
        %5521 = vmatmul.bf16.gmra.mxu0 %v5176
        %v5522 = vpop.f32.mrf.mxu0
        %v5523 = vadd.f32 %v5494, %v5522
        %v5524 = vpop.f32.mrf.mxu0
        %v5525 = vadd.f32 %v5496, %v5524
        %5526 = vdwg.mxu0
        %5527 = vmatpush.bf16.msra.mxu0 %v5407
        %5528 = vmatpush.bf16.msra.mxu0 %v5406
        %5529 = vmatpush.bf16.msra.mxu0 %v5405
        %5530 = vmatpush.bf16.msra.mxu0 %v5404
        %5531 = vmatpush.bf16.msra.mxu0 %v5403
        %5532 = vmatpush.bf16.msra.mxu0 %v5402
        %5533 = vmatpush.bf16.msra.mxu0 %v5401
        %5534 = vmatpush.bf16.msra.mxu0 %v5400
        %5535 = vmatmul.bf16.gmra.mxu0 %v5165
        %v5536 = vpop.f32.mrf.mxu0
        %v5537 = vadd.f32 %v5508, %v5536
        %v5538 = vpop.f32.mrf.mxu0
        %v5539 = vadd.f32 %v5510, %v5538
        %5540 = vmatmul.bf16.gmra.mxu0 %v5169
        %v5541 = vpop.f32.mrf.mxu0
        %v5542 = vadd.f32 %v5513, %v5541
        %v5543 = vpop.f32.mrf.mxu0
        %v5544 = vadd.f32 %v5515, %v5543
        %5545 = vmatmul.bf16.gmra.mxu0 %v5173
        %v5546 = vpop.f32.mrf.mxu0
        %v5547 = vadd.f32 %v5518, %v5546
        %v5548 = vpop.f32.mrf.mxu0
        %v5549 = vadd.f32 %v5520, %v5548
        %5550 = vmatmul.bf16.gmra.mxu0 %v5177
        %v5551 = vpop.f32.mrf.mxu0
        %v5552 = vadd.f32 %v5523, %v5551
        %v5553 = vpop.f32.mrf.mxu0
        %v5554 = vadd.f32 %v5525, %v5553
        %5555 = vdwg.mxu0
        %v5556 = vadd.f32 %v4612, %v5537
        %v5557 = vadd.f32 %v4613, %v5539
        %v5558 = vadd.f32 %v4614, %v5542
        %v5559 = vadd.f32 %v4615, %v5544
        %v5560 = vadd.f32 %v4616, %v5547
        %v5561 = vadd.f32 %v4617, %v5549
        %v5562 = vadd.f32 %v4618, %v5552
        %v5563 = vadd.f32 %v4619, %v5554
        %v5564 = vld [vmem:[%s12] sm:$0x1]
        %v5565 = vld [vmem:[#allocation7] sm:$0x1]
        %5566 = vadd.xlane.f32.xlu0 %v5556
        %v5567 = vpop.xlane.xlu0 %5566
        %5568 = vadd.xlane.f32.xlu0 %v5557
        %v5569 = vpop.xlane.xlu0 %5568
        %5570 = vadd.xlane.f32.xlu0 %v5558
        %v5571 = vpop.xlane.xlu0 %5570
        %5572 = vadd.xlane.f32.xlu0 %v5559
        %v5573 = vpop.xlane.xlu0 %5572
        %5574 = vadd.xlane.f32.xlu0 %v5560
        %v5575 = vpop.xlane.xlu0 %5574
        %5576 = vadd.xlane.f32.xlu0 %v5561
        %v5577 = vpop.xlane.xlu0 %5576
        %5578 = vadd.xlane.f32.xlu0 %v5562
        %v5579 = vpop.xlane.xlu0 %5578
        %5580 = vadd.xlane.f32.xlu0 %v5563
        %v5581 = vpop.xlane.xlu0 %5580
        %v5582 = vmul.f32 %v5567, %v659
        %v5583 = vmul.f32 %v5569, %v659
        %v5584 = vmul.f32 %v5571, %v659
        %v5585 = vmul.f32 %v5573, %v659
        %v5586 = vmul.f32 %v5575, %v659
        %v5587 = vmul.f32 %v5577, %v659
        %v5588 = vmul.f32 %v5579, %v659
        %v5589 = vmul.f32 %v5581, %v659
        %v5590 = vsub.f32 %v5556, %v5582
        %v5591 = vsub.f32 %v5557, %v5583
        %v5592 = vsub.f32 %v5558, %v5584
        %v5593 = vsub.f32 %v5559, %v5585
        %v5594 = vsub.f32 %v5560, %v5586
        %v5595 = vsub.f32 %v5561, %v5587
        %v5596 = vsub.f32 %v5562, %v5588
        %v5597 = vsub.f32 %v5563, %v5589
        %v5598 = vmul.f32 %v5590, %v5590
        %v5599 = vmul.f32 %v5591, %v5591
        %v5600 = vmul.f32 %v5592, %v5592
        %v5601 = vmul.f32 %v5593, %v5593
        %v5602 = vmul.f32 %v5594, %v5594
        %v5603 = vmul.f32 %v5595, %v5595
        %v5604 = vmul.f32 %v5596, %v5596
        %v5605 = vmul.f32 %v5597, %v5597
        %5606 = vadd.xlane.f32.xlu0 %v5598
        %v5607 = vpop.xlane.xlu0 %5606
        %5608 = vadd.xlane.f32.xlu0 %v5599
        %v5609 = vpop.xlane.xlu0 %5608
        %5610 = vadd.xlane.f32.xlu0 %v5600
        %v5611 = vpop.xlane.xlu0 %5610
        %5612 = vadd.xlane.f32.xlu0 %v5601
        %v5613 = vpop.xlane.xlu0 %5612
        %5614 = vadd.xlane.f32.xlu0 %v5602
        %v5615 = vpop.xlane.xlu0 %5614
        %5616 = vadd.xlane.f32.xlu0 %v5603
        %v5617 = vpop.xlane.xlu0 %5616
        %5618 = vadd.xlane.f32.xlu0 %v5604
        %v5619 = vpop.xlane.xlu0 %5618
        %5620 = vadd.xlane.f32.xlu0 %v5605
        %v5621 = vpop.xlane.xlu0 %5620
        %v5622 = vmul.f32 %v5607, %v659
        %v5623 = vmul.f32 %v5609, %v659
        %v5624 = vmul.f32 %v5611, %v659
        %v5625 = vmul.f32 %v5613, %v659
        %v5626 = vmul.f32 %v5615, %v659
        %v5627 = vmul.f32 %v5617, %v659
        %v5628 = vmul.f32 %v5619, %v659
        %v5629 = vmul.f32 %v5621, %v659
        %v5630 = vadd.f32 %v5622, 1e-05
        %v5631 = vadd.f32 %v5623, 1e-05
        %v5632 = vadd.f32 %v5624, 1e-05
        %v5633 = vadd.f32 %v5625, 1e-05
        %v5634 = vadd.f32 %v5626, 1e-05
        %v5635 = vadd.f32 %v5627, 1e-05
        %v5636 = vadd.f32 %v5628, 1e-05
        %v5637 = vadd.f32 %v5629, 1e-05
        %v5638 = vrsqrt.pop %v5630
        %v5639 = vmul.f32 %v5638, %v5630
        %v5640 = vmul.f32 %v5639, %v5638
        %v5641 = vmul.f32 0.5, %v5640
        %v5642 = vsub.f32 1.5, %v5641
        %v5643 = vmul.f32 %v5638, %v5642
        %vm5644 = vweird.f32 %v5630
        %vm5645 = vweird.f32 %v5638
        %vm5646 = vmor %vm5644, %vm5645
        %v5647 = vsel %vm5646, %v5638, %v5643
        %v5648 = vrsqrt.pop %v5631
        %v5649 = vmul.f32 %v5648, %v5631
        %v5650 = vmul.f32 %v5649, %v5648
        %v5651 = vmul.f32 0.5, %v5650
        %v5652 = vsub.f32 1.5, %v5651
        %v5653 = vmul.f32 %v5648, %v5652
        %vm5654 = vweird.f32 %v5631
        %vm5655 = vweird.f32 %v5648
        %vm5656 = vmor %vm5654, %vm5655
        %v5657 = vsel %vm5656, %v5648, %v5653
        %v5658 = vrsqrt.pop %v5632
        %v5659 = vmul.f32 %v5658, %v5632
        %v5660 = vmul.f32 %v5659, %v5658
        %v5661 = vmul.f32 0.5, %v5660
        %v5662 = vsub.f32 1.5, %v5661
        %v5663 = vmul.f32 %v5658, %v5662
        %vm5664 = vweird.f32 %v5632
        %vm5665 = vweird.f32 %v5658
        %vm5666 = vmor %vm5664, %vm5665
        %v5667 = vsel %vm5666, %v5658, %v5663
        %v5668 = vrsqrt.pop %v5633
        %v5669 = vmul.f32 %v5668, %v5633
        %v5670 = vmul.f32 %v5669, %v5668
        %v5671 = vmul.f32 0.5, %v5670
        %v5672 = vsub.f32 1.5, %v5671
        %v5673 = vmul.f32 %v5668, %v5672
        %vm5674 = vweird.f32 %v5633
        %vm5675 = vweird.f32 %v5668
        %vm5676 = vmor %vm5674, %vm5675
        %v5677 = vsel %vm5676, %v5668, %v5673
        %v5678 = vrsqrt.pop %v5634
        %v5679 = vmul.f32 %v5678, %v5634
        %v5680 = vmul.f32 %v5679, %v5678
        %v5681 = vmul.f32 0.5, %v5680
        %v5682 = vsub.f32 1.5, %v5681
        %v5683 = vmul.f32 %v5678, %v5682
        %vm5684 = vweird.f32 %v5634
        %vm5685 = vweird.f32 %v5678
        %vm5686 = vmor %vm5684, %vm5685
        %v5687 = vsel %vm5686, %v5678, %v5683
        %v5688 = vrsqrt.pop %v5635
        %v5689 = vmul.f32 %v5688, %v5635
        %v5690 = vmul.f32 %v5689, %v5688
        %v5691 = vmul.f32 0.5, %v5690
        %v5692 = vsub.f32 1.5, %v5691
        %v5693 = vmul.f32 %v5688, %v5692
        %vm5694 = vweird.f32 %v5635
        %vm5695 = vweird.f32 %v5688
        %vm5696 = vmor %vm5694, %vm5695
        %v5697 = vsel %vm5696, %v5688, %v5693
        %v5698 = vrsqrt.pop %v5636
        %v5699 = vmul.f32 %v5698, %v5636
        %v5700 = vmul.f32 %v5699, %v5698
        %v5701 = vmul.f32 0.5, %v5700
        %v5702 = vsub.f32 1.5, %v5701
        %v5703 = vmul.f32 %v5698, %v5702
        %vm5704 = vweird.f32 %v5636
        %vm5705 = vweird.f32 %v5698
        %vm5706 = vmor %vm5704, %vm5705
        %v5707 = vsel %vm5706, %v5698, %v5703
        %v5708 = vrsqrt.pop %v5637
        %v5709 = vmul.f32 %v5708, %v5637
        %v5710 = vmul.f32 %v5709, %v5708
        %v5711 = vmul.f32 0.5, %v5710
        %v5712 = vsub.f32 1.5, %v5711
        %v5713 = vmul.f32 %v5708, %v5712
        %vm5714 = vweird.f32 %v5637
        %vm5715 = vweird.f32 %v5708
        %vm5716 = vmor %vm5714, %vm5715
        %v5717 = vsel %vm5716, %v5708, %v5713
        %v5718 = vmul.f32 %v5590, %v5647
        %v5719 = vmul.f32 %v5591, %v5657
        %v5720 = vmul.f32 %v5592, %v5667
        %v5721 = vmul.f32 %v5593, %v5677
        %v5722 = vmul.f32 %v5594, %v5687
        %v5723 = vmul.f32 %v5595, %v5697
        %v5724 = vmul.f32 %v5596, %v5707
        %v5725 = vmul.f32 %v5597, %v5717
        %v5727 = vperm.slane %v5564, 0
        %v5729 = vmul.f32 %v5718, %v5727
        %v5730 = vmul.f32 %v5719, %v5727
        %v5731 = vmul.f32 %v5720, %v5727
        %v5732 = vmul.f32 %v5721, %v5727
        %v5733 = vmul.f32 %v5722, %v5727
        %v5734 = vmul.f32 %v5723, %v5727
        %v5735 = vmul.f32 %v5724, %v5727
        %v5736 = vmul.f32 %v5725, %v5727
        %v5738 = vperm.slane %v5565, 0
        %v5740 = vadd.f32 %v5729, %v5738
        %v5741 = vadd.f32 %v5730, %v5738
        %v5742 = vadd.f32 %v5731, %v5738
        %v5743 = vadd.f32 %v5732, %v5738
        %v5744 = vadd.f32 %v5733, %v5738
        %v5745 = vadd.f32 %v5734, %v5738
        %v5746 = vadd.f32 %v5735, %v5738
        %v5747 = vadd.f32 %v5736, %v5738
        %v5748 = vpack.c.bf16 %v5741, %v5740
        %v5749 = vpack.c.bf16 %v5743, %v5742
        %v5750 = vpack.c.bf16 %v5745, %v5744
        %v5751 = vpack.c.bf16 %v5747, %v5746
        %v5752 = vld [vmem:[#allocation8] sm:$0xf]
        %v5753 = vld [vmem:[#allocation8 + $0x4] sm:$0xf]
        %v5754 = vld [vmem:[#allocation8 + $0x8] sm:$0xf]
        %v5755 = vld [vmem:[#allocation8 + $0xc] sm:$0xf]
        %v5756 = vld [vmem:[#allocation8 + $0x10] sm:$0xf]
        %v5757 = vld [vmem:[#allocation8 + $0x14] sm:$0xf]
        %v5758 = vld [vmem:[#allocation8 + $0x18] sm:$0xf]
        %v5759 = vld [vmem:[#allocation8 + $0x1c] sm:$0xf]
        %v5760 = vld [vmem:[#allocation8 + $0x20] sm:$0xf]
        %v5761 = vld [vmem:[#allocation8 + $0x24] sm:$0xf]
        %v5762 = vld [vmem:[#allocation8 + $0x28] sm:$0xf]
        %v5763 = vld [vmem:[#allocation8 + $0x2c] sm:$0xf]
        %v5764 = vld [vmem:[#allocation8 + $0x30] sm:$0xf]
        %v5765 = vld [vmem:[#allocation8 + $0x34] sm:$0xf]
        %v5766 = vld [vmem:[#allocation8 + $0x38] sm:$0xf]
        %v5767 = vld [vmem:[#allocation8 + $0x3c] sm:$0xf]
        %v5768 = vld [vmem:[#allocation10] sm:$0x1]
        %v5770 = vperm.slane %v5768, 0
        %v5788 = vunpack.c.l.b16 %v5752
        %v5789 = vunpack.c.l.b16 %v5753
        %v5790 = vunpack.c.l.b16 %v5754
        %v5791 = vunpack.c.l.b16 %v5755
        %v5792 = vunpack.c.l.b16 %v5756
        %v5793 = vunpack.c.l.b16 %v5757
        %v5794 = vunpack.c.l.b16 %v5758
        %v5795 = vunpack.c.l.b16 %v5759
        %v5796 = vunpack.c.l.b16 %v5760
        %v5797 = vunpack.c.l.b16 %v5761
        %v5798 = vunpack.c.l.b16 %v5762
        %v5799 = vunpack.c.l.b16 %v5763
        %v5800 = vunpack.c.l.b16 %v5764
        %v5801 = vunpack.c.l.b16 %v5765
        %v5802 = vunpack.c.l.b16 %v5766
        %v5803 = vunpack.c.l.b16 %v5767
        %v5804 = vpack.c.b16 %v5789, %v5788
        %v5805 = vpack.c.b16 %v5791, %v5790
        %v5806 = vpack.c.b16 %v5793, %v5792
        %v5807 = vpack.c.b16 %v5795, %v5794
        %v5808 = vpack.c.b16 %v5797, %v5796
        %v5809 = vpack.c.b16 %v5799, %v5798
        %v5810 = vpack.c.b16 %v5801, %v5800
        %v5811 = vpack.c.b16 %v5803, %v5802
        %5820 = vmatpush.bf16.msra.mxu0 %v5811
        %5821 = vmatpush.bf16.msra.mxu0 %v5810
        %5822 = vmatpush.bf16.msra.mxu0 %v5809
        %5823 = vmatpush.bf16.msra.mxu0 %v5808
        %5824 = vmatpush.bf16.msra.mxu0 %v5807
        %5825 = vmatpush.bf16.msra.mxu0 %v5806
        %5826 = vmatpush.bf16.msra.mxu0 %v5805
        %5827 = vmatpush.bf16.msra.mxu0 %v5804
        %5828 = vmatmul.bf16.gmra.mxu0 %v5748
        %v5829 = vpop.f32.mrf.mxu0
        %v5830 = vadd.f32 %v5770, %v5829
        %v5831 = vpop.f32.mrf.mxu0
        %v5832 = vadd.f32 %v5770, %v5831
        %5833 = vmatmul.bf16.gmra.mxu0 %v5749
        %v5834 = vpop.f32.mrf.mxu0
        %v5835 = vadd.f32 %v5770, %v5834
        %v5836 = vpop.f32.mrf.mxu0
        %v5837 = vadd.f32 %v5770, %v5836
        %5838 = vmatmul.bf16.gmra.mxu0 %v5750
        %v5839 = vpop.f32.mrf.mxu0
        %v5840 = vadd.f32 %v5770, %v5839
        %v5841 = vpop.f32.mrf.mxu0
        %v5842 = vadd.f32 %v5770, %v5841
        %5843 = vmatmul.bf16.gmra.mxu0 %v5751
        %v5844 = vpop.f32.mrf.mxu0
        %v5845 = vadd.f32 %v5770, %v5844
        %v5846 = vpop.f32.mrf.mxu0
        %v5847 = vadd.f32 %v5770, %v5846
        %5848 = vdwg.mxu0
        %5849 = vst [vmem:[%s593] sm:$0xff] %v5830
        %5850 = vst [vmem:[%s593 + $0x8] sm:$0xff] %v5832
        %5851 = vst [vmem:[%s593 + $0x10] sm:$0xff] %v5835
        %5852 = vst [vmem:[%s593 + $0x18] sm:$0xff] %v5837
        %5853 = vst [vmem:[%s593 + $0x20] sm:$0xff] %v5840
        %5854 = vst [vmem:[%s593 + $0x28] sm:$0xff] %v5842
        %5855 = vst [vmem:[%s593 + $0x30] sm:$0xff] %v5845
        %5856 = vst [vmem:[%s593 + $0x38] sm:$0xff] %v5847
        %s5857 = sand.u32 %s382, 1
        %s5858 = scalar_lea.sflag [#allocation4], %s5857
        %s5859 = sand.u32 %s382, 1
        %s5860 = smul.addr %s5859, 64
        %s5861 = scalar_lea.vmem [#allocation11], %s5860
        // Predicated region
        $region105: #{bigram_lm_forward.1} parent=83 // pred_check
          %p5862 = pneg %p392
        $region106: #{bigram_lm_forward.1} parent=83 // pred_check_branch
          %5864 = sbr.rel (%p5862) target = $region108
        $region107: #{bigram_lm_forward.1} parent=83 // pred_region
          %5866 = vsyncadd %s5858, 0
          %s5867 = smul.addr %s33, 8
          %s5868 = smul.addr %s5867, 8
          %s5869 = scalar_lea.hbm %s16, %s5868
          %s5870 = sshll.u32 %s5861, 4
          %s5871 = int_to_ptr.vmem [resolvable:$true] %s5870
          %s5872 = sshll.u32 %s5869, 4
          %s5873 = int_to_ptr.hbm [resolvable:$true] %s5872
          %5878 = dma.vmem_to_hbm [thread:$0]  %s5871, 1024, %s5873, %s5858, 128, 128, 8
        $region108: #{bigram_lm_forward.1} parent=83 // pred_fallthru
          _
      $region84: #{bigram_lm_forward.1} parent=5 // pred_fallthru
        _
      %p5879 = scmp.le.s32.totalorder 2, %s28
      // Predicated region
      $region109: #{bigram_lm_forward.1} parent=5 // pred_check
        %p5880 = pneg %p5879
      $region110: #{bigram_lm_forward.1} parent=5 // pred_check_branch
        %5882 = sbr.rel (%p5880) target = $region112
      $region111: #{bigram_lm_forward.1} parent=5 // pred_region
        %s5883 = ssub.s32 %s28, 2
        // Predicated region
        $region113: #{bigram_lm_forward.1} parent=111 // pred_check
          %p5884 = pneg %p398
        $region114: #{bigram_lm_forward.1} parent=111 // pred_check_branch
          %5886 = sbr.rel (%p5884) target = $region116
        $region115: #{bigram_lm_forward.1} parent=111 // pred_region
          %s5887 = sand.u32 %s383, 1
          %s5888 = scalar_lea.sflag [#allocation4], %s5887
          %s5889 = sand.u32 %s383, 1
          %s5890 = smul.addr %s5889, 64
          %s5891 = scalar_lea.vmem [#allocation11], %s5890
          %5893 = dma.done %s5888, 1024
        $region116: #{bigram_lm_forward.1} parent=111 // pred_fallthru
          _
      $region112: #{bigram_lm_forward.1} parent=5 // pred_fallthru
        _
    $region6: #{bigram_lm_forward.1} parent=1 // loop_footer
      %s32 = sadd.s32 1, %s28
    $region7: #{bigram_lm_forward.1} parent=1 // loop_footer_branch
      %27 = sbr.rel target = $region3
    $region8: #{bigram_lm_forward.1} parent=1 // loop_exit
      _
    %5894 = vsyncpa [#allocation3], 1
    %s5895 = scalar_lea.sflag [#allocation3], 1
    %5896 = vsyncpa %s5895, 1
    %5897 = vsyncpa [#allocation6], 1
    %5898 = vsyncpa [#allocation9], 1
    %5899 = vsyncpa [#allocation4], 1
    %s5900 = scalar_lea.sflag [#allocation4], 1
    %5901 = vsyncpa %s5900, 1

</llo_original>
